<compile_context>
chip_gen: v6e
topology: v6e:2x2x1
jax: 0.10.0
libtpu: 0.0.40
codegen_flags: <defaults>
</compile_context>

<pallas_src>
import functools
import inspect
import math
import warnings

import jax
import jax.numpy as jnp
from jax.experimental import pallas as pl
from jax.experimental.pallas import tpu as pltpu


# ---------------------------------------------------------------------------
# helpers used inside the kernel (f32 math)
# ---------------------------------------------------------------------------
def _layernorm(x, gamma, beta, eps=1e-5):
    # two-pass mean / variance (numerically stable, same reduction count as one-pass)
    mu = jnp.mean(x, axis=-1, keepdims=True)
    xc = x - mu
    var = jnp.mean(xc * xc, axis=-1, keepdims=True)
    return xc * jax.lax.rsqrt(var + eps) * gamma + beta


def _new_gelu(x):
    c = math.sqrt(2.0 / math.pi)
    return 0.5 * x * (1.0 + jnp.tanh(c * (x + 0.044715 * x * x * x)))


# ---------------------------------------------------------------------------
# kernel: one grid step == (batch element, query tile); whole block fused
# ---------------------------------------------------------------------------
def block_kernel(x_ref, ln1g_ref, ln1b_ref, wqkv_ref, bqkv_ref, wo_ref, bo_ref,
                 ln2g_ref, ln2b_ref, w1_ref, b1_ref, w2_ref, b2_ref,
                 out_ref, probs_ref=None, *, num_heads, head_size, q_block, seq_valid):
    f32, bf16 = jnp.float32, jnp.bfloat16
    H = num_heads * head_size
    hs = head_size
    t_pad = x_ref.shape[1]
    n_q_tiles = t_pad // q_block
    scale = 1.0 / math.sqrt(head_size)

    x_full = x_ref[0]                                         # (t_pad, H) f32
    ln1g, ln1b = ln1g_ref[0], ln1b_ref[0]
    bqkv = bqkv_ref[0]                                        # (3H,) f32

    # ---- layernorm_1 over the full (padded) sequence (needed for K / V) ----
    xn_full = _layernorm(x_full, ln1g, ln1b)

    if n_q_tiles == 1:
        # single query tile: one fused (T,H) @ (H,3H) projection (N = 3H fills the MXU)
        qkv = jnp.dot(xn_full.astype(bf16), wqkv_ref[...],
                      preferred_element_type=f32) + bqkv      # (t_pad, 3H) f32
        q_rows = qkv[:, :H]
        k = qkv[:, H:2 * H]
        v = qkv[:, 2 * H:]
        x_tile = x_full
    else:
        # query tiling (second parallel grid axis -> v7x dual TensorCore):
        # K/V over the full sequence, Q only for this tile's rows.
        kv = jnp.dot(xn_full.astype(bf16), wqkv_ref[:, pl.ds(H, 2 * H)],
                     preferred_element_type=f32) + bqkv[H:]   # (t_pad, 2H) f32
        k = kv[:, :H]
        v = kv[:, H:]
        row0 = pl.multiple_of(pl.program_id(1) * q_block, q_block)
        x_tile = x_ref[0, pl.ds(row0, q_block), :]            # (q_block, H) f32
        xn_tile = _layernorm(x_tile, ln1g, ln1b)
        q_rows = jnp.dot(xn_tile.astype(bf16), wqkv_ref[:, pl.ds(0, H)],
                         preferred_element_type=f32) + bqkv[:H]

    # ---- head-major (nh, T, hd) operands (leading-dim stack; no in-kernel transpose) ----
    q_b = (q_rows * scale).astype(bf16)                       # fold 1/sqrt(hd) into q once
    k_b = k.astype(bf16)
    v_b = v.astype(bf16)
    q_h = jnp.stack([q_b[:, h * hs:(h + 1) * hs] for h in range(num_heads)], axis=0)
    k_h = jnp.stack([k_b[:, h * hs:(h + 1) * hs] for h in range(num_heads)], axis=0)
    v_h = jnp.stack([v_b[:, h * hs:(h + 1) * hs] for h in range(num_heads)], axis=0)

    # ---- batched (over heads) attention ----
    # TODO(synk): attn_dropout / output dropout omitted (identity in eval mode).
    scores = jnp.einsum("htd,hsd->hts", q_h, k_h,
                        preferred_element_type=f32)           # (nh, tq, t_pad) f32
    if seq_valid < t_pad:                                     # mask padded key positions
        key_ids = jax.lax.broadcasted_iota(jnp.int32, (1, 1, t_pad), 2)
        scores = jnp.where(key_ids < seq_valid, scores, -1e30)
    scores = scores - jnp.max(scores, axis=-1, keepdims=True)
    e = jnp.exp(scores)
    probs = e * pl.reciprocal(jnp.sum(e, axis=-1, keepdims=True), approx=True)
    if probs_ref is not None:
        probs_ref[0] = probs.astype(probs_ref.dtype)          # attention_probs[b, :, q-tile, :]

    ctx = jnp.einsum("hts,hsd->htd", probs.astype(bf16), v_h,
                     preferred_element_type=f32)              # (nh, tq, hd) f32

    # ---- concat heads along lanes -> ONE (tq,H) @ (H,H) output projection ----
    ctx_b = ctx.astype(bf16)
    attn_cat = jnp.concatenate([ctx_b[h] for h in range(num_heads)], axis=-1)  # (tq, H) bf16
    attn = jnp.dot(attn_cat, wo_ref[...], preferred_element_type=f32) + bo_ref[0]

    # ---- residual 1 ----
    x1 = x_tile + attn

    # ---- layernorm_2 + MLP (NewGELU), bf16 matmul operands ----
    x2n = _layernorm(x1, ln2g_ref[0], ln2b_ref[0])
    hid = jnp.dot(x2n.astype(bf16), w1_ref[...], preferred_element_type=f32) + b1_ref[0]
    hid = _new_gelu(hid)
    mlp = jnp.dot(hid.astype(bf16), w2_ref[...], preferred_element_type=f32) + b2_ref[0]

    # ---- residual 2 ----
    out_ref[0] = (x1 + mlp).astype(out_ref.dtype)


# ---------------------------------------------------------------------------
# wrapper helpers
# ---------------------------------------------------------------------------
def _supports_single_buffered_specs():
    if not hasattr(pl, "Buffered"):
        return False
    try:
        return "pipeline_mode" in inspect.signature(pl.BlockSpec).parameters
    except (TypeError, ValueError):
        return True   # cannot introspect; optimistically try (fallback still guards)


def _vmem_limit_bytes():
    # generation-aware scoped-VMEM budget: ~3/4 of physical capacity
    # (96 MiB on 128-MiB v5e/v6e, 48 MiB on 64-MiB v7x), capped at 100 MiB.
    cap = None
    try:
        cap = getattr(pltpu.get_tpu_info(), "vmem_capacity_bytes", None)
    except Exception:   # info query must never break the kernel
        cap = None
    if not cap:
        cap = 64 * 1024 * 1024
    return int(min(max(cap * 3 // 4, 32 * 1024 * 1024), 100 * 1024 * 1024))


# ---------------------------------------------------------------------------
# wrapper
# ---------------------------------------------------------------------------
def vit_block(x, params, *, num_heads, output_attentions=False, q_block=None,
              out_dtype=jnp.float32):
    B, T, H = x.shape
    head_size = H // num_heads
    I = params["w1"].shape[1]
    f32, bf16 = jnp.float32, jnp.bfloat16

    # pad the sequence to a sublane / query-tile multiple; padded keys are masked in the
    # kernel, padded rows are sliced off afterwards.
    if q_block is None:
        t_pad = ((T + 7) // 8) * 8
        q_block = t_pad
    else:
        assert q_block % 8 == 0, "q_block must be a multiple of 8 (sublane)"
        t_pad = ((T + q_block - 1) // q_block) * q_block
    n_q_tiles = t_pad // q_block

    x_p = x.astype(f32)
    if t_pad != T:
        x_p = jnp.pad(x_p, ((0, 0), (0, t_pad - T), (0, 0)))

    # bf16 matmul weights (MXU operands, half the DMA/VMEM bytes); f32 biases / LN params.
    wqkv = params["wqkv"].astype(bf16)
    wo = params["wo"].astype(bf16)
    w1 = params["w1"].astype(bf16)
    w2 = params["w2"].astype(bf16)
    ln1g, ln1b = params["ln1g"].astype(f32), params["ln1b"].astype(f32)
    ln2g, ln2b = params["ln2g"].astype(f32), params["ln2b"].astype(f32)
    bqkv, bo = params["bqkv"].astype(f32), params["bo"].astype(f32)
    b1, b2 = params["b1"].astype(f32), params["b2"].astype(f32)

    kernel = functools.partial(block_kernel, num_heads=num_heads, head_size=head_size,
                               q_block=q_block, seq_valid=T)

    out_spec = pl.BlockSpec((1, q_block, H), lambda b, qt: (b, qt, 0))
    if output_attentions:
        out_shape = (jax.ShapeDtypeStruct((B, t_pad, H), out_dtype),
                     jax.ShapeDtypeStruct((B, num_heads, t_pad, t_pad), out_dtype))
        out_specs = [out_spec,
                     pl.BlockSpec((1, num_heads, q_block, t_pad),
                                  lambda b, qt: (b, 0, qt, 0))]
    else:
        # drop the attention_probs writeback entirely (biggest HBM write at real sizes)
        out_shape = jax.ShapeDtypeStruct((B, t_pad, H), out_dtype)
        out_specs = out_spec

    def build_and_run(single_buffer):
        def const_spec(shape):
            idx = lambda b, qt, _n=len(shape): (0,) * _n
            if single_buffer:
                # weights never change across grid steps -> single VMEM copy
                return pl.BlockSpec(shape, idx, pipeline_mode=pl.Buffered(1))
            return pl.BlockSpec(shape, idx)

        in_specs = [
            pl.BlockSpec((1, t_pad, H), lambda b, qt: (b, 0, 0)),   # x (full padded sequence)
            const_spec((1, H)), const_spec((1, H)),                 # ln1 gamma / beta
            const_spec((H, 3 * H)), const_spec((1, 3 * H)),         # qkv weight / bias
            const_spec((H, H)), const_spec((1, H)),                 # out-proj weight / bias
            const_spec((1, H)), const_spec((1, H)),                 # ln2 gamma / beta
            const_spec((H, I)), const_spec((1, I)),                 # mlp dense_1
            const_spec((I, H)), const_spec((1, H)),                 # mlp dense_2
        ]
        return pl.pallas_call(
            kernel,
            out_shape=out_shape,
            grid_spec=pltpu.PrefetchScalarGridSpec(
                num_scalar_prefetch=0,
                grid=(B, n_q_tiles),
                in_specs=in_specs,
                out_specs=out_specs,
            ),
            compiler_params=pltpu.CompilerParams(
                dimension_semantics=("parallel", "parallel"),
                vmem_limit_bytes=_vmem_limit_bytes(),
            ),
        )(x_p, ln1g, ln1b, wqkv, bqkv, wo, bo, ln2g, ln2b, w1, b1, w2, b2)

    if _supports_single_buffered_specs():
        try:
            result = build_and_run(True)
        except Exception as e:   # log + fall back; never hard-fail on the buffering hint
            warnings.warn(f"vit_block: single-buffered weight specs failed ({e!r}); "
                          "falling back to double-buffered weights.")
            result = build_and_run(False)
    else:
        result = build_and_run(False)

    if output_attentions:
        out_p, probs_p = result
        return out_p[:, :T, :], probs_p[:, :, :T, :T]
    return result[:, :T, :], None


# ---------------------------------------------------------------------------
# pure-JAX f32 reference (faithful to the PyTorch module) for correctness check
# ---------------------------------------------------------------------------
def _layernorm_ref(x, gamma, beta, eps=1e-5):
    mu = jnp.mean(x, axis=-1, keepdims=True)
    var = jnp.mean((x - mu) ** 2, axis=-1, keepdims=True)
    return (x - mu) * jax.lax.rsqrt(var + eps) * gamma + beta


def vit_block_ref(x, p, *, num_heads):
    B, T, H = x.shape
    hs = H // num_heads
    xn = _layernorm_ref(x, p["ln1g"][0], p["ln1b"][0])
    qkv = xn @ p["wqkv"] + p["bqkv"][0]
    q, k, v = jnp.split(qkv, 3, axis=-1)
    q = q.reshape(B, T, num_heads, hs).transpose(0, 2, 1, 3)
    k = k.reshape(B, T, num_heads, hs).transpose(0, 2, 1, 3)
    v = v.reshape(B, T, num_heads, hs).transpose(0, 2, 1, 3)
    scores = jnp.einsum("bhtd,bhsd->bhts", q, k) / math.sqrt(hs)
    probs = jax.nn.softmax(scores, axis=-1)
    attn = jnp.einsum("bhts,bhsd->bhtd", probs, v).transpose(0, 2, 1, 3).reshape(B, T, H)
    attn = attn @ p["wo"] + p["bo"][0]
    x1 = x + attn
    x2n = _layernorm_ref(x1, p["ln2g"][0], p["ln2b"][0])
    mlp = _new_gelu(x2n @ p["w1"] + p["b1"][0]) @ p["w2"] + p["b2"][0]
    return x1 + mlp, probs


# ---------------------------------------------------------------------------
if __name__ == "__main__":
    # T=12 exercises the pad-to-16 + key-mask path; q_block=8 exercises query tiling.
    B, T, H = 2, 12, 32
    num_heads, I = 4, 64

    key = jax.random.PRNGKey(0)
    keys = jax.random.split(key, 10)

    def rnd(k, shape, scale=0.05):
        return (scale * jax.random.normal(k, shape)).astype(jnp.float32)

    params = {
        "ln1g": jnp.ones((1, H), jnp.float32),
        "ln1b": jnp.zeros((1, H), jnp.float32),
        "wqkv": rnd(keys[0], (H, 3 * H)),
        "bqkv": rnd(keys[1], (1, 3 * H)),
        "wo":   rnd(keys[2], (H, H)),
        "bo":   rnd(keys[3], (1, H)),
        "ln2g": jnp.ones((1, H), jnp.float32),
        "ln2b": jnp.zeros((1, H), jnp.float32),
        "w1":   rnd(keys[4], (H, I)),
        "b1":   rnd(keys[5], (1, I)),
        "w2":   rnd(keys[6], (I, H)),
        "b2":   rnd(keys[7], (1, H)),
    }

    x = jax.random.normal(keys[8], (B, T, H), dtype=jnp.float32)
    ref_out, ref_probs = vit_block_ref(x, params, num_heads=num_heads)

    # with attention probs (output_attentions=True), default single query tile
    out, probs = vit_block(x, params, num_heads=num_heads, output_attentions=True)
    jax.block_until_ready((out, probs))
    assert out.shape == (B, T, H) and probs.shape == (B, num_heads, T, T)
    # bf16 matmul operands + approx reciprocal -> slightly looser tolerances than f32
    assert jnp.allclose(out, ref_out, atol=2e-2, rtol=2e-2)
    assert jnp.allclose(probs, ref_probs, atol=1e-2, rtol=5e-2)

    # without attention probs (module default): same output, no probs writeback
    out_np, probs_np = vit_block(x, params, num_heads=num_heads, output_attentions=False)
    out_np = jax.block_until_ready(out_np)
    assert probs_np is None
    assert jnp.allclose(out_np, out, atol=1e-6, rtol=1e-6)

    # explicit query tiling (second parallel grid axis; 2 tiles of 8 rows)
    out_qt, probs_qt = vit_block(x, params, num_heads=num_heads,
                                 output_attentions=True, q_block=8)
    jax.block_until_ready((out_qt, probs_qt))
    assert jnp.allclose(out_qt, ref_out, atol=2e-2, rtol=2e-2)
    assert jnp.allclose(probs_qt, ref_probs, atol=1e-2, rtol=5e-2)
    assert jnp.allclose(out_qt, out, atol=1e-3, rtol=1e-3)

    print("KERNEL_OK")
</pallas_src>

<mosaic_0001>
module attributes {stable_mosaic.version = 11 : i64} {
  func.func @block_kernel(%arg0: i32, %arg1: i32, %arg2: memref<1x16x32xf32, #tpu.memory_space<vmem>>, %arg3: memref<1x32xf32, #tpu.memory_space<vmem>>, %arg4: memref<1x32xf32, #tpu.memory_space<vmem>>, %arg5: memref<32x96xbf16, #tpu.memory_space<vmem>>, %arg6: memref<1x96xf32, #tpu.memory_space<vmem>>, %arg7: memref<32x32xbf16, #tpu.memory_space<vmem>>, %arg8: memref<1x32xf32, #tpu.memory_space<vmem>>, %arg9: memref<1x32xf32, #tpu.memory_space<vmem>>, %arg10: memref<1x32xf32, #tpu.memory_space<vmem>>, %arg11: memref<32x64xbf16, #tpu.memory_space<vmem>>, %arg12: memref<1x64xf32, #tpu.memory_space<vmem>>, %arg13: memref<64x32xbf16, #tpu.memory_space<vmem>>, %arg14: memref<1x32xf32, #tpu.memory_space<vmem>>, %arg15: memref<1x16x32xf32, #tpu.memory_space<vmem>>, %arg16: memref<1x4x16x16xf32, #tpu.memory_space<vmem>>) attributes {dimension_semantics = [#tpu.dimension_semantics<parallel>, #tpu.dimension_semantics<parallel>], iteration_bounds = array<i64: 2, 1>, scalar_prefetch = 0 : i64, scratch_operands = 0 : i64, tpu.core_type = #tpu.core_type<tc>, window_params = [{transform_indices = @transform_0, window_bounds = array<i64: 1, 16, 32>}, {pipeline_mode = #tpu.pipeline_mode<synchronous>, transform_indices = @transform_1, window_bounds = array<i64: 1, 32>}, {pipeline_mode = #tpu.pipeline_mode<synchronous>, transform_indices = @transform_2, window_bounds = array<i64: 1, 32>}, {pipeline_mode = #tpu.pipeline_mode<synchronous>, transform_indices = @transform_3, window_bounds = array<i64: 32, 96>}, {pipeline_mode = #tpu.pipeline_mode<synchronous>, transform_indices = @transform_4, window_bounds = array<i64: 1, 96>}, {pipeline_mode = #tpu.pipeline_mode<synchronous>, transform_indices = @transform_5, window_bounds = array<i64: 32, 32>}, {pipeline_mode = #tpu.pipeline_mode<synchronous>, transform_indices = @transform_6, window_bounds = array<i64: 1, 32>}, {pipeline_mode = #tpu.pipeline_mode<synchronous>, transform_indices = @transform_7, window_bounds = array<i64: 1, 32>}, {pipeline_mode = #tpu.pipeline_mode<synchronous>, transform_indices = @transform_8, window_bounds = array<i64: 1, 32>}, {pipeline_mode = #tpu.pipeline_mode<synchronous>, transform_indices = @transform_9, window_bounds = array<i64: 32, 64>}, {pipeline_mode = #tpu.pipeline_mode<synchronous>, transform_indices = @transform_10, window_bounds = array<i64: 1, 64>}, {pipeline_mode = #tpu.pipeline_mode<synchronous>, transform_indices = @transform_11, window_bounds = array<i64: 64, 32>}, {pipeline_mode = #tpu.pipeline_mode<synchronous>, transform_indices = @transform_12, window_bounds = array<i64: 1, 32>}, {transform_indices = @transform_13, window_bounds = array<i64: 1, 16, 32>}, {transform_indices = @transform_14, window_bounds = array<i64: 1, 4, 16, 16>}]} {
    %c0 = arith.constant 0 : index
    %c0_0 = arith.constant 0 : index
    %c0_1 = arith.constant 0 : index
    %0 = vector.load %arg2[%c0, %c0_0, %c0_1] : memref<1x16x32xf32, #tpu.memory_space<vmem>>, vector<1x16x32xf32>
    %1 = vector.shape_cast %0 : vector<1x16x32xf32> to vector<16x32xf32>
    %c0_2 = arith.constant 0 : index
    %c0_3 = arith.constant 0 : index
    %2 = vector.load %arg3[%c0_2, %c0_3] : memref<1x32xf32, #tpu.memory_space<vmem>>, vector<1x32xf32>
    %3 = vector.shape_cast %2 : vector<1x32xf32> to vector<32xf32>
    %c0_4 = arith.constant 0 : index
    %c0_5 = arith.constant 0 : index
    %4 = vector.load %arg4[%c0_4, %c0_5] : memref<1x32xf32, #tpu.memory_space<vmem>>, vector<1x32xf32>
    %5 = vector.shape_cast %4 : vector<1x32xf32> to vector<32xf32>
    %c0_6 = arith.constant 0 : index
    %c0_7 = arith.constant 0 : index
    %6 = vector.load %arg6[%c0_6, %c0_7] : memref<1x96xf32, #tpu.memory_space<vmem>>, vector<1x96xf32>
    %7 = vector.shape_cast %6 : vector<1x96xf32> to vector<96xf32>
    %cst = arith.constant dense<0.000000e+00> : vector<16xf32>
    %8 = vector.multi_reduction <add>, %1, %cst [1] : vector<16x32xf32> to vector<16xf32>
    %9 = vector.shape_cast %8 : vector<16xf32> to vector<16x1xf32>
    %cst_8 = arith.constant 3.200000e+01 : f32
    %10 = vector.broadcast %cst_8 : f32 to vector<16x1xf32>
    %11 = arith.divf %9, %10 : vector<16x1xf32>
    %12 = vector.broadcast %11 : vector<16x1xf32> to vector<16x32xf32>
    %13 = arith.subf %1, %12 : vector<16x32xf32>
    %14 = arith.mulf %13, %13 : vector<16x32xf32>
    %cst_9 = arith.constant dense<0.000000e+00> : vector<16xf32>
    %15 = vector.multi_reduction <add>, %14, %cst_9 [1] : vector<16x32xf32> to vector<16xf32>
    %16 = vector.shape_cast %15 : vector<16xf32> to vector<16x1xf32>
    %cst_10 = arith.constant 3.200000e+01 : f32
    %17 = vector.broadcast %cst_10 : f32 to vector<16x1xf32>
    %18 = arith.divf %16, %17 : vector<16x1xf32>
    %cst_11 = arith.constant 9.99999974E-6 : f32
    %19 = vector.broadcast %cst_11 : f32 to vector<16x1xf32>
    %20 = arith.addf %18, %19 : vector<16x1xf32>
    %21 = math.rsqrt %20 : vector<16x1xf32>
    %22 = vector.broadcast %21 : vector<16x1xf32> to vector<16x32xf32>
    %23 = arith.mulf %13, %22 : vector<16x32xf32>
    %24 = vector.shape_cast %3 : vector<32xf32> to vector<1x32xf32>
    %25 = vector.broadcast %24 : vector<1x32xf32> to vector<16x32xf32>
    %26 = arith.mulf %23, %25 : vector<16x32xf32>
    %27 = vector.shape_cast %5 : vector<32xf32> to vector<1x32xf32>
    %28 = vector.broadcast %27 : vector<1x32xf32> to vector<16x32xf32>
    %29 = arith.addf %26, %28 : vector<16x32xf32>
    %30 = arith.truncf %29 : vector<16x32xf32> to vector<16x32xbf16>
    %c0_12 = arith.constant 0 : index
    %c0_13 = arith.constant 0 : index
    %31 = vector.load %arg5[%c0_12, %c0_13] : memref<32x96xbf16, #tpu.memory_space<vmem>>, vector<32x96xbf16>
    %cst_14 = arith.constant dense<0.000000e+00> : vector<16x96xf32>
    %32 = tpu.matmul %30, %31, %cst_14 {dimension_numbers = #tpu.dot_dimension_numbers<[1], [0], [0], [1], [0, 0, 1, 1], [], []>} : vector<16x32xbf16>, vector<32x96xbf16>, vector<16x96xf32> -> vector<16x96xf32>
    %33 = vector.shape_cast %7 : vector<96xf32> to vector<1x96xf32>
    %34 = vector.broadcast %33 : vector<1x96xf32> to vector<16x96xf32>
    %35 = arith.addf %32, %34 : vector<16x96xf32>
    %36 = vector.extract_strided_slice %35 {offsets = [0, 0], sizes = [16, 32], strides = [1, 1]} : vector<16x96xf32> to vector<16x32xf32>
    %37 = vector.extract_strided_slice %35 {offsets = [0, 32], sizes = [16, 32], strides = [1, 1]} : vector<16x96xf32> to vector<16x32xf32>
    %38 = vector.extract_strided_slice %35 {offsets = [0, 64], sizes = [16, 32], strides = [1, 1]} : vector<16x96xf32> to vector<16x32xf32>
    %cst_15 = arith.constant 0.353553385 : f32
    %39 = vector.broadcast %cst_15 : f32 to vector<16x32xf32>
    %40 = arith.mulf %36, %39 : vector<16x32xf32>
    %41 = arith.truncf %40 : vector<16x32xf32> to vector<16x32xbf16>
    %42 = arith.truncf %37 : vector<16x32xf32> to vector<16x32xbf16>
    %43 = arith.truncf %38 : vector<16x32xf32> to vector<16x32xbf16>
    %44 = vector.extract_strided_slice %41 {offsets = [0, 0], sizes = [16, 8], strides = [1, 1]} : vector<16x32xbf16> to vector<16x8xbf16>
    %45 = vector.extract_strided_slice %41 {offsets = [0, 8], sizes = [16, 8], strides = [1, 1]} : vector<16x32xbf16> to vector<16x8xbf16>
    %46 = vector.extract_strided_slice %41 {offsets = [0, 16], sizes = [16, 8], strides = [1, 1]} : vector<16x32xbf16> to vector<16x8xbf16>
    %47 = vector.extract_strided_slice %41 {offsets = [0, 24], sizes = [16, 8], strides = [1, 1]} : vector<16x32xbf16> to vector<16x8xbf16>
    %48 = vector.shape_cast %44 : vector<16x8xbf16> to vector<1x16x8xbf16>
    %49 = vector.shape_cast %45 : vector<16x8xbf16> to vector<1x16x8xbf16>
    %50 = vector.shape_cast %46 : vector<16x8xbf16> to vector<1x16x8xbf16>
    %51 = vector.shape_cast %47 : vector<16x8xbf16> to vector<1x16x8xbf16>
    %52 = tpu.concatenate %48, %49, %50, %51 in 0 : vector<1x16x8xbf16>, vector<1x16x8xbf16>, vector<1x16x8xbf16>, vector<1x16x8xbf16> -> vector<4x16x8xbf16>
    %53 = vector.extract_strided_slice %42 {offsets = [0, 0], sizes = [16, 8], strides = [1, 1]} : vector<16x32xbf16> to vector<16x8xbf16>
    %54 = vector.extract_strided_slice %42 {offsets = [0, 8], sizes = [16, 8], strides = [1, 1]} : vector<16x32xbf16> to vector<16x8xbf16>
    %55 = vector.extract_strided_slice %42 {offsets = [0, 16], sizes = [16, 8], strides = [1, 1]} : vector<16x32xbf16> to vector<16x8xbf16>
    %56 = vector.extract_strided_slice %42 {offsets = [0, 24], sizes = [16, 8], strides = [1, 1]} : vector<16x32xbf16> to vector<16x8xbf16>
    %57 = vector.shape_cast %53 : vector<16x8xbf16> to vector<1x16x8xbf16>
    %58 = vector.shape_cast %54 : vector<16x8xbf16> to vector<1x16x8xbf16>
    %59 = vector.shape_cast %55 : vector<16x8xbf16> to vector<1x16x8xbf16>
    %60 = vector.shape_cast %56 : vector<16x8xbf16> to vector<1x16x8xbf16>
    %61 = tpu.concatenate %57, %58, %59, %60 in 0 : vector<1x16x8xbf16>, vector<1x16x8xbf16>, vector<1x16x8xbf16>, vector<1x16x8xbf16> -> vector<4x16x8xbf16>
    %62 = vector.extract_strided_slice %43 {offsets = [0, 0], sizes = [16, 8], strides = [1, 1]} : vector<16x32xbf16> to vector<16x8xbf16>
    %63 = vector.extract_strided_slice %43 {offsets = [0, 8], sizes = [16, 8], strides = [1, 1]} : vector<16x32xbf16> to vector<16x8xbf16>
    %64 = vector.extract_strided_slice %43 {offsets = [0, 16], sizes = [16, 8], strides = [1, 1]} : vector<16x32xbf16> to vector<16x8xbf16>
    %65 = vector.extract_strided_slice %43 {offsets = [0, 24], sizes = [16, 8], strides = [1, 1]} : vector<16x32xbf16> to vector<16x8xbf16>
    %66 = vector.shape_cast %62 : vector<16x8xbf16> to vector<1x16x8xbf16>
    %67 = vector.shape_cast %63 : vector<16x8xbf16> to vector<1x16x8xbf16>
    %68 = vector.shape_cast %64 : vector<16x8xbf16> to vector<1x16x8xbf16>
    %69 = vector.shape_cast %65 : vector<16x8xbf16> to vector<1x16x8xbf16>
    %70 = tpu.concatenate %66, %67, %68, %69 in 0 : vector<1x16x8xbf16>, vector<1x16x8xbf16>, vector<1x16x8xbf16>, vector<1x16x8xbf16> -> vector<4x16x8xbf16>
    "tpu.trace_start"() <{level = 10 : i32, message = "htd,hsd->hts"}> : () -> ()
    %cst_16 = arith.constant dense<0.000000e+00> : vector<4x16x16xf32>
    %71 = tpu.matmul %52, %61, %cst_16 {dimension_numbers = #tpu.dot_dimension_numbers<[2], [2], [1], [1], [0, 0, 0, 1, 1, 1], [0], [0]>} : vector<4x16x8xbf16>, vector<4x16x8xbf16>, vector<4x16x16xf32> -> vector<4x16x16xf32>
    "tpu.trace_stop"() : () -> ()
    %72 = tpu.iota {dimensions = array<i32: 2>} : vector<1x1x16xi32>
    %c12_i32 = arith.constant 12 : i32
    %73 = vector.broadcast %c12_i32 : i32 to vector<1x1x16xi32>
    %74 = arith.cmpi slt, %72, %73 : vector<1x1x16xi32>
    %cst_17 = arith.constant -1.000000e+30 : f32
    %75 = vector.shape_cast %74 : vector<1x1x16xi1> to vector<1x1x16xi1>
    %76 = vector.broadcast %75 : vector<1x1x16xi1> to vector<4x16x16xi1>
    %77 = vector.broadcast %cst_17 : f32 to vector<4x16x16xf32>
    %78 = arith.select %76, %71, %77 : vector<4x16x16xi1>, vector<4x16x16xf32>
    %cst_18 = arith.constant dense<0xFF800000> : vector<4x16xf32>
    %79 = vector.multi_reduction <maximumf>, %78, %cst_18 [2] : vector<4x16x16xf32> to vector<4x16xf32>
    %80 = vector.shape_cast %79 : vector<4x16xf32> to vector<4x16x1xf32>
    %81 = vector.broadcast %80 : vector<4x16x1xf32> to vector<4x16x16xf32>
    %82 = arith.subf %78, %81 : vector<4x16x16xf32>
    %83 = math.exp %82 : vector<4x16x16xf32>
    %cst_19 = arith.constant dense<0.000000e+00> : vector<4x16xf32>
    %84 = vector.multi_reduction <add>, %83, %cst_19 [2] : vector<4x16x16xf32> to vector<4x16xf32>
    %85 = vector.shape_cast %84 : vector<4x16xf32> to vector<4x16x1xf32>
    %86 = tpu.reciprocal %85 {approx = true} : vector<4x16x1xf32> -> vector<4x16x1xf32>
    %87 = vector.broadcast %86 : vector<4x16x1xf32> to vector<4x16x16xf32>
    %88 = arith.mulf %83, %87 : vector<4x16x16xf32>
    %c0_20 = arith.constant 0 : index
    %c0_21 = arith.constant 0 : index
    %c0_22 = arith.constant 0 : index
    %c0_23 = arith.constant 0 : index
    %89 = vector.load %arg16[%c0_20, %c0_21, %c0_22, %c0_23] : memref<1x4x16x16xf32, #tpu.memory_space<vmem>>, vector<1x4x16x16xf32>
    %90 = vector.shape_cast %89 : vector<1x4x16x16xf32> to vector<4x16x16xf32>
    %91 = vector.shape_cast %88 : vector<4x16x16xf32> to vector<1x4x16x16xf32>
    tpu.vector_store %arg16[%c0_20, %c0_21, %c0_22, %c0_23], %91 {strides = array<i32>} : memref<1x4x16x16xf32, #tpu.memory_space<vmem>>, vector<1x4x16x16xf32>,
    %92 = arith.truncf %88 : vector<4x16x16xf32> to vector<4x16x16xbf16>
    "tpu.trace_start"() <{level = 10 : i32, message = "hts,hsd->htd"}> : () -> ()
    %cst_24 = arith.constant dense<0.000000e+00> : vector<4x16x8xf32>
    %93 = tpu.matmul %92, %70, %cst_24 {dimension_numbers = #tpu.dot_dimension_numbers<[2], [1], [1], [2], [0, 0, 0, 1, 1, 2], [0], [0]>} : vector<4x16x16xbf16>, vector<4x16x8xbf16>, vector<4x16x8xf32> -> vector<4x16x8xf32>
    "tpu.trace_stop"() : () -> ()
    %94 = arith.truncf %93 : vector<4x16x8xf32> to vector<4x16x8xbf16>
    %95 = vector.extract_strided_slice %94 {offsets = [0, 0, 0], sizes = [1, 16, 8], strides = [1, 1, 1]} : vector<4x16x8xbf16> to vector<1x16x8xbf16>
    %96 = vector.shape_cast %95 : vector<1x16x8xbf16> to vector<16x8xbf16>
    %97 = vector.extract_strided_slice %94 {offsets = [1, 0, 0], sizes = [1, 16, 8], strides = [1, 1, 1]} : vector<4x16x8xbf16> to vector<1x16x8xbf16>
    %98 = vector.shape_cast %97 : vector<1x16x8xbf16> to vector<16x8xbf16>
    %99 = vector.extract_strided_slice %94 {offsets = [2, 0, 0], sizes = [1, 16, 8], strides = [1, 1, 1]} : vector<4x16x8xbf16> to vector<1x16x8xbf16>
    %100 = vector.shape_cast %99 : vector<1x16x8xbf16> to vector<16x8xbf16>
    %101 = vector.extract_strided_slice %94 {offsets = [3, 0, 0], sizes = [1, 16, 8], strides = [1, 1, 1]} : vector<4x16x8xbf16> to vector<1x16x8xbf16>
    %102 = vector.shape_cast %101 : vector<1x16x8xbf16> to vector<16x8xbf16>
    %103 = tpu.concatenate %96, %98, %100, %102 in 1 : vector<16x8xbf16>, vector<16x8xbf16>, vector<16x8xbf16>, vector<16x8xbf16> -> vector<16x32xbf16>
    %c0_25 = arith.constant 0 : index
    %c0_26 = arith.constant 0 : index
    %104 = vector.load %arg7[%c0_25, %c0_26] : memref<32x32xbf16, #tpu.memory_space<vmem>>, vector<32x32xbf16>
    %cst_27 = arith.constant dense<0.000000e+00> : vector<16x32xf32>
    %105 = tpu.matmul %103, %104, %cst_27 {dimension_numbers = #tpu.dot_dimension_numbers<[1], [0], [0], [1], [0, 0, 1, 1], [], []>} : vector<16x32xbf16>, vector<32x32xbf16>, vector<16x32xf32> -> vector<16x32xf32>
    %c0_28 = arith.constant 0 : index
    %c0_29 = arith.constant 0 : index
    %106 = vector.load %arg8[%c0_28, %c0_29] : memref<1x32xf32, #tpu.memory_space<vmem>>, vector<1x32xf32>
    %107 = vector.shape_cast %106 : vector<1x32xf32> to vector<32xf32>
    %108 = vector.shape_cast %107 : vector<32xf32> to vector<1x32xf32>
    %109 = vector.broadcast %108 : vector<1x32xf32> to vector<16x32xf32>
    %110 = arith.addf %105, %109 : vector<16x32xf32>
    %111 = arith.addf %1, %110 : vector<16x32xf32>
    %c0_30 = arith.constant 0 : index
    %c0_31 = arith.constant 0 : index
    %112 = vector.load %arg9[%c0_30, %c0_31] : memref<1x32xf32, #tpu.memory_space<vmem>>, vector<1x32xf32>
    %113 = vector.shape_cast %112 : vector<1x32xf32> to vector<32xf32>
    %c0_32 = arith.constant 0 : index
    %c0_33 = arith.constant 0 : index
    %114 = vector.load %arg10[%c0_32, %c0_33] : memref<1x32xf32, #tpu.memory_space<vmem>>, vector<1x32xf32>
    %115 = vector.shape_cast %114 : vector<1x32xf32> to vector<32xf32>
    %cst_34 = arith.constant dense<0.000000e+00> : vector<16xf32>
    %116 = vector.multi_reduction <add>, %111, %cst_34 [1] : vector<16x32xf32> to vector<16xf32>
    %117 = vector.shape_cast %116 : vector<16xf32> to vector<16x1xf32>
    %cst_35 = arith.constant 3.200000e+01 : f32
    %118 = vector.broadcast %cst_35 : f32 to vector<16x1xf32>
    %119 = arith.divf %117, %118 : vector<16x1xf32>
    %120 = vector.broadcast %119 : vector<16x1xf32> to vector<16x32xf32>
    %121 = arith.subf %111, %120 : vector<16x32xf32>
    %122 = arith.mulf %121, %121 : vector<16x32xf32>
    %cst_36 = arith.constant dense<0.000000e+00> : vector<16xf32>
    %123 = vector.multi_reduction <add>, %122, %cst_36 [1] : vector<16x32xf32> to vector<16xf32>
    %124 = vector.shape_cast %123 : vector<16xf32> to vector<16x1xf32>
    %cst_37 = arith.constant 3.200000e+01 : f32
    %125 = vector.broadcast %cst_37 : f32 to vector<16x1xf32>
    %126 = arith.divf %124, %125 : vector<16x1xf32>
    %cst_38 = arith.constant 9.99999974E-6 : f32
    %127 = vector.broadcast %cst_38 : f32 to vector<16x1xf32>
    %128 = arith.addf %126, %127 : vector<16x1xf32>
    %129 = math.rsqrt %128 : vector<16x1xf32>
    %130 = vector.broadcast %129 : vector<16x1xf32> to vector<16x32xf32>
    %131 = arith.mulf %121, %130 : vector<16x32xf32>
    %132 = vector.shape_cast %113 : vector<32xf32> to vector<1x32xf32>
    %133 = vector.broadcast %132 : vector<1x32xf32> to vector<16x32xf32>
    %134 = arith.mulf %131, %133 : vector<16x32xf32>
    %135 = vector.shape_cast %115 : vector<32xf32> to vector<1x32xf32>
    %136 = vector.broadcast %135 : vector<1x32xf32> to vector<16x32xf32>
    %137 = arith.addf %134, %136 : vector<16x32xf32>
    %138 = arith.truncf %137 : vector<16x32xf32> to vector<16x32xbf16>
    %c0_39 = arith.constant 0 : index
    %c0_40 = arith.constant 0 : index
    %139 = vector.load %arg11[%c0_39, %c0_40] : memref<32x64xbf16, #tpu.memory_space<vmem>>, vector<32x64xbf16>
    %cst_41 = arith.constant dense<0.000000e+00> : vector<16x64xf32>
    %140 = tpu.matmul %138, %139, %cst_41 {dimension_numbers = #tpu.dot_dimension_numbers<[1], [0], [0], [1], [0, 0, 1, 1], [], []>} : vector<16x32xbf16>, vector<32x64xbf16>, vector<16x64xf32> -> vector<16x64xf32>
    %c0_42 = arith.constant 0 : index
    %c0_43 = arith.constant 0 : index
    %141 = vector.load %arg12[%c0_42, %c0_43] : memref<1x64xf32, #tpu.memory_space<vmem>>, vector<1x64xf32>
    %142 = vector.shape_cast %141 : vector<1x64xf32> to vector<64xf32>
    %143 = vector.shape_cast %142 : vector<64xf32> to vector<1x64xf32>
    %144 = vector.broadcast %143 : vector<1x64xf32> to vector<16x64xf32>
    %145 = arith.addf %140, %144 : vector<16x64xf32>
    %cst_44 = arith.constant 5.000000e-01 : f32
    %146 = vector.broadcast %cst_44 : f32 to vector<16x64xf32>
    %147 = arith.mulf %146, %145 : vector<16x64xf32>
    %cst_45 = arith.constant 4.471500e-02 : f32
    %148 = vector.broadcast %cst_45 : f32 to vector<16x64xf32>
    %149 = arith.mulf %148, %145 : vector<16x64xf32>
    %150 = arith.mulf %149, %145 : vector<16x64xf32>
    %151 = arith.mulf %150, %145 : vector<16x64xf32>
    %152 = arith.addf %145, %151 : vector<16x64xf32>
    %cst_46 = arith.constant 0.797884583 : f32
    %153 = vector.broadcast %cst_46 : f32 to vector<16x64xf32>
    %154 = arith.mulf %153, %152 : vector<16x64xf32>
    %155 = math.tanh %154 : vector<16x64xf32>
    %cst_47 = arith.constant 1.000000e+00 : f32
    %156 = vector.broadcast %cst_47 : f32 to vector<16x64xf32>
    %157 = arith.addf %156, %155 : vector<16x64xf32>
    %158 = arith.mulf %147, %157 : vector<16x64xf32>
    %159 = arith.truncf %158 : vector<16x64xf32> to vector<16x64xbf16>
    %c0_48 = arith.constant 0 : index
    %c0_49 = arith.constant 0 : index
    %160 = vector.load %arg13[%c0_48, %c0_49] : memref<64x32xbf16, #tpu.memory_space<vmem>>, vector<64x32xbf16>
    %cst_50 = arith.constant dense<0.000000e+00> : vector<16x32xf32>
    %161 = tpu.matmul %159, %160, %cst_50 {dimension_numbers = #tpu.dot_dimension_numbers<[1], [0], [0], [1], [0, 0, 1, 1], [], []>} : vector<16x64xbf16>, vector<64x32xbf16>, vector<16x32xf32> -> vector<16x32xf32>
    %c0_51 = arith.constant 0 : index
    %c0_52 = arith.constant 0 : index
    %162 = vector.load %arg14[%c0_51, %c0_52] : memref<1x32xf32, #tpu.memory_space<vmem>>, vector<1x32xf32>
    %163 = vector.shape_cast %162 : vector<1x32xf32> to vector<32xf32>
    %164 = vector.shape_cast %163 : vector<32xf32> to vector<1x32xf32>
    %165 = vector.broadcast %164 : vector<1x32xf32> to vector<16x32xf32>
    %166 = arith.addf %161, %165 : vector<16x32xf32>
    %167 = arith.addf %111, %166 : vector<16x32xf32>
    %c0_53 = arith.constant 0 : index
    %c0_54 = arith.constant 0 : index
    %c0_55 = arith.constant 0 : index
    %168 = vector.load %arg15[%c0_53, %c0_54, %c0_55] : memref<1x16x32xf32, #tpu.memory_space<vmem>>, vector<1x16x32xf32>
    %169 = vector.shape_cast %168 : vector<1x16x32xf32> to vector<16x32xf32>
    %170 = vector.shape_cast %167 : vector<16x32xf32> to vector<1x16x32xf32>
    tpu.vector_store %arg15[%c0_53, %c0_54, %c0_55], %170 {strides = array<i32>} : memref<1x16x32xf32, #tpu.memory_space<vmem>>, vector<1x16x32xf32>,
    return
  }
  func.func @transform_0(%arg0: i32, %arg1: i32) -> (i32, i32, i32) {
    %c0_i32 = arith.constant 0 : i32
    %c0_i32_0 = arith.constant 0 : i32
    %c0_i32_1 = arith.constant 0 : i32
    return %arg0, %c0_i32, %c0_i32_0 : i32, i32, i32
  }
  func.func @transform_1(%arg0: i32, %arg1: i32) -> (i32, i32) {
    %c0_i32 = arith.constant 0 : i32
    %c0_i32_0 = arith.constant 0 : i32
    %c0_i32_1 = arith.constant 0 : i32
    return %c0_i32, %c0_i32_0 : i32, i32
  }
  func.func @transform_2(%arg0: i32, %arg1: i32) -> (i32, i32) {
    %c0_i32 = arith.constant 0 : i32
    %c0_i32_0 = arith.constant 0 : i32
    %c0_i32_1 = arith.constant 0 : i32
    return %c0_i32, %c0_i32_0 : i32, i32
  }
  func.func @transform_3(%arg0: i32, %arg1: i32) -> (i32, i32) {
    %c0_i32 = arith.constant 0 : i32
    %c0_i32_0 = arith.constant 0 : i32
    %c0_i32_1 = arith.constant 0 : i32
    return %c0_i32, %c0_i32_0 : i32, i32
  }
  func.func @transform_4(%arg0: i32, %arg1: i32) -> (i32, i32) {
    %c0_i32 = arith.constant 0 : i32
    %c0_i32_0 = arith.constant 0 : i32
    %c0_i32_1 = arith.constant 0 : i32
    return %c0_i32, %c0_i32_0 : i32, i32
  }
  func.func @transform_5(%arg0: i32, %arg1: i32) -> (i32, i32) {
    %c0_i32 = arith.constant 0 : i32
    %c0_i32_0 = arith.constant 0 : i32
    %c0_i32_1 = arith.constant 0 : i32
    return %c0_i32, %c0_i32_0 : i32, i32
  }
  func.func @transform_6(%arg0: i32, %arg1: i32) -> (i32, i32) {
    %c0_i32 = arith.constant 0 : i32
    %c0_i32_0 = arith.constant 0 : i32
    %c0_i32_1 = arith.constant 0 : i32
    return %c0_i32, %c0_i32_0 : i32, i32
  }
  func.func @transform_7(%arg0: i32, %arg1: i32) -> (i32, i32) {
    %c0_i32 = arith.constant 0 : i32
    %c0_i32_0 = arith.constant 0 : i32
    %c0_i32_1 = arith.constant 0 : i32
    return %c0_i32, %c0_i32_0 : i32, i32
  }
  func.func @transform_8(%arg0: i32, %arg1: i32) -> (i32, i32) {
    %c0_i32 = arith.constant 0 : i32
    %c0_i32_0 = arith.constant 0 : i32
    %c0_i32_1 = arith.constant 0 : i32
    return %c0_i32, %c0_i32_0 : i32, i32
  }
  func.func @transform_9(%arg0: i32, %arg1: i32) -> (i32, i32) {
    %c0_i32 = arith.constant 0 : i32
    %c0_i32_0 = arith.constant 0 : i32
    %c0_i32_1 = arith.constant 0 : i32
    return %c0_i32, %c0_i32_0 : i32, i32
  }
  func.func @transform_10(%arg0: i32, %arg1: i32) -> (i32, i32) {
    %c0_i32 = arith.constant 0 : i32
    %c0_i32_0 = arith.constant 0 : i32
    %c0_i32_1 = arith.constant 0 : i32
    return %c0_i32, %c0_i32_0 : i32, i32
  }
  func.func @transform_11(%arg0: i32, %arg1: i32) -> (i32, i32) {
    %c0_i32 = arith.constant 0 : i32
    %c0_i32_0 = arith.constant 0 : i32
    %c0_i32_1 = arith.constant 0 : i32
    return %c0_i32, %c0_i32_0 : i32, i32
  }
  func.func @transform_12(%arg0: i32, %arg1: i32) -> (i32, i32) {
    %c0_i32 = arith.constant 0 : i32
    %c0_i32_0 = arith.constant 0 : i32
    %c0_i32_1 = arith.constant 0 : i32
    return %c0_i32, %c0_i32_0 : i32, i32
  }
  func.func @transform_13(%arg0: i32, %arg1: i32) -> (i32, i32, i32) {
    %c0_i32 = arith.constant 0 : i32
    %c0_i32_0 = arith.constant 0 : i32
    return %arg0, %arg1, %c0_i32 : i32, i32, i32
  }
  func.func @transform_14(%arg0: i32, %arg1: i32) -> (i32, i32, i32, i32) {
    %c0_i32 = arith.constant 0 : i32
    %c0_i32_0 = arith.constant 0 : i32
    %c0_i32_1 = arith.constant 0 : i32
    return %arg0, %c0_i32, %arg1, %c0_i32_0 : i32, i32, i32, i32
  }
}

module attributes {stable_mosaic.version = 11 : i64} {
  func.func @block_kernel(%arg0: i32, %arg1: i32, %arg2: memref<1x16x32xf32, #tpu.memory_space<vmem>>, %arg3: memref<1x32xf32, #tpu.memory_space<vmem>>, %arg4: memref<1x32xf32, #tpu.memory_space<vmem>>, %arg5: memref<32x96xbf16, #tpu.memory_space<vmem>>, %arg6: memref<1x96xf32, #tpu.memory_space<vmem>>, %arg7: memref<32x32xbf16, #tpu.memory_space<vmem>>, %arg8: memref<1x32xf32, #tpu.memory_space<vmem>>, %arg9: memref<1x32xf32, #tpu.memory_space<vmem>>, %arg10: memref<1x32xf32, #tpu.memory_space<vmem>>, %arg11: memref<32x64xbf16, #tpu.memory_space<vmem>>, %arg12: memref<1x64xf32, #tpu.memory_space<vmem>>, %arg13: memref<64x32xbf16, #tpu.memory_space<vmem>>, %arg14: memref<1x32xf32, #tpu.memory_space<vmem>>, %arg15: memref<1x16x32xf32, #tpu.memory_space<vmem>>, %arg16: memref<1x4x16x16xf32, #tpu.memory_space<vmem>>) attributes {dimension_semantics = [#tpu.dimension_semantics<parallel>, #tpu.dimension_semantics<parallel>], iteration_bounds = array<i64: 2, 1>, scalar_prefetch = 0 : i64, scratch_operands = 0 : i64, tpu.core_type = #tpu.core_type<tc>, window_params = [{transform_indices = @transform_0, window_bounds = array<i64: 1, 16, 32>}, {pipeline_mode = #tpu.pipeline_mode<synchronous>, transform_indices = @transform_1, window_bounds = array<i64: 1, 32>}, {pipeline_mode = #tpu.pipeline_mode<synchronous>, transform_indices = @transform_2, window_bounds = array<i64: 1, 32>}, {pipeline_mode = #tpu.pipeline_mode<synchronous>, transform_indices = @transform_3, window_bounds = array<i64: 32, 96>}, {pipeline_mode = #tpu.pipeline_mode<synchronous>, transform_indices = @transform_4, window_bounds = array<i64: 1, 96>}, {pipeline_mode = #tpu.pipeline_mode<synchronous>, transform_indices = @transform_5, window_bounds = array<i64: 32, 32>}, {pipeline_mode = #tpu.pipeline_mode<synchronous>, transform_indices = @transform_6, window_bounds = array<i64: 1, 32>}, {pipeline_mode = #tpu.pipeline_mode<synchronous>, transform_indices = @transform_7, window_bounds = array<i64: 1, 32>}, {pipeline_mode = #tpu.pipeline_mode<synchronous>, transform_indices = @transform_8, window_bounds = array<i64: 1, 32>}, {pipeline_mode = #tpu.pipeline_mode<synchronous>, transform_indices = @transform_9, window_bounds = array<i64: 32, 64>}, {pipeline_mode = #tpu.pipeline_mode<synchronous>, transform_indices = @transform_10, window_bounds = array<i64: 1, 64>}, {pipeline_mode = #tpu.pipeline_mode<synchronous>, transform_indices = @transform_11, window_bounds = array<i64: 64, 32>}, {pipeline_mode = #tpu.pipeline_mode<synchronous>, transform_indices = @transform_12, window_bounds = array<i64: 1, 32>}, {transform_indices = @transform_13, window_bounds = array<i64: 1, 16, 32>}, {transform_indices = @transform_14, window_bounds = array<i64: 1, 4, 16, 16>}]} {
    %c0 = arith.constant 0 : index
    %c0_0 = arith.constant 0 : index
    %c0_1 = arith.constant 0 : index
    %0 = vector.load %arg2[%c0, %c0_0, %c0_1] : memref<1x16x32xf32, #tpu.memory_space<vmem>>, vector<1x16x32xf32>
    %1 = vector.shape_cast %0 : vector<1x16x32xf32> to vector<16x32xf32>
    %c0_2 = arith.constant 0 : index
    %c0_3 = arith.constant 0 : index
    %2 = vector.load %arg3[%c0_2, %c0_3] : memref<1x32xf32, #tpu.memory_space<vmem>>, vector<1x32xf32>
    %3 = vector.shape_cast %2 : vector<1x32xf32> to vector<32xf32>
    %c0_4 = arith.constant 0 : index
    %c0_5 = arith.constant 0 : index
    %4 = vector.load %arg4[%c0_4, %c0_5] : memref<1x32xf32, #tpu.memory_space<vmem>>, vector<1x32xf32>
    %5 = vector.shape_cast %4 : vector<1x32xf32> to vector<32xf32>
    %c0_6 = arith.constant 0 : index
    %c0_7 = arith.constant 0 : index
    %6 = vector.load %arg6[%c0_6, %c0_7] : memref<1x96xf32, #tpu.memory_space<vmem>>, vector<1x96xf32>
    %7 = vector.shape_cast %6 : vector<1x96xf32> to vector<96xf32>
    %cst = arith.constant dense<0.000000e+00> : vector<16xf32>
    %8 = vector.multi_reduction <add>, %1, %cst [1] : vector<16x32xf32> to vector<16xf32>
    %9 = vector.shape_cast %8 : vector<16xf32> to vector<16x1xf32>
    %cst_8 = arith.constant 3.200000e+01 : f32
    %10 = vector.broadcast %cst_8 : f32 to vector<16x1xf32>
    %11 = arith.divf %9, %10 : vector<16x1xf32>
    %12 = vector.broadcast %11 : vector<16x1xf32> to vector<16x32xf32>
    %13 = arith.subf %1, %12 : vector<16x32xf32>
    %14 = arith.mulf %13, %13 : vector<16x32xf32>
    %cst_9 = arith.constant dense<0.000000e+00> : vector<16xf32>
    %15 = vector.multi_reduction <add>, %14, %cst_9 [1] : vector<16x32xf32> to vector<16xf32>
    %16 = vector.shape_cast %15 : vector<16xf32> to vector<16x1xf32>
    %cst_10 = arith.constant 3.200000e+01 : f32
    %17 = vector.broadcast %cst_10 : f32 to vector<16x1xf32>
    %18 = arith.divf %16, %17 : vector<16x1xf32>
    %cst_11 = arith.constant 9.99999974E-6 : f32
    %19 = vector.broadcast %cst_11 : f32 to vector<16x1xf32>
    %20 = arith.addf %18, %19 : vector<16x1xf32>
    %21 = math.rsqrt %20 : vector<16x1xf32>
    %22 = vector.broadcast %21 : vector<16x1xf32> to vector<16x32xf32>
    %23 = arith.mulf %13, %22 : vector<16x32xf32>
    %24 = vector.shape_cast %3 : vector<32xf32> to vector<1x32xf32>
    %25 = vector.broadcast %24 : vector<1x32xf32> to vector<16x32xf32>
    %26 = arith.mulf %23, %25 : vector<16x32xf32>
    %27 = vector.shape_cast %5 : vector<32xf32> to vector<1x32xf32>
    %28 = vector.broadcast %27 : vector<1x32xf32> to vector<16x32xf32>
    %29 = arith.addf %26, %28 : vector<16x32xf32>
    %30 = arith.truncf %29 : vector<16x32xf32> to vector<16x32xbf16>
    %c0_12 = arith.constant 0 : index
    %c0_13 = arith.constant 0 : index
    %31 = vector.load %arg5[%c0_12, %c0_13] : memref<32x96xbf16, #tpu.memory_space<vmem>>, vector<32x96xbf16>
    %cst_14 = arith.constant dense<0.000000e+00> : vector<16x96xf32>
    %32 = tpu.matmul %30, %31, %cst_14 {dimension_numbers = #tpu.dot_dimension_numbers<[1], [0], [0], [1], [0, 0, 1, 1], [], []>} : vector<16x32xbf16>, vector<32x96xbf16>, vector<16x96xf32> -> vector<16x96xf32>
    %33 = vector.shape_cast %7 : vector<96xf32> to vector<1x96xf32>
    %34 = vector.broadcast %33 : vector<1x96xf32> to vector<16x96xf32>
    %35 = arith.addf %32, %34 : vector<16x96xf32>
    %36 = vector.extract_strided_slice %35 {offsets = [0, 0], sizes = [16, 32], strides = [1, 1]} : vector<16x96xf32> to vector<16x32xf32>
    %37 = vector.extract_strided_slice %35 {offsets = [0, 32], sizes = [16, 32], strides = [1, 1]} : vector<16x96xf32> to vector<16x32xf32>
    %38 = vector.extract_strided_slice %35 {offsets = [0, 64], sizes = [16, 32], strides = [1, 1]} : vector<16x96xf32> to vector<16x32xf32>
    %cst_15 = arith.constant 0.353553385 : f32
    %39 = vector.broadcast %cst_15 : f32 to vector<16x32xf32>
    %40 = arith.mulf %36, %39 : vector<16x32xf32>
    %41 = arith.truncf %40 : vector<16x32xf32> to vector<16x32xbf16>
    %42 = arith.truncf %37 : vector<16x32xf32> to vector<16x32xbf16>
    %43 = arith.truncf %38 : vector<16x32xf32> to vector<16x32xbf16>
    %44 = vector.extract_strided_slice %41 {offsets = [0, 0], sizes = [16, 8], strides = [1, 1]} : vector<16x32xbf16> to vector<16x8xbf16>
    %45 = vector.extract_strided_slice %41 {offsets = [0, 8], sizes = [16, 8], strides = [1, 1]} : vector<16x32xbf16> to vector<16x8xbf16>
    %46 = vector.extract_strided_slice %41 {offsets = [0, 16], sizes = [16, 8], strides = [1, 1]} : vector<16x32xbf16> to vector<16x8xbf16>
    %47 = vector.extract_strided_slice %41 {offsets = [0, 24], sizes = [16, 8], strides = [1, 1]} : vector<16x32xbf16> to vector<16x8xbf16>
    %48 = vector.shape_cast %44 : vector<16x8xbf16> to vector<1x16x8xbf16>
    %49 = vector.shape_cast %45 : vector<16x8xbf16> to vector<1x16x8xbf16>
    %50 = vector.shape_cast %46 : vector<16x8xbf16> to vector<1x16x8xbf16>
    %51 = vector.shape_cast %47 : vector<16x8xbf16> to vector<1x16x8xbf16>
    %52 = tpu.concatenate %48, %49, %50, %51 in 0 : vector<1x16x8xbf16>, vector<1x16x8xbf16>, vector<1x16x8xbf16>, vector<1x16x8xbf16> -> vector<4x16x8xbf16>
    %53 = vector.extract_strided_slice %42 {offsets = [0, 0], sizes = [16, 8], strides = [1, 1]} : vector<16x32xbf16> to vector<16x8xbf16>
    %54 = vector.extract_strided_slice %42 {offsets = [0, 8], sizes = [16, 8], strides = [1, 1]} : vector<16x32xbf16> to vector<16x8xbf16>
    %55 = vector.extract_strided_slice %42 {offsets = [0, 16], sizes = [16, 8], strides = [1, 1]} : vector<16x32xbf16> to vector<16x8xbf16>
    %56 = vector.extract_strided_slice %42 {offsets = [0, 24], sizes = [16, 8], strides = [1, 1]} : vector<16x32xbf16> to vector<16x8xbf16>
    %57 = vector.shape_cast %53 : vector<16x8xbf16> to vector<1x16x8xbf16>
    %58 = vector.shape_cast %54 : vector<16x8xbf16> to vector<1x16x8xbf16>
    %59 = vector.shape_cast %55 : vector<16x8xbf16> to vector<1x16x8xbf16>
    %60 = vector.shape_cast %56 : vector<16x8xbf16> to vector<1x16x8xbf16>
    %61 = tpu.concatenate %57, %58, %59, %60 in 0 : vector<1x16x8xbf16>, vector<1x16x8xbf16>, vector<1x16x8xbf16>, vector<1x16x8xbf16> -> vector<4x16x8xbf16>
    %62 = vector.extract_strided_slice %43 {offsets = [0, 0], sizes = [16, 8], strides = [1, 1]} : vector<16x32xbf16> to vector<16x8xbf16>
    %63 = vector.extract_strided_slice %43 {offsets = [0, 8], sizes = [16, 8], strides = [1, 1]} : vector<16x32xbf16> to vector<16x8xbf16>
    %64 = vector.extract_strided_slice %43 {offsets = [0, 16], sizes = [16, 8], strides = [1, 1]} : vector<16x32xbf16> to vector<16x8xbf16>
    %65 = vector.extract_strided_slice %43 {offsets = [0, 24], sizes = [16, 8], strides = [1, 1]} : vector<16x32xbf16> to vector<16x8xbf16>
    %66 = vector.shape_cast %62 : vector<16x8xbf16> to vector<1x16x8xbf16>
    %67 = vector.shape_cast %63 : vector<16x8xbf16> to vector<1x16x8xbf16>
    %68 = vector.shape_cast %64 : vector<16x8xbf16> to vector<1x16x8xbf16>
    %69 = vector.shape_cast %65 : vector<16x8xbf16> to vector<1x16x8xbf16>
    %70 = tpu.concatenate %66, %67, %68, %69 in 0 : vector<1x16x8xbf16>, vector<1x16x8xbf16>, vector<1x16x8xbf16>, vector<1x16x8xbf16> -> vector<4x16x8xbf16>
    "tpu.trace_start"() <{level = 10 : i32, message = "htd,hsd->hts"}> : () -> ()
    %cst_16 = arith.constant dense<0.000000e+00> : vector<4x16x16xf32>
    %71 = tpu.matmul %52, %61, %cst_16 {dimension_numbers = #tpu.dot_dimension_numbers<[2], [2], [1], [1], [0, 0, 0, 1, 1, 1], [0], [0]>} : vector<4x16x8xbf16>, vector<4x16x8xbf16>, vector<4x16x16xf32> -> vector<4x16x16xf32>
    "tpu.trace_stop"() : () -> ()
    %72 = tpu.iota {dimensions = array<i32: 2>} : vector<1x1x16xi32>
    %c12_i32 = arith.constant 12 : i32
    %73 = vector.broadcast %c12_i32 : i32 to vector<1x1x16xi32>
    %74 = arith.cmpi slt, %72, %73 : vector<1x1x16xi32>
    %cst_17 = arith.constant -1.000000e+30 : f32
    %75 = vector.shape_cast %74 : vector<1x1x16xi1> to vector<1x1x16xi1>
    %76 = vector.broadcast %75 : vector<1x1x16xi1> to vector<4x16x16xi1>
    %77 = vector.broadcast %cst_17 : f32 to vector<4x16x16xf32>
    %78 = arith.select %76, %71, %77 : vector<4x16x16xi1>, vector<4x16x16xf32>
    %cst_18 = arith.constant dense<0xFF800000> : vector<4x16xf32>
    %79 = vector.multi_reduction <maximumf>, %78, %cst_18 [2] : vector<4x16x16xf32> to vector<4x16xf32>
    %80 = vector.shape_cast %79 : vector<4x16xf32> to vector<4x16x1xf32>
    %81 = vector.broadcast %80 : vector<4x16x1xf32> to vector<4x16x16xf32>
    %82 = arith.subf %78, %81 : vector<4x16x16xf32>
    %83 = math.exp %82 : vector<4x16x16xf32>
    %cst_19 = arith.constant dense<0.000000e+00> : vector<4x16xf32>
    %84 = vector.multi_reduction <add>, %83, %cst_19 [2] : vector<4x16x16xf32> to vector<4x16xf32>
    %85 = vector.shape_cast %84 : vector<4x16xf32> to vector<4x16x1xf32>
    %86 = tpu.reciprocal %85 {approx = true} : vector<4x16x1xf32> -> vector<4x16x1xf32>
    %87 = vector.broadcast %86 : vector<4x16x1xf32> to vector<4x16x16xf32>
    %88 = arith.mulf %83, %87 : vector<4x16x16xf32>
    %c0_20 = arith.constant 0 : index
    %c0_21 = arith.constant 0 : index
    %c0_22 = arith.constant 0 : index
    %c0_23 = arith.constant 0 : index
    %89 = vector.load %arg16[%c0_20, %c0_21, %c0_22, %c0_23] : memref<1x4x16x16xf32, #tpu.memory_space<vmem>>, vector<1x4x16x16xf32>
    %90 = vector.shape_cast %89 : vector<1x4x16x16xf32> to vector<4x16x16xf32>
    %91 = vector.shape_cast %88 : vector<4x16x16xf32> to vector<1x4x16x16xf32>
    tpu.vector_store %arg16[%c0_20, %c0_21, %c0_22, %c0_23], %91 {strides = array<i32>} : memref<1x4x16x16xf32, #tpu.memory_space<vmem>>, vector<1x4x16x16xf32>,
    %92 = arith.truncf %88 : vector<4x16x16xf32> to vector<4x16x16xbf16>
    "tpu.trace_start"() <{level = 10 : i32, message = "hts,hsd->htd"}> : () -> ()
    %cst_24 = arith.constant dense<0.000000e+00> : vector<4x16x8xf32>
    %93 = tpu.matmul %92, %70, %cst_24 {dimension_numbers = #tpu.dot_dimension_numbers<[2], [1], [1], [2], [0, 0, 0, 1, 1, 2], [0], [0]>} : vector<4x16x16xbf16>, vector<4x16x8xbf16>, vector<4x16x8xf32> -> vector<4x16x8xf32>
    "tpu.trace_stop"() : () -> ()
    %94 = arith.truncf %93 : vector<4x16x8xf32> to vector<4x16x8xbf16>
    %95 = vector.extract_strided_slice %94 {offsets = [0, 0, 0], sizes = [1, 16, 8], strides = [1, 1, 1]} : vector<4x16x8xbf16> to vector<1x16x8xbf16>
    %96 = vector.shape_cast %95 : vector<1x16x8xbf16> to vector<16x8xbf16>
    %97 = vector.extract_strided_slice %94 {offsets = [1, 0, 0], sizes = [1, 16, 8], strides = [1, 1, 1]} : vector<4x16x8xbf16> to vector<1x16x8xbf16>
    %98 = vector.shape_cast %97 : vector<1x16x8xbf16> to vector<16x8xbf16>
    %99 = vector.extract_strided_slice %94 {offsets = [2, 0, 0], sizes = [1, 16, 8], strides = [1, 1, 1]} : vector<4x16x8xbf16> to vector<1x16x8xbf16>
    %100 = vector.shape_cast %99 : vector<1x16x8xbf16> to vector<16x8xbf16>
    %101 = vector.extract_strided_slice %94 {offsets = [3, 0, 0], sizes = [1, 16, 8], strides = [1, 1, 1]} : vector<4x16x8xbf16> to vector<1x16x8xbf16>
    %102 = vector.shape_cast %101 : vector<1x16x8xbf16> to vector<16x8xbf16>
    %103 = tpu.concatenate %96, %98, %100, %102 in 1 : vector<16x8xbf16>, vector<16x8xbf16>, vector<16x8xbf16>, vector<16x8xbf16> -> vector<16x32xbf16>
    %c0_25 = arith.constant 0 : index
    %c0_26 = arith.constant 0 : index
    %104 = vector.load %arg7[%c0_25, %c0_26] : memref<32x32xbf16, #tpu.memory_space<vmem>>, vector<32x32xbf16>
    %cst_27 = arith.constant dense<0.000000e+00> : vector<16x32xf32>
    %105 = tpu.matmul %103, %104, %cst_27 {dimension_numbers = #tpu.dot_dimension_numbers<[1], [0], [0], [1], [0, 0, 1, 1], [], []>} : vector<16x32xbf16>, vector<32x32xbf16>, vector<16x32xf32> -> vector<16x32xf32>
    %c0_28 = arith.constant 0 : index
    %c0_29 = arith.constant 0 : index
    %106 = vector.load %arg8[%c0_28, %c0_29] : memref<1x32xf32, #tpu.memory_space<vmem>>, vector<1x32xf32>
    %107 = vector.shape_cast %106 : vector<1x32xf32> to vector<32xf32>
    %108 = vector.shape_cast %107 : vector<32xf32> to vector<1x32xf32>
    %109 = vector.broadcast %108 : vector<1x32xf32> to vector<16x32xf32>
    %110 = arith.addf %105, %109 : vector<16x32xf32>
    %111 = arith.addf %1, %110 : vector<16x32xf32>
    %c0_30 = arith.constant 0 : index
    %c0_31 = arith.constant 0 : index
    %112 = vector.load %arg9[%c0_30, %c0_31] : memref<1x32xf32, #tpu.memory_space<vmem>>, vector<1x32xf32>
    %113 = vector.shape_cast %112 : vector<1x32xf32> to vector<32xf32>
    %c0_32 = arith.constant 0 : index
    %c0_33 = arith.constant 0 : index
    %114 = vector.load %arg10[%c0_32, %c0_33] : memref<1x32xf32, #tpu.memory_space<vmem>>, vector<1x32xf32>
    %115 = vector.shape_cast %114 : vector<1x32xf32> to vector<32xf32>
    %cst_34 = arith.constant dense<0.000000e+00> : vector<16xf32>
    %116 = vector.multi_reduction <add>, %111, %cst_34 [1] : vector<16x32xf32> to vector<16xf32>
    %117 = vector.shape_cast %116 : vector<16xf32> to vector<16x1xf32>
    %cst_35 = arith.constant 3.200000e+01 : f32
    %118 = vector.broadcast %cst_35 : f32 to vector<16x1xf32>
    %119 = arith.divf %117, %118 : vector<16x1xf32>
    %120 = vector.broadcast %119 : vector<16x1xf32> to vector<16x32xf32>
    %121 = arith.subf %111, %120 : vector<16x32xf32>
    %122 = arith.mulf %121, %121 : vector<16x32xf32>
    %cst_36 = arith.constant dense<0.000000e+00> : vector<16xf32>
    %123 = vector.multi_reduction <add>, %122, %cst_36 [1] : vector<16x32xf32> to vector<16xf32>
    %124 = vector.shape_cast %123 : vector<16xf32> to vector<16x1xf32>
    %cst_37 = arith.constant 3.200000e+01 : f32
    %125 = vector.broadcast %cst_37 : f32 to vector<16x1xf32>
    %126 = arith.divf %124, %125 : vector<16x1xf32>
    %cst_38 = arith.constant 9.99999974E-6 : f32
    %127 = vector.broadcast %cst_38 : f32 to vector<16x1xf32>
    %128 = arith.addf %126, %127 : vector<16x1xf32>
    %129 = math.rsqrt %128 : vector<16x1xf32>
    %130 = vector.broadcast %129 : vector<16x1xf32> to vector<16x32xf32>
    %131 = arith.mulf %121, %130 : vector<16x32xf32>
    %132 = vector.shape_cast %113 : vector<32xf32> to vector<1x32xf32>
    %133 = vector.broadcast %132 : vector<1x32xf32> to vector<16x32xf32>
    %134 = arith.mulf %131, %133 : vector<16x32xf32>
    %135 = vector.shape_cast %115 : vector<32xf32> to vector<1x32xf32>
    %136 = vector.broadcast %135 : vector<1x32xf32> to vector<16x32xf32>
    %137 = arith.addf %134, %136 : vector<16x32xf32>
    %138 = arith.truncf %137 : vector<16x32xf32> to vector<16x32xbf16>
    %c0_39 = arith.constant 0 : index
    %c0_40 = arith.constant 0 : index
    %139 = vector.load %arg11[%c0_39, %c0_40] : memref<32x64xbf16, #tpu.memory_space<vmem>>, vector<32x64xbf16>
    %cst_41 = arith.constant dense<0.000000e+00> : vector<16x64xf32>
    %140 = tpu.matmul %138, %139, %cst_41 {dimension_numbers = #tpu.dot_dimension_numbers<[1], [0], [0], [1], [0, 0, 1, 1], [], []>} : vector<16x32xbf16>, vector<32x64xbf16>, vector<16x64xf32> -> vector<16x64xf32>
    %c0_42 = arith.constant 0 : index
    %c0_43 = arith.constant 0 : index
    %141 = vector.load %arg12[%c0_42, %c0_43] : memref<1x64xf32, #tpu.memory_space<vmem>>, vector<1x64xf32>
    %142 = vector.shape_cast %141 : vector<1x64xf32> to vector<64xf32>
    %143 = vector.shape_cast %142 : vector<64xf32> to vector<1x64xf32>
    %144 = vector.broadcast %143 : vector<1x64xf32> to vector<16x64xf32>
    %145 = arith.addf %140, %144 : vector<16x64xf32>
    %cst_44 = arith.constant 5.000000e-01 : f32
    %146 = vector.broadcast %cst_44 : f32 to vector<16x64xf32>
    %147 = arith.mulf %146, %145 : vector<16x64xf32>
    %cst_45 = arith.constant 4.471500e-02 : f32
    %148 = vector.broadcast %cst_45 : f32 to vector<16x64xf32>
    %149 = arith.mulf %148, %145 : vector<16x64xf32>
    %150 = arith.mulf %149, %145 : vector<16x64xf32>
    %151 = arith.mulf %150, %145 : vector<16x64xf32>
    %152 = arith.addf %145, %151 : vector<16x64xf32>
    %cst_46 = arith.constant 0.797884583 : f32
    %153 = vector.broadcast %cst_46 : f32 to vector<16x64xf32>
    %154 = arith.mulf %153, %152 : vector<16x64xf32>
    %155 = math.tanh %154 : vector<16x64xf32>
    %cst_47 = arith.constant 1.000000e+00 : f32
    %156 = vector.broadcast %cst_47 : f32 to vector<16x64xf32>
    %157 = arith.addf %156, %155 : vector<16x64xf32>
    %158 = arith.mulf %147, %157 : vector<16x64xf32>
    %159 = arith.truncf %158 : vector<16x64xf32> to vector<16x64xbf16>
    %c0_48 = arith.constant 0 : index
    %c0_49 = arith.constant 0 : index
    %160 = vector.load %arg13[%c0_48, %c0_49] : memref<64x32xbf16, #tpu.memory_space<vmem>>, vector<64x32xbf16>
    %cst_50 = arith.constant dense<0.000000e+00> : vector<16x32xf32>
    %161 = tpu.matmul %159, %160, %cst_50 {dimension_numbers = #tpu.dot_dimension_numbers<[1], [0], [0], [1], [0, 0, 1, 1], [], []>} : vector<16x64xbf16>, vector<64x32xbf16>, vector<16x32xf32> -> vector<16x32xf32>
    %c0_51 = arith.constant 0 : index
    %c0_52 = arith.constant 0 : index
    %162 = vector.load %arg14[%c0_51, %c0_52] : memref<1x32xf32, #tpu.memory_space<vmem>>, vector<1x32xf32>
    %163 = vector.shape_cast %162 : vector<1x32xf32> to vector<32xf32>
    %164 = vector.shape_cast %163 : vector<32xf32> to vector<1x32xf32>
    %165 = vector.broadcast %164 : vector<1x32xf32> to vector<16x32xf32>
    %166 = arith.addf %161, %165 : vector<16x32xf32>
    %167 = arith.addf %111, %166 : vector<16x32xf32>
    %c0_53 = arith.constant 0 : index
    %c0_54 = arith.constant 0 : index
    %c0_55 = arith.constant 0 : index
    %168 = vector.load %arg15[%c0_53, %c0_54, %c0_55] : memref<1x16x32xf32, #tpu.memory_space<vmem>>, vector<1x16x32xf32>
    %169 = vector.shape_cast %168 : vector<1x16x32xf32> to vector<16x32xf32>
    %170 = vector.shape_cast %167 : vector<16x32xf32> to vector<1x16x32xf32>
    tpu.vector_store %arg15[%c0_53, %c0_54, %c0_55], %170 {strides = array<i32>} : memref<1x16x32xf32, #tpu.memory_space<vmem>>, vector<1x16x32xf32>,
    return
  }
  func.func @transform_0(%arg0: i32, %arg1: i32) -> (i32, i32, i32) {
    %c0_i32 = arith.constant 0 : i32
    %c0_i32_0 = arith.constant 0 : i32
    %c0_i32_1 = arith.constant 0 : i32
    return %arg0, %c0_i32, %c0_i32_0 : i32, i32, i32
  }
  func.func @transform_1(%arg0: i32, %arg1: i32) -> (i32, i32) {
    %c0_i32 = arith.constant 0 : i32
    %c0_i32_0 = arith.constant 0 : i32
    %c0_i32_1 = arith.constant 0 : i32
    return %c0_i32, %c0_i32_0 : i32, i32
  }
  func.func @transform_2(%arg0: i32, %arg1: i32) -> (i32, i32) {
    %c0_i32 = arith.constant 0 : i32
    %c0_i32_0 = arith.constant 0 : i32
    %c0_i32_1 = arith.constant 0 : i32
    return %c0_i32, %c0_i32_0 : i32, i32
  }
  func.func @transform_3(%arg0: i32, %arg1: i32) -> (i32, i32) {
    %c0_i32 = arith.constant 0 : i32
    %c0_i32_0 = arith.constant 0 : i32
    %c0_i32_1 = arith.constant 0 : i32
    return %c0_i32, %c0_i32_0 : i32, i32
  }
  func.func @transform_4(%arg0: i32, %arg1: i32) -> (i32, i32) {
    %c0_i32 = arith.constant 0 : i32
    %c0_i32_0 = arith.constant 0 : i32
    %c0_i32_1 = arith.constant 0 : i32
    return %c0_i32, %c0_i32_0 : i32, i32
  }
  func.func @transform_5(%arg0: i32, %arg1: i32) -> (i32, i32) {
    %c0_i32 = arith.constant 0 : i32
    %c0_i32_0 = arith.constant 0 : i32
    %c0_i32_1 = arith.constant 0 : i32
    return %c0_i32, %c0_i32_0 : i32, i32
  }
  func.func @transform_6(%arg0: i32, %arg1: i32) -> (i32, i32) {
    %c0_i32 = arith.constant 0 : i32
    %c0_i32_0 = arith.constant 0 : i32
    %c0_i32_1 = arith.constant 0 : i32
    return %c0_i32, %c0_i32_0 : i32, i32
  }
  func.func @transform_7(%arg0: i32, %arg1: i32) -> (i32, i32) {
    %c0_i32 = arith.constant 0 : i32
    %c0_i32_0 = arith.constant 0 : i32
    %c0_i32_1 = arith.constant 0 : i32
    return %c0_i32, %c0_i32_0 : i32, i32
  }
  func.func @transform_8(%arg0: i32, %arg1: i32) -> (i32, i32) {
    %c0_i32 = arith.constant 0 : i32
    %c0_i32_0 = arith.constant 0 : i32
    %c0_i32_1 = arith.constant 0 : i32
    return %c0_i32, %c0_i32_0 : i32, i32
  }
  func.func @transform_9(%arg0: i32, %arg1: i32) -> (i32, i32) {
    %c0_i32 = arith.constant 0 : i32
    %c0_i32_0 = arith.constant 0 : i32
    %c0_i32_1 = arith.constant 0 : i32
    return %c0_i32, %c0_i32_0 : i32, i32
  }
  func.func @transform_10(%arg0: i32, %arg1: i32) -> (i32, i32) {
    %c0_i32 = arith.constant 0 : i32
    %c0_i32_0 = arith.constant 0 : i32
    %c0_i32_1 = arith.constant 0 : i32
    return %c0_i32, %c0_i32_0 : i32, i32
  }
  func.func @transform_11(%arg0: i32, %arg1: i32) -> (i32, i32) {
    %c0_i32 = arith.constant 0 : i32
    %c0_i32_0 = arith.constant 0 : i32
    %c0_i32_1 = arith.constant 0 : i32
    return %c0_i32, %c0_i32_0 : i32, i32
  }
  func.func @transform_12(%arg0: i32, %arg1: i32) -> (i32, i32) {
    %c0_i32 = arith.constant 0 : i32
    %c0_i32_0 = arith.constant 0 : i32
    %c0_i32_1 = arith.constant 0 : i32
    return %c0_i32, %c0_i32_0 : i32, i32
  }
  func.func @transform_13(%arg0: i32, %arg1: i32) -> (i32, i32, i32) {
    %c0_i32 = arith.constant 0 : i32
    %c0_i32_0 = arith.constant 0 : i32
    return %arg0, %arg1, %c0_i32 : i32, i32, i32
  }
  func.func @transform_14(%arg0: i32, %arg1: i32) -> (i32, i32, i32, i32) {
    %c0_i32 = arith.constant 0 : i32
    %c0_i32_0 = arith.constant 0 : i32
    %c0_i32_1 = arith.constant 0 : i32
    return %arg0, %c0_i32, %arg1, %c0_i32_0 : i32, i32, i32, i32
  }
}

</mosaic_0001>

<llo_original>
// kernel: tpu_custom_call.1
$region0: #{tpu_custom_call.1}
  #allocation0 [shape = 'u32[]', space=smem, size = 0x4, offset = 0x4, fixed_abs, tag = 'smem constant byte address 0x4 - core index']
  #allocation1 [shape = 'u32[144,128]{1,0:T(1,128)}', space=vmem, size = 0x12000, scoped, tag = 'internal scratch']
  %s0 = inlined_call_operand.vmem [shape: f32[2,16,32], index: 0, kind: input, shape index: {}]
  %s1 = inlined_call_operand.vmem [shape: f32[1,32], index: 1, kind: input, shape index: {}]
  %s2 = inlined_call_operand.vmem [shape: f32[1,32], index: 2, kind: input, shape index: {}]
  %s3 = inlined_call_operand.vmem [shape: bf16[32,96], index: 3, kind: input, shape index: {}]
  %s4 = inlined_call_operand.vmem [shape: f32[1,96], index: 4, kind: input, shape index: {}]
  %s5 = inlined_call_operand.hbm [shape: bf16[32,32], index: 5, kind: input, shape index: {}]
  %s6 = inlined_call_operand.vmem [shape: f32[1,32], index: 6, kind: input, shape index: {}]
  %s7 = inlined_call_operand.hbm [shape: f32[1,32], index: 7, kind: input, shape index: {}]
  %s8 = inlined_call_operand.hbm [shape: f32[1,32], index: 8, kind: input, shape index: {}]
  %s9 = inlined_call_operand.hbm [shape: bf16[32,64], index: 9, kind: input, shape index: {}]
  %s10 = inlined_call_operand.hbm [shape: f32[1,64], index: 10, kind: input, shape index: {}]
  %s11 = inlined_call_operand.vmem [shape: bf16[64,32], index: 11, kind: input, shape index: {}]
  %s12 = inlined_call_operand.vmem [shape: f32[1,32], index: 12, kind: input, shape index: {}]
  %s13 = inlined_call_operand.hbm [shape: f32[2,16,32], index: 13, kind: output, shape index: {0}]
  %s14 = inlined_call_operand.hbm [shape: f32[2,4,16,16], index: 14, kind: output, shape index: {1}]
  %15 = xla_tuple %s13, %s14
  %s16 = sld [smem:[#allocation0]]
  $region113: #{tpu_custom_call.1} parent=0
    _
  %s18 = ssub.s32 1, %s16
  %s19 = scalar_select 0, %s18, %s16
  $region1: #{tpu_custom_call.1} parent=0
    #allocation2 [shape = 'u8[8192]{0}', space=vmem, size = 0x2000, scoped, tag = 'input window, operand 5, single buffered']
    #allocation3 [shape = 's32[2]{0}', space=sflag, size = 0x8, scoped, tag = 'scoped memory for tpu_custom_call.1']
    #allocation4 [shape = 's32[2]{0}', space=sflag, size = 0x8, scoped, tag = 'scoped memory for tpu_custom_call.1']
    #allocation5 [shape = 'u8[512]{0}', space=vmem, size = 0x400, scoped, tag = 'input window, operand 7, single buffered']
    #allocation6 [shape = 's32[1]{0}', space=sflag, size = 0x4, scoped, tag = 'scoped memory for tpu_custom_call.1']
    #allocation7 [shape = 'u8[512]{0}', space=vmem, size = 0x400, scoped, tag = 'input window, operand 8, single buffered']
    #allocation8 [shape = 'u8[8192]{0}', space=vmem, size = 0x2000, scoped, tag = 'input window, operand 9, single buffered']
    #allocation9 [shape = 's32[1]{0}', space=sflag, size = 0x4, scoped, tag = 'scoped memory for tpu_custom_call.1']
    #allocation10 [shape = 'u8[512]{0}', space=vmem, size = 0x400, scoped, tag = 'input window, operand 10, single buffered']
    #allocation11 [shape = 'u8[16384]{0}', space=vmem, size = 0x4000, scoped, tag = 'output window, operand 0']
    #allocation12 [shape = 'u8[65536]{0}', space=vmem, size = 0x10000, scoped, tag = 'output window, operand 1']
    #allocation13 [shape = 's32[2]{0}', space=sflag, size = 0x8, scoped, tag = 'scoped memory for tpu_custom_call.1']
    %20 = vsyncpa [#allocation3], 0
    %21 = vsyncpa [#allocation6], 0
    %22 = vsyncpa [#allocation9], 0
    %23 = vsyncpa [#allocation4], 0
    %s24 = scalar_lea.sflag [#allocation4], 1
    %25 = vsyncpa %s24, 0
    %26 = vsyncpa [#allocation13], 0
    %s27 = scalar_lea.sflag [#allocation13], 1
    %28 = vsyncpa %s27, 0
    loop: start=0, step=1, limit=4
    $region2: #{tpu_custom_call.1} parent=1 // loop_pre_header
      _
    $region3: #{tpu_custom_call.1} parent=1 // loop_header
      %s30 = sphi 0, %s34
      %p31 = scmp.ge.s32.totalorder %s30, 4
      %s37 = sphi 0, %s49
      %s38 = sphi 0, %s45
      %s39 = sphi 0, %s37
      %s40 = sphi 0, %s38
      %s41 = sphi 0, %s39
      %s42 = sphi 0, %s40
      %s52 = sphi 0, %s54
      %s55 = sphi 0, %s52
      %s56 = sphi 0, %s55
      %s72 = sphi 0, %s56
      %s76 = sphi 0, %s76
      %s78 = sphi 0, %s76
      %s79 = sphi 0, %s78
      %s93 = sphi 0, %s79
      %s97 = sphi 0, %s97
      %s99 = sphi 0, %s97
      %s100 = sphi 0, %s99
      %s114 = sphi 0, %s100
      %s118 = sphi 0, %s118
      %s120 = sphi 0, %s118
      %s121 = sphi 0, %s120
      %s135 = sphi 0, %s121
      %s139 = sphi 0, %s139
      %s141 = sphi 0, %s139
      %s142 = sphi 0, %s141
      %s156 = sphi 0, %s142
      %s160 = sphi 0, %s160
      %s162 = sphi 0, %s160
      %s163 = sphi 0, %s162
      %s177 = sphi 0, %s163
      %s181 = sphi 0, %s181
      %s183 = sphi 0, %s181
      %s184 = sphi 0, %s183
      %s198 = sphi 0, %s184
      %s202 = sphi 0, %s202
      %s204 = sphi 0, %s202
      %s205 = sphi 0, %s204
      %s219 = sphi 0, %s205
      %s223 = sphi 0, %s223
      %s225 = sphi 0, %s223
      %s226 = sphi 0, %s225
      %s240 = sphi 0, %s226
      %s244 = sphi 0, %s244
      %s246 = sphi 0, %s244
      %s247 = sphi 0, %s246
      %s261 = sphi 0, %s247
      %s265 = sphi 0, %s265
      %s267 = sphi 0, %s265
      %s268 = sphi 0, %s267
      %s282 = sphi 0, %s268
      %s286 = sphi 0, %s286
      %s288 = sphi 0, %s286
      %s289 = sphi 0, %s288
      %s303 = sphi 0, %s289
      %s307 = sphi 0, %s307
      %s309 = sphi 0, %s307
      %s310 = sphi 0, %s309
      %s324 = sphi 0, %s310
      %s332 = sphi 0, %s334
      %s335 = sphi 0, %s332
      %s336 = sphi 0, %s335
      %s352 = sphi 0, %s336
      %s360 = sphi 0, %s362
      %s363 = sphi 0, %s360
      %s364 = sphi 0, %s363
      %s380 = sphi 0, %s364
    $region4: #{tpu_custom_call.1} parent=1 // loop_header_branch
      %33 = sbr.rel (%p31) target = $region8
    $region5: #{tpu_custom_call.1} parent=1 // loop_body
      %s35 = ssub.s32 %s30, 1
      %s36 = ssub.s32 %s30, 2
      %s43 = sadd.s32 1, %s38
      %p44 = scmp.ge.s32.totalorder %s43, 1
      %s45 = scalar_select %p44, 0, %s43
      %s46 = sadd.s32 1, %s37
      %s47 = scalar_select %p44, %s46, %s37
      %p48 = scmp.ge.s32.totalorder %s47, 2
      %s49 = scalar_select %p48, 0, %s47
      %s50 = ssub.s32 %s37, %s49
      %p51 = scmp.eq.s32.totalorder %s50, 0
      %s53 = sadd.s32 %s52, 1
      %s54 = scalar_select %p51, %s52, %s53
      %p57 = pneg %p51
      %p58 = scmp.eq.s32.totalorder %s30, 1
      %p59 = por %p57, %p58
      %p60 = scmp.ne.s32.totalorder %s52, %s55
      %p61 = scmp.eq.s32.totalorder %s30, 0
      %p62 = por %p60, %p61
      %p63 = scmp.ne.s32.totalorder %s52, %s55
      %p64 = scmp.eq.s32.totalorder %s35, 1
      %p65 = por %p63, %p64
      %p66 = scmp.ne.s32.totalorder %s55, %s56
      %p67 = scmp.eq.s32.totalorder %s35, 0
      %p68 = por %p66, %p67
      %p69 = scmp.ne.s32.totalorder %s55, %s56
      %p70 = scmp.eq.s32.totalorder %s36, 1
      %p71 = por %p69, %p70
      %p73 = scmp.ne.s32.totalorder %s56, %s72
      %p74 = scmp.eq.s32.totalorder %s36, 0
      %p75 = por %p73, %p74
      %s77 = sadd.s32 %s76, 1
      %p80 = scmp.eq.s32.totalorder %s30, 1
      %p81 = scmp.ne.s32.totalorder %s76, %s78
      %p82 = scmp.eq.s32.totalorder %s30, 0
      %p83 = por %p81, %p82
      %p84 = scmp.ne.s32.totalorder %s76, %s78
      %p85 = scmp.eq.s32.totalorder %s35, 1
      %p86 = por %p84, %p85
      %p87 = scmp.ne.s32.totalorder %s78, %s79
      %p88 = scmp.eq.s32.totalorder %s35, 0
      %p89 = por %p87, %p88
      %p90 = scmp.ne.s32.totalorder %s78, %s79
      %p91 = scmp.eq.s32.totalorder %s36, 1
      %p92 = por %p90, %p91
      %p94 = scmp.ne.s32.totalorder %s79, %s93
      %p95 = scmp.eq.s32.totalorder %s36, 0
      %p96 = por %p94, %p95
      %s98 = sadd.s32 %s97, 1
      %p101 = scmp.eq.s32.totalorder %s30, 1
      %p102 = scmp.ne.s32.totalorder %s97, %s99
      %p103 = scmp.eq.s32.totalorder %s30, 0
      %p104 = por %p102, %p103
      %p105 = scmp.ne.s32.totalorder %s97, %s99
      %p106 = scmp.eq.s32.totalorder %s35, 1
      %p107 = por %p105, %p106
      %p108 = scmp.ne.s32.totalorder %s99, %s100
      %p109 = scmp.eq.s32.totalorder %s35, 0
      %p110 = por %p108, %p109
      %p111 = scmp.ne.s32.totalorder %s99, %s100
      %p112 = scmp.eq.s32.totalorder %s36, 1
      %p113 = por %p111, %p112
      %p115 = scmp.ne.s32.totalorder %s100, %s114
      %p116 = scmp.eq.s32.totalorder %s36, 0
      %p117 = por %p115, %p116
      %s119 = sadd.s32 %s118, 1
      %p122 = scmp.eq.s32.totalorder %s30, 1
      %p123 = scmp.ne.s32.totalorder %s118, %s120
      %p124 = scmp.eq.s32.totalorder %s30, 0
      %p125 = por %p123, %p124
      %p126 = scmp.ne.s32.totalorder %s118, %s120
      %p127 = scmp.eq.s32.totalorder %s35, 1
      %p128 = por %p126, %p127
      %p129 = scmp.ne.s32.totalorder %s120, %s121
      %p130 = scmp.eq.s32.totalorder %s35, 0
      %p131 = por %p129, %p130
      %p132 = scmp.ne.s32.totalorder %s120, %s121
      %p133 = scmp.eq.s32.totalorder %s36, 1
      %p134 = por %p132, %p133
      %p136 = scmp.ne.s32.totalorder %s121, %s135
      %p137 = scmp.eq.s32.totalorder %s36, 0
      %p138 = por %p136, %p137
      %s140 = sadd.s32 %s139, 1
      %p143 = scmp.eq.s32.totalorder %s30, 1
      %p144 = scmp.ne.s32.totalorder %s139, %s141
      %p145 = scmp.eq.s32.totalorder %s30, 0
      %p146 = por %p144, %p145
      %p147 = scmp.ne.s32.totalorder %s139, %s141
      %p148 = scmp.eq.s32.totalorder %s35, 1
      %p149 = por %p147, %p148
      %p150 = scmp.ne.s32.totalorder %s141, %s142
      %p151 = scmp.eq.s32.totalorder %s35, 0
      %p152 = por %p150, %p151
      %p153 = scmp.ne.s32.totalorder %s141, %s142
      %p154 = scmp.eq.s32.totalorder %s36, 1
      %p155 = por %p153, %p154
      %p157 = scmp.ne.s32.totalorder %s142, %s156
      %p158 = scmp.eq.s32.totalorder %s36, 0
      %p159 = por %p157, %p158
      %s161 = sadd.s32 %s160, 1
      %p164 = scmp.eq.s32.totalorder %s30, 1
      %p165 = scmp.ne.s32.totalorder %s160, %s162
      %p166 = scmp.eq.s32.totalorder %s30, 0
      %p167 = por %p165, %p166
      %p168 = scmp.ne.s32.totalorder %s160, %s162
      %p169 = scmp.eq.s32.totalorder %s35, 1
      %p170 = por %p168, %p169
      %p171 = scmp.ne.s32.totalorder %s162, %s163
      %p172 = scmp.eq.s32.totalorder %s35, 0
      %p173 = por %p171, %p172
      %p174 = scmp.ne.s32.totalorder %s162, %s163
      %p175 = scmp.eq.s32.totalorder %s36, 1
      %p176 = por %p174, %p175
      %p178 = scmp.ne.s32.totalorder %s163, %s177
      %p179 = scmp.eq.s32.totalorder %s36, 0
      %p180 = por %p178, %p179
      %s182 = sadd.s32 %s181, 1
      %p185 = scmp.eq.s32.totalorder %s30, 1
      %p186 = scmp.ne.s32.totalorder %s181, %s183
      %p187 = scmp.eq.s32.totalorder %s30, 0
      %p188 = por %p186, %p187
      %p189 = scmp.ne.s32.totalorder %s181, %s183
      %p190 = scmp.eq.s32.totalorder %s35, 1
      %p191 = por %p189, %p190
      %p192 = scmp.ne.s32.totalorder %s183, %s184
      %p193 = scmp.eq.s32.totalorder %s35, 0
      %p194 = por %p192, %p193
      %p195 = scmp.ne.s32.totalorder %s183, %s184
      %p196 = scmp.eq.s32.totalorder %s36, 1
      %p197 = por %p195, %p196
      %p199 = scmp.ne.s32.totalorder %s184, %s198
      %p200 = scmp.eq.s32.totalorder %s36, 0
      %p201 = por %p199, %p200
      %s203 = sadd.s32 %s202, 1
      %p206 = scmp.eq.s32.totalorder %s30, 1
      %p207 = scmp.ne.s32.totalorder %s202, %s204
      %p208 = scmp.eq.s32.totalorder %s30, 0
      %p209 = por %p207, %p208
      %p210 = scmp.ne.s32.totalorder %s202, %s204
      %p211 = scmp.eq.s32.totalorder %s35, 1
      %p212 = por %p210, %p211
      %p213 = scmp.ne.s32.totalorder %s204, %s205
      %p214 = scmp.eq.s32.totalorder %s35, 0
      %p215 = por %p213, %p214
      %p216 = scmp.ne.s32.totalorder %s204, %s205
      %p217 = scmp.eq.s32.totalorder %s36, 1
      %p218 = por %p216, %p217
      %p220 = scmp.ne.s32.totalorder %s205, %s219
      %p221 = scmp.eq.s32.totalorder %s36, 0
      %p222 = por %p220, %p221
      %s224 = sadd.s32 %s223, 1
      %p227 = scmp.eq.s32.totalorder %s30, 1
      %p228 = scmp.ne.s32.totalorder %s223, %s225
      %p229 = scmp.eq.s32.totalorder %s30, 0
      %p230 = por %p228, %p229
      %p231 = scmp.ne.s32.totalorder %s223, %s225
      %p232 = scmp.eq.s32.totalorder %s35, 1
      %p233 = por %p231, %p232
      %p234 = scmp.ne.s32.totalorder %s225, %s226
      %p235 = scmp.eq.s32.totalorder %s35, 0
      %p236 = por %p234, %p235
      %p237 = scmp.ne.s32.totalorder %s225, %s226
      %p238 = scmp.eq.s32.totalorder %s36, 1
      %p239 = por %p237, %p238
      %p241 = scmp.ne.s32.totalorder %s226, %s240
      %p242 = scmp.eq.s32.totalorder %s36, 0
      %p243 = por %p241, %p242
      %s245 = sadd.s32 %s244, 1
      %p248 = scmp.eq.s32.totalorder %s30, 1
      %p249 = scmp.ne.s32.totalorder %s244, %s246
      %p250 = scmp.eq.s32.totalorder %s30, 0
      %p251 = por %p249, %p250
      %p252 = scmp.ne.s32.totalorder %s244, %s246
      %p253 = scmp.eq.s32.totalorder %s35, 1
      %p254 = por %p252, %p253
      %p255 = scmp.ne.s32.totalorder %s246, %s247
      %p256 = scmp.eq.s32.totalorder %s35, 0
      %p257 = por %p255, %p256
      %p258 = scmp.ne.s32.totalorder %s246, %s247
      %p259 = scmp.eq.s32.totalorder %s36, 1
      %p260 = por %p258, %p259
      %p262 = scmp.ne.s32.totalorder %s247, %s261
      %p263 = scmp.eq.s32.totalorder %s36, 0
      %p264 = por %p262, %p263
      %s266 = sadd.s32 %s265, 1
      %p269 = scmp.eq.s32.totalorder %s30, 1
      %p270 = scmp.ne.s32.totalorder %s265, %s267
      %p271 = scmp.eq.s32.totalorder %s30, 0
      %p272 = por %p270, %p271
      %p273 = scmp.ne.s32.totalorder %s265, %s267
      %p274 = scmp.eq.s32.totalorder %s35, 1
      %p275 = por %p273, %p274
      %p276 = scmp.ne.s32.totalorder %s267, %s268
      %p277 = scmp.eq.s32.totalorder %s35, 0
      %p278 = por %p276, %p277
      %p279 = scmp.ne.s32.totalorder %s267, %s268
      %p280 = scmp.eq.s32.totalorder %s36, 1
      %p281 = por %p279, %p280
      %p283 = scmp.ne.s32.totalorder %s268, %s282
      %p284 = scmp.eq.s32.totalorder %s36, 0
      %p285 = por %p283, %p284
      %s287 = sadd.s32 %s286, 1
      %p290 = scmp.eq.s32.totalorder %s30, 1
      %p291 = scmp.ne.s32.totalorder %s286, %s288
      %p292 = scmp.eq.s32.totalorder %s30, 0
      %p293 = por %p291, %p292
      %p294 = scmp.ne.s32.totalorder %s286, %s288
      %p295 = scmp.eq.s32.totalorder %s35, 1
      %p296 = por %p294, %p295
      %p297 = scmp.ne.s32.totalorder %s288, %s289
      %p298 = scmp.eq.s32.totalorder %s35, 0
      %p299 = por %p297, %p298
      %p300 = scmp.ne.s32.totalorder %s288, %s289
      %p301 = scmp.eq.s32.totalorder %s36, 1
      %p302 = por %p300, %p301
      %p304 = scmp.ne.s32.totalorder %s289, %s303
      %p305 = scmp.eq.s32.totalorder %s36, 0
      %p306 = por %p304, %p305
      %s308 = sadd.s32 %s307, 1
      %p311 = scmp.eq.s32.totalorder %s30, 1
      %p312 = scmp.ne.s32.totalorder %s307, %s309
      %p313 = scmp.eq.s32.totalorder %s30, 0
      %p314 = por %p312, %p313
      %p315 = scmp.ne.s32.totalorder %s307, %s309
      %p316 = scmp.eq.s32.totalorder %s35, 1
      %p317 = por %p315, %p316
      %p318 = scmp.ne.s32.totalorder %s309, %s310
      %p319 = scmp.eq.s32.totalorder %s35, 0
      %p320 = por %p318, %p319
      %p321 = scmp.ne.s32.totalorder %s309, %s310
      %p322 = scmp.eq.s32.totalorder %s36, 1
      %p323 = por %p321, %p322
      %p325 = scmp.ne.s32.totalorder %s310, %s324
      %p326 = scmp.eq.s32.totalorder %s36, 0
      %p327 = por %p325, %p326
      %s328 = ssub.s32 %s37, %s49
      %s329 = ssub.s32 %s38, %s45
      %s330 = sor.u32 %s328, %s329
      %p331 = scmp.eq.s32.totalorder %s330, 0
      %s333 = sadd.s32 %s332, 1
      %s334 = scalar_select %p331, %s332, %s333
      %p337 = pneg %p331
      %p338 = scmp.eq.s32.totalorder %s30, 1
      %p339 = por %p337, %p338
      %p340 = scmp.ne.s32.totalorder %s332, %s335
      %p341 = scmp.eq.s32.totalorder %s30, 0
      %p342 = por %p340, %p341
      %p343 = scmp.ne.s32.totalorder %s332, %s335
      %p344 = scmp.eq.s32.totalorder %s35, 1
      %p345 = por %p343, %p344
      %p346 = scmp.ne.s32.totalorder %s335, %s336
      %p347 = scmp.eq.s32.totalorder %s35, 0
      %p348 = por %p346, %p347
      %p349 = scmp.ne.s32.totalorder %s335, %s336
      %p350 = scmp.eq.s32.totalorder %s36, 1
      %p351 = por %p349, %p350
      %p353 = scmp.ne.s32.totalorder %s336, %s352
      %p354 = scmp.eq.s32.totalorder %s36, 0
      %p355 = por %p353, %p354
      %s356 = ssub.s32 %s37, %s49
      %s357 = ssub.s32 %s38, %s45
      %s358 = sor.u32 %s356, %s357
      %p359 = scmp.eq.s32.totalorder %s358, 0
      %s361 = sadd.s32 %s360, 1
      %s362 = scalar_select %p359, %s360, %s361
      %p365 = pneg %p359
      %p366 = scmp.eq.s32.totalorder %s30, 1
      %p367 = por %p365, %p366
      %p368 = scmp.ne.s32.totalorder %s360, %s363
      %p369 = scmp.eq.s32.totalorder %s30, 0
      %p370 = por %p368, %p369
      %p371 = scmp.ne.s32.totalorder %s360, %s363
      %p372 = scmp.eq.s32.totalorder %s35, 1
      %p373 = por %p371, %p372
      %p374 = scmp.ne.s32.totalorder %s363, %s364
      %p375 = scmp.eq.s32.totalorder %s35, 0
      %p376 = por %p374, %p375
      %p377 = scmp.ne.s32.totalorder %s363, %s364
      %p378 = scmp.eq.s32.totalorder %s36, 1
      %p379 = por %p377, %p378
      %p381 = scmp.ne.s32.totalorder %s364, %s380
      %p382 = scmp.eq.s32.totalorder %s36, 0
      %p383 = por %p381, %p382
      %p384 = scmp.le.s32.totalorder 1, %s30
      %p385 = scmp.lt.s32.totalorder %s30, 3
      %p386 = pnand %p384, %p385
      %p387 = pneg %p386
      // Predicated region
      $region9: #{tpu_custom_call.1} parent=5 // pred_check
        _
      $region10: #{tpu_custom_call.1} parent=5 // pred_check_branch
        %389 = sbr.rel (%p386) target = $region12
      $region11: #{tpu_custom_call.1} parent=5 // pred_region
        %s390 = ssub.s32 %s30, 1
        // Predicated region
        $region13: #{tpu_custom_call.1} parent=11 // pred_check
          %p391 = pneg %p89
        $region14: #{tpu_custom_call.1} parent=11 // pred_check_branch
          %393 = sbr.rel (%p391) target = $region16
        $region15: #{tpu_custom_call.1} parent=11 // pred_region
          _
        $region16: #{tpu_custom_call.1} parent=11 // pred_fallthru
          _
        // Predicated region
        $region17: #{tpu_custom_call.1} parent=11 // pred_check
          %p394 = pneg %p110
        $region18: #{tpu_custom_call.1} parent=11 // pred_check_branch
          %396 = sbr.rel (%p394) target = $region20
        $region19: #{tpu_custom_call.1} parent=11 // pred_region
          _
        $region20: #{tpu_custom_call.1} parent=11 // pred_fallthru
          _
        // Predicated region
        $region21: #{tpu_custom_call.1} parent=11 // pred_check
          %p397 = pneg %p131
        $region22: #{tpu_custom_call.1} parent=11 // pred_check_branch
          %399 = sbr.rel (%p397) target = $region24
        $region23: #{tpu_custom_call.1} parent=11 // pred_region
          _
        $region24: #{tpu_custom_call.1} parent=11 // pred_fallthru
          _
        // Predicated region
        $region25: #{tpu_custom_call.1} parent=11 // pred_check
          %p400 = pneg %p152
        $region26: #{tpu_custom_call.1} parent=11 // pred_check_branch
          %402 = sbr.rel (%p400) target = $region28
        $region27: #{tpu_custom_call.1} parent=11 // pred_region
          _
        $region28: #{tpu_custom_call.1} parent=11 // pred_fallthru
          _
        // Predicated region
        $region29: #{tpu_custom_call.1} parent=11 // pred_check
          %p403 = pneg %p173
        $region30: #{tpu_custom_call.1} parent=11 // pred_check_branch
          %405 = sbr.rel (%p403) target = $region32
        $region31: #{tpu_custom_call.1} parent=11 // pred_region
          %s407 = ssub.s32 256, 256
          %408 = vsyncadd [#allocation3], %s407
          %s409 = sshll.u32 [#allocation2], 4
          %s410 = int_to_ptr.vmem [resolvable:$true] %s409
          %415 = dma.hbm_to_vmem [thread:$0]  %s5, 256, %s410, [#allocation3], 64, 64, 4
        $region32: #{tpu_custom_call.1} parent=11 // pred_fallthru
          _
        // Predicated region
        $region33: #{tpu_custom_call.1} parent=11 // pred_check
          %p416 = pneg %p194
        $region34: #{tpu_custom_call.1} parent=11 // pred_check_branch
          %418 = sbr.rel (%p416) target = $region36
        $region35: #{tpu_custom_call.1} parent=11 // pred_region
          _
        $region36: #{tpu_custom_call.1} parent=11 // pred_fallthru
          _
        // Predicated region
        $region37: #{tpu_custom_call.1} parent=11 // pred_check
          %p419 = pneg %p215
        $region38: #{tpu_custom_call.1} parent=11 // pred_check_branch
          %421 = sbr.rel (%p419) target = $region40
        $region39: #{tpu_custom_call.1} parent=11 // pred_region
          %s423 = ssub.s32 16, 16
          %424 = vsyncadd [#allocation6], %s423
          %s426 = sshll.u32 [#allocation5], 4
          %s427 = int_to_ptr.vmem [resolvable:$true] %s426
          %429 = dma.hbm_to_vmem [thread:$0]  %s7, 16, %s427, [#allocation6]
        $region40: #{tpu_custom_call.1} parent=11 // pred_fallthru
          _
        // Predicated region
        $region41: #{tpu_custom_call.1} parent=11 // pred_check
          %p430 = pneg %p236
        $region42: #{tpu_custom_call.1} parent=11 // pred_check_branch
          %432 = sbr.rel (%p430) target = $region44
        $region43: #{tpu_custom_call.1} parent=11 // pred_region
          %s434 = ssub.s32 16, 16
          %435 = vsyncadd [#allocation6], %s434
          %s437 = sshll.u32 [#allocation7], 4
          %s438 = int_to_ptr.vmem [resolvable:$true] %s437
          %440 = dma.hbm_to_vmem [thread:$0]  %s8, 16, %s438, [#allocation6]
        $region44: #{tpu_custom_call.1} parent=11 // pred_fallthru
          _
        // Predicated region
        $region45: #{tpu_custom_call.1} parent=11 // pred_check
          %p441 = pneg %p257
        $region46: #{tpu_custom_call.1} parent=11 // pred_check_branch
          %443 = sbr.rel (%p441) target = $region48
        $region47: #{tpu_custom_call.1} parent=11 // pred_region
          %s445 = ssub.s32 256, 256
          %446 = vsyncadd [#allocation9], %s445
          %s447 = sshll.u32 [#allocation8], 4
          %s448 = int_to_ptr.vmem [resolvable:$true] %s447
          %453 = dma.hbm_to_vmem [thread:$0]  %s9, 256, %s448, [#allocation9], 64, 64, 4
        $region48: #{tpu_custom_call.1} parent=11 // pred_fallthru
          _
        // Predicated region
        $region49: #{tpu_custom_call.1} parent=11 // pred_check
          %p454 = pneg %p278
        $region50: #{tpu_custom_call.1} parent=11 // pred_check_branch
          %456 = sbr.rel (%p454) target = $region52
        $region51: #{tpu_custom_call.1} parent=11 // pred_region
          %s458 = ssub.s32 16, 16
          %459 = vsyncadd [#allocation9], %s458
          %s461 = sshll.u32 [#allocation10], 4
          %s462 = int_to_ptr.vmem [resolvable:$true] %s461
          %464 = dma.hbm_to_vmem [thread:$0]  %s10, 16, %s462, [#allocation9]
        $region52: #{tpu_custom_call.1} parent=11 // pred_fallthru
          _
        // Predicated region
        $region53: #{tpu_custom_call.1} parent=11 // pred_check
          %p465 = pneg %p299
        $region54: #{tpu_custom_call.1} parent=11 // pred_check_branch
          %467 = sbr.rel (%p465) target = $region56
        $region55: #{tpu_custom_call.1} parent=11 // pred_region
          _
        $region56: #{tpu_custom_call.1} parent=11 // pred_fallthru
          _
        // Predicated region
        $region57: #{tpu_custom_call.1} parent=11 // pred_check
          %p468 = pneg %p320
        $region58: #{tpu_custom_call.1} parent=11 // pred_check_branch
          %470 = sbr.rel (%p468) target = $region60
        $region59: #{tpu_custom_call.1} parent=11 // pred_region
          _
        $region60: #{tpu_custom_call.1} parent=11 // pred_fallthru
          _
      $region12: #{tpu_custom_call.1} parent=5 // pred_fallthru
        _
      %p471 = scmp.lt.s32.totalorder %s30, 2
      // Predicated region
      $region61: #{tpu_custom_call.1} parent=5 // pred_check
        %p472 = pneg %p471
      $region62: #{tpu_custom_call.1} parent=5 // pred_check_branch
        %474 = sbr.rel (%p472) target = $region64
      $region63: #{tpu_custom_call.1} parent=5 // pred_region
        // Predicated region
        $region65: #{tpu_custom_call.1} parent=63 // pred_check
          %p475 = pneg %p62
        $region66: #{tpu_custom_call.1} parent=63 // pred_check_branch
          %477 = sbr.rel (%p475) target = $region68
        $region67: #{tpu_custom_call.1} parent=63 // pred_region
          %p478 = scmp.lt.s32.totalorder %s37, 1
          %s479 = scalar_select %p478, %s37, 1
          %s480 = smul.addr %s479, 2
          %s481 = smul.addr %s480, 8
          %s482 = scalar_lea.vmem %s0, %s481
        $region68: #{tpu_custom_call.1} parent=63 // pred_fallthru
          _
      $region64: #{tpu_custom_call.1} parent=5 // pred_fallthru
        _
      %p483 = scmp.le.s32.totalorder 1, %s30
      %p484 = scmp.lt.s32.totalorder %s30, 3
      %p485 = pnand %p483, %p484
      %p486 = pneg %p485
      // Predicated region
      $region69: #{tpu_custom_call.1} parent=5 // pred_check
        _
      $region70: #{tpu_custom_call.1} parent=5 // pred_check_branch
        %488 = sbr.rel (%p485) target = $region72
      $region71: #{tpu_custom_call.1} parent=5 // pred_region
        %s489 = ssub.s32 %s30, 1
        // Predicated region
        $region73: #{tpu_custom_call.1} parent=71 // pred_check
          %p490 = pneg %p173
        $region74: #{tpu_custom_call.1} parent=71 // pred_check_branch
          %492 = sbr.rel (%p490) target = $region76
        $region75: #{tpu_custom_call.1} parent=71 // pred_region
          %493 = dma.done [#allocation3], 256
        $region76: #{tpu_custom_call.1} parent=71 // pred_fallthru
          _
        // Predicated region
        $region77: #{tpu_custom_call.1} parent=71 // pred_check
          %p494 = pneg %p215
        $region78: #{tpu_custom_call.1} parent=71 // pred_check_branch
          %496 = sbr.rel (%p494) target = $region80
        $region79: #{tpu_custom_call.1} parent=71 // pred_region
          %497 = dma.done [#allocation6], 16
        $region80: #{tpu_custom_call.1} parent=71 // pred_fallthru
          _
        // Predicated region
        $region81: #{tpu_custom_call.1} parent=71 // pred_check
          %p498 = pneg %p236
        $region82: #{tpu_custom_call.1} parent=71 // pred_check_branch
          %500 = sbr.rel (%p498) target = $region84
        $region83: #{tpu_custom_call.1} parent=71 // pred_region
          %501 = dma.done [#allocation6], 16
        $region84: #{tpu_custom_call.1} parent=71 // pred_fallthru
          _
        // Predicated region
        $region85: #{tpu_custom_call.1} parent=71 // pred_check
          %p502 = pneg %p257
        $region86: #{tpu_custom_call.1} parent=71 // pred_check_branch
          %504 = sbr.rel (%p502) target = $region88
        $region87: #{tpu_custom_call.1} parent=71 // pred_region
          %505 = dma.done [#allocation9], 256
        $region88: #{tpu_custom_call.1} parent=71 // pred_fallthru
          _
        // Predicated region
        $region89: #{tpu_custom_call.1} parent=71 // pred_check
          %p506 = pneg %p278
        $region90: #{tpu_custom_call.1} parent=71 // pred_check_branch
          %508 = sbr.rel (%p506) target = $region92
        $region91: #{tpu_custom_call.1} parent=71 // pred_region
          %509 = dma.done [#allocation9], 16
        $region92: #{tpu_custom_call.1} parent=71 // pred_fallthru
          _
        %p510 = scmp.lt.s32.totalorder %s39, 1
        %s511 = scalar_select %p510, %s39, 1
        %s512 = smul.addr %s511, 2
        %s513 = smul.addr %s512, 8
        %s514 = scalar_lea.vmem %s0, %s513
        %p515 = pneg %p68
        %p516 = pneg %p65
        %p517 = pneg %p89
        %p518 = pneg %p86
        %p519 = pneg %p110
        %p520 = pneg %p107
        %p521 = pneg %p131
        %p522 = pneg %p128
        %p523 = pneg %p152
        %p524 = pneg %p149
        %p525 = pneg %p173
        %p526 = pneg %p170
        %p527 = pneg %p194
        %p528 = pneg %p191
        %p529 = pneg %p215
        %p530 = pneg %p212
        %p531 = pneg %p236
        %p532 = pneg %p233
        %p533 = pneg %p257
        %p534 = pneg %p254
        %p535 = pneg %p278
        %p536 = pneg %p275
        %p537 = pneg %p299
        %p538 = pneg %p296
        %p539 = pneg %p320
        %p540 = pneg %p317
        %p541 = pneg %p348
        %p542 = pneg %p345
        %s543 = sand.u32 %s335, 1
        %s544 = scalar_lea.sflag [#allocation4], %s543
        %s545 = sand.u32 %s335, 1
        %s546 = smul.addr %s545, 16
        %s547 = scalar_lea.vmem [#allocation11], %s546
        %p548 = pneg %p376
        %p549 = pneg %p373
        %s550 = sand.u32 %s363, 1
        %s551 = scalar_lea.sflag [#allocation13], %s550
        %s552 = sand.u32 %s363, 1
        %s553 = smul.addr %s552, 64
        %s554 = scalar_lea.vmem [#allocation12], %s553
        %p555 = scmp.lt.s32.totalorder %s39, 1
        %s556 = scalar_select %p555, %s39, 1
        %s557 = smul.addr %s556, 2
        %s558 = smul.addr %s557, 8
        %s559 = scalar_lea.vmem %s0, %s558
        %s560 = smul.u32 2, %s40
        %s561 = smul.u32 2, %s40
        %v563 = vld [vmem:[%s559] sm:$0xff]
        %v564 = vld [vmem:[%s559 + $0x8] sm:$0xff]
        %v565 = vld [vmem:[%s1] sm:$0x1]
        %v566 = vld [vmem:[%s2] sm:$0x1]
        %v567 = vld [vmem:[%s4] sm:$0x1]
        %vm568 = vcmask 261120
        %v569 = vsel %vm568, %v563, 0.0
        %570 = vadd.xlane.f32.xlu0 %v569
        %v571 = vpop.xlane.xlu0 %570
        %v572 = vsel %vm568, %v564, 0.0
        %573 = vadd.xlane.f32.xlu0 %v572
        %v574 = vpop.xlane.xlu0 %573
        %v575 = vrcp.pop 32.0
        %v576 = vmul.f32 %v571, %v575
        %v577 = vmul.f32 %v574, %v575
        %v578 = vsub.f32 %v563, %v576
        %v579 = vsub.f32 %v564, %v577
        %v580 = vmul.f32 %v578, %v578
        %v581 = vmul.f32 %v579, %v579
        %v582 = vsel %vm568, %v580, 0.0
        %583 = vadd.xlane.f32.xlu0 %v582
        %v584 = vpop.xlane.xlu0 %583
        %v585 = vsel %vm568, %v581, 0.0
        %586 = vadd.xlane.f32.xlu0 %v585
        %v587 = vpop.xlane.xlu0 %586
        %v588 = vmul.f32 %v584, %v575
        %v589 = vmul.f32 %v587, %v575
        %v590 = vadd.f32 %v588, 1e-05
        %v591 = vadd.f32 %v589, 1e-05
        %v592 = vrsqrt.pop %v590
        %v593 = vrsqrt.pop %v591
        %v594 = vmul.f32 %v578, %v592
        %v595 = vmul.f32 %v579, %v593
        %v597 = vlaneseq
        %v598 = vshrl.u32 %v597, 7
        %v599 = vsub.s32 0, %v598
        %v600 = vrot.slane %v565, %v599
        %v602 = vmul.f32 %v594, %v600
        %v603 = vmul.f32 %v595, %v600
        %v605 = vlaneseq
        %v606 = vshrl.u32 %v605, 7
        %v607 = vsub.s32 0, %v606
        %v608 = vrot.slane %v566, %v607
        %v610 = vadd.f32 %v602, %v608
        %v611 = vadd.f32 %v603, %v608
        %v612 = vpack.c.bf16 %v611, %v610
        %v613 = vld [vmem:[%s3] sm:$0xf]
        %v614 = vld [vmem:[%s3 + $0x4] sm:$0xf]
        %v615 = vld [vmem:[%s3 + $0x8] sm:$0xf]
        %v616 = vld [vmem:[%s3 + $0xc] sm:$0xf]
        %v618 = vlaneseq
        %v619 = vshrl.u32 %v618, 7
        %v620 = vsub.s32 0, %v619
        %v621 = vrot.slane %v567, %v620
        %v627 = vunpack.c.l.b16 %v613
        %v628 = vunpack.c.l.b16 %v614
        %v629 = vunpack.c.l.b16 %v615
        %v630 = vunpack.c.l.b16 %v616
        %v631 = vpack.c.b16 %v628, %v627
        %v632 = vpack.c.b16 %v630, %v629
        %v636 = vsel %vm568, %v612, 0
        %638 = vmatprep.subr.bf16.mxu0 0
        %639 = vmatpush1.bf16.msra.mxu0 0
        %640 = vmatprep.subr.bf16.mxu0 0
        %641 = vmatpush1.bf16.msra.mxu0 0
        %642 = vmatprep.subr.bf16.mxu0 0
        %643 = vmatpush1.bf16.msra.mxu0 0
        %644 = vmatprep.subr.bf16.mxu0 0
        %645 = vmatpush1.bf16.msra.mxu0 0
        %646 = vmatprep.subr.bf16.mxu0 0
        %647 = vmatpush1.bf16.msra.mxu0 0
        %648 = vmatprep.subr.bf16.mxu0 0
        %649 = vmatpush1.bf16.msra.mxu0 0
        %650 = vmatprep.subr.bf16.mxu0 0
        %651 = vmatpush1.bf16.msra.mxu0 %v632
        %652 = vmatprep.subr.bf16.mxu0 0
        %653 = vmatpush1.bf16.msra.mxu0 %v631
        %654 = vmatprep.subr.bf16.mxu0 0
        %655 = vmatpush2.bf16.msra.mxu0 0
        %656 = vmatprep.subr.bf16.mxu0 0
        %657 = vmatpush2.bf16.msra.mxu0 0
        %658 = vmatprep.subr.bf16.mxu0 0
        %659 = vmatpush2.bf16.msra.mxu0 0
        %660 = vmatprep.subr.bf16.mxu0 0
        %661 = vmatpush2.bf16.msra.mxu0 0
        %662 = vmatprep.subr.bf16.mxu0 0
        %663 = vmatpush2.bf16.msra.mxu0 0
        %664 = vmatprep.subr.bf16.mxu0 0
        %665 = vmatpush2.bf16.msra.mxu0 0
        %666 = vmatprep.subr.bf16.mxu0 0
        %667 = vmatpush2.bf16.msra.mxu0 0
        %668 = vmatprep.subr.bf16.mxu0 0
        %669 = vmatpush2.bf16.msra.mxu0 0
        %670 = vmatprep.mubr.bf16.mxu0 0
        %671 = vmatmul.mubr.bf16.gmra.mxu0 %v636
        %v672 = vpop.f32.mrf.mxu0
        %v673 = vadd.f32 %v621, %v672
        %v674 = vpop.f32.mrf.mxu0
        %v675 = vpop.f32.mrf.mxu0
        %v676 = vadd.f32 %v621, %v675
        %v677 = vpop.f32.mrf.mxu0
        %678 = vdwg.mxu0
        %v679 = vmul.f32 %v673, 0.35355338
        %v680 = vmul.f32 %v676, 0.35355338
        %v681 = vpack.c.bf16 %v680, %v679
        %v682 = vpack.c.bf16 %v676, %v673
        %684 = vrot.lane.b32.xlu0 %v681, 120
        %v685 = vpop.permute.xlu0 %684
        %686 = vrot.lane.b32.xlu0 %v681, 112
        %v687 = vpop.permute.xlu0 %686
        %688 = vrot.lane.b32.xlu0 %v681, 104
        %v689 = vpop.permute.xlu0 %688
        %691 = vrot.lane.b32.xlu0 %v682, 120
        %v692 = vpop.permute.xlu0 %691
        %693 = vrot.lane.b32.xlu0 %v682, 112
        %v694 = vpop.permute.xlu0 %693
        %695 = vrot.lane.b32.xlu0 %v682, 104
        %v696 = vpop.permute.xlu0 %695
        %697 = vrot.lane.b32.xlu0 %v682, 96
        %v698 = vpop.permute.xlu0 %697
        %vm699 = vcmask 64512
        %v701 = vsel %vm699, %v681, 0
        %v704 = vsel %vm699, %v698, 0
        %706 = vmatprep.subr.bf16.mxu0 0
        %707 = vmatpush1.bf16.xpose.msra.mxu0 0
        %708 = vmatprep.subr.bf16.mxu0 0
        %709 = vmatpush1.bf16.xpose.msra.mxu0 0
        %710 = vmatprep.subr.bf16.mxu0 0
        %711 = vmatpush1.bf16.xpose.msra.mxu0 0
        %712 = vmatprep.subr.bf16.mxu0 0
        %713 = vmatpush1.bf16.xpose.msra.mxu0 0
        %714 = vmatprep.subr.bf16.mxu0 0
        %715 = vmatpush1.bf16.xpose.msra.mxu0 0
        %716 = vmatprep.subr.bf16.mxu0 0
        %717 = vmatpush1.bf16.xpose.msra.mxu0 0
        %718 = vmatprep.subr.bf16.mxu0 0
        %719 = vmatpush1.bf16.xpose.msra.mxu0 0
        %720 = vmatprep.subr.bf16.mxu0 0
        %721 = vmatpush1.bf16.xpose.msra.mxu0 %v704
        %722 = vmatprep.subr.bf16.mxu0 0
        %723 = vmatpush2.bf16.xpose.msra.mxu0 0
        %724 = vmatprep.subr.bf16.mxu0 0
        %725 = vmatpush2.bf16.xpose.msra.mxu0 0
        %726 = vmatprep.subr.bf16.mxu0 0
        %727 = vmatpush2.bf16.xpose.msra.mxu0 0
        %728 = vmatprep.subr.bf16.mxu0 0
        %729 = vmatpush2.bf16.xpose.msra.mxu0 0
        %730 = vmatprep.subr.bf16.mxu0 0
        %731 = vmatpush2.bf16.xpose.msra.mxu0 0
        %732 = vmatprep.subr.bf16.mxu0 0
        %733 = vmatpush2.bf16.xpose.msra.mxu0 0
        %734 = vmatprep.subr.bf16.mxu0 0
        %735 = vmatpush2.bf16.xpose.msra.mxu0 0
        %736 = vmatprep.subr.bf16.mxu0 0
        %737 = vmatpush2.bf16.xpose.msra.mxu0 0
        %738 = vmatprep.mubr.bf16.mxu0 0
        %739 = vmatmul.mubr.bf16.gmra.mxu0 %v701
        %v740 = vpop.f32.mrf.mxu0
        %v741 = vadd.f32 0.0, %v740
        %v742 = vpop.f32.mrf.mxu0
        %v743 = vpop.f32.mrf.mxu0
        %v744 = vadd.f32 0.0, %v743
        %v745 = vpop.f32.mrf.mxu0
        %746 = vdwg.mxu0
        %747 = vrot.lane.b32.xlu0 %v692, 96
        %v748 = vpop.permute.xlu0 %747
        %v750 = vsel %vm699, %v685, 0
        %v753 = vsel %vm699, %v748, 0
        %755 = vmatprep.subr.bf16.mxu0 0
        %756 = vmatpush1.bf16.xpose.msra.mxu0 0
        %757 = vmatprep.subr.bf16.mxu0 0
        %758 = vmatpush1.bf16.xpose.msra.mxu0 0
        %759 = vmatprep.subr.bf16.mxu0 0
        %760 = vmatpush1.bf16.xpose.msra.mxu0 0
        %761 = vmatprep.subr.bf16.mxu0 0
        %762 = vmatpush1.bf16.xpose.msra.mxu0 0
        %763 = vmatprep.subr.bf16.mxu0 0
        %764 = vmatpush1.bf16.xpose.msra.mxu0 0
        %765 = vmatprep.subr.bf16.mxu0 0
        %766 = vmatpush1.bf16.xpose.msra.mxu0 0
        %767 = vmatprep.subr.bf16.mxu0 0
        %768 = vmatpush1.bf16.xpose.msra.mxu0 0
        %769 = vmatprep.subr.bf16.mxu0 0
        %770 = vmatpush1.bf16.xpose.msra.mxu0 %v753
        %771 = vmatprep.subr.bf16.mxu0 0
        %772 = vmatpush2.bf16.xpose.msra.mxu0 0
        %773 = vmatprep.subr.bf16.mxu0 0
        %774 = vmatpush2.bf16.xpose.msra.mxu0 0
        %775 = vmatprep.subr.bf16.mxu0 0
        %776 = vmatpush2.bf16.xpose.msra.mxu0 0
        %777 = vmatprep.subr.bf16.mxu0 0
        %778 = vmatpush2.bf16.xpose.msra.mxu0 0
        %779 = vmatprep.subr.bf16.mxu0 0
        %780 = vmatpush2.bf16.xpose.msra.mxu0 0
        %781 = vmatprep.subr.bf16.mxu0 0
        %782 = vmatpush2.bf16.xpose.msra.mxu0 0
        %783 = vmatprep.subr.bf16.mxu0 0
        %784 = vmatpush2.bf16.xpose.msra.mxu0 0
        %785 = vmatprep.subr.bf16.mxu0 0
        %786 = vmatpush2.bf16.xpose.msra.mxu0 0
        %787 = vmatprep.mubr.bf16.mxu0 0
        %788 = vmatmul.mubr.bf16.gmra.mxu0 %v750
        %v789 = vpop.f32.mrf.mxu0
        %v790 = vadd.f32 0.0, %v789
        %v791 = vpop.f32.mrf.mxu0
        %v792 = vpop.f32.mrf.mxu0
        %v793 = vadd.f32 0.0, %v792
        %v794 = vpop.f32.mrf.mxu0
        %795 = vdwg.mxu0
        %796 = vrot.lane.b32.xlu0 %v694, 96
        %v797 = vpop.permute.xlu0 %796
        %v799 = vsel %vm699, %v687, 0
        %v802 = vsel %vm699, %v797, 0
        %804 = vmatprep.subr.bf16.mxu0 0
        %805 = vmatpush1.bf16.xpose.msra.mxu0 0
        %806 = vmatprep.subr.bf16.mxu0 0
        %807 = vmatpush1.bf16.xpose.msra.mxu0 0
        %808 = vmatprep.subr.bf16.mxu0 0
        %809 = vmatpush1.bf16.xpose.msra.mxu0 0
        %810 = vmatprep.subr.bf16.mxu0 0
        %811 = vmatpush1.bf16.xpose.msra.mxu0 0
        %812 = vmatprep.subr.bf16.mxu0 0
        %813 = vmatpush1.bf16.xpose.msra.mxu0 0
        %814 = vmatprep.subr.bf16.mxu0 0
        %815 = vmatpush1.bf16.xpose.msra.mxu0 0
        %816 = vmatprep.subr.bf16.mxu0 0
        %817 = vmatpush1.bf16.xpose.msra.mxu0 0
        %818 = vmatprep.subr.bf16.mxu0 0
        %819 = vmatpush1.bf16.xpose.msra.mxu0 %v802
        %820 = vmatprep.subr.bf16.mxu0 0
        %821 = vmatpush2.bf16.xpose.msra.mxu0 0
        %822 = vmatprep.subr.bf16.mxu0 0
        %823 = vmatpush2.bf16.xpose.msra.mxu0 0
        %824 = vmatprep.subr.bf16.mxu0 0
        %825 = vmatpush2.bf16.xpose.msra.mxu0 0
        %826 = vmatprep.subr.bf16.mxu0 0
        %827 = vmatpush2.bf16.xpose.msra.mxu0 0
        %828 = vmatprep.subr.bf16.mxu0 0
        %829 = vmatpush2.bf16.xpose.msra.mxu0 0
        %830 = vmatprep.subr.bf16.mxu0 0
        %831 = vmatpush2.bf16.xpose.msra.mxu0 0
        %832 = vmatprep.subr.bf16.mxu0 0
        %833 = vmatpush2.bf16.xpose.msra.mxu0 0
        %834 = vmatprep.subr.bf16.mxu0 0
        %835 = vmatpush2.bf16.xpose.msra.mxu0 0
        %836 = vmatprep.mubr.bf16.mxu0 0
        %837 = vmatmul.mubr.bf16.gmra.mxu0 %v799
        %v838 = vpop.f32.mrf.mxu0
        %v839 = vadd.f32 0.0, %v838
        %v840 = vpop.f32.mrf.mxu0
        %v841 = vpop.f32.mrf.mxu0
        %v842 = vadd.f32 0.0, %v841
        %v843 = vpop.f32.mrf.mxu0
        %844 = vdwg.mxu0
        %845 = vrot.lane.b32.xlu0 %v696, 96
        %v846 = vpop.permute.xlu0 %845
        %v848 = vsel %vm699, %v689, 0
        %v851 = vsel %vm699, %v846, 0
        %853 = vmatprep.subr.bf16.mxu0 0
        %854 = vmatpush1.bf16.xpose.msra.mxu0 0
        %855 = vmatprep.subr.bf16.mxu0 0
        %856 = vmatpush1.bf16.xpose.msra.mxu0 0
        %857 = vmatprep.subr.bf16.mxu0 0
        %858 = vmatpush1.bf16.xpose.msra.mxu0 0
        %859 = vmatprep.subr.bf16.mxu0 0
        %860 = vmatpush1.bf16.xpose.msra.mxu0 0
        %861 = vmatprep.subr.bf16.mxu0 0
        %862 = vmatpush1.bf16.xpose.msra.mxu0 0
        %863 = vmatprep.subr.bf16.mxu0 0
        %864 = vmatpush1.bf16.xpose.msra.mxu0 0
        %865 = vmatprep.subr.bf16.mxu0 0
        %866 = vmatpush1.bf16.xpose.msra.mxu0 0
        %867 = vmatprep.subr.bf16.mxu0 0
        %868 = vmatpush1.bf16.xpose.msra.mxu0 %v851
        %869 = vmatprep.subr.bf16.mxu0 0
        %870 = vmatpush2.bf16.xpose.msra.mxu0 0
        %871 = vmatprep.subr.bf16.mxu0 0
        %872 = vmatpush2.bf16.xpose.msra.mxu0 0
        %873 = vmatprep.subr.bf16.mxu0 0
        %874 = vmatpush2.bf16.xpose.msra.mxu0 0
        %875 = vmatprep.subr.bf16.mxu0 0
        %876 = vmatpush2.bf16.xpose.msra.mxu0 0
        %877 = vmatprep.subr.bf16.mxu0 0
        %878 = vmatpush2.bf16.xpose.msra.mxu0 0
        %879 = vmatprep.subr.bf16.mxu0 0
        %880 = vmatpush2.bf16.xpose.msra.mxu0 0
        %881 = vmatprep.subr.bf16.mxu0 0
        %882 = vmatpush2.bf16.xpose.msra.mxu0 0
        %883 = vmatprep.subr.bf16.mxu0 0
        %884 = vmatpush2.bf16.xpose.msra.mxu0 0
        %885 = vmatprep.mubr.bf16.mxu0 0
        %886 = vmatmul.mubr.bf16.gmra.mxu0 %v848
        %v887 = vpop.f32.mrf.mxu0
        %v888 = vadd.f32 0.0, %v887
        %v889 = vpop.f32.mrf.mxu0
        %v890 = vpop.f32.mrf.mxu0
        %v891 = vadd.f32 0.0, %v890
        %v892 = vpop.f32.mrf.mxu0
        %893 = vdwg.mxu0
        %v894 = vlaneseq
        %v895 = vand.u32 %v894, 127
        %vm896 = vcmp.lt.s32.totalorder %v895, 12
        %v897 = vsel %vm896, 1, 0
        %vm898 = vcmp.eq.s32.totalorder %v897, 1
        %v899 = vsel %vm898, %v741, -1e+30
        %v900 = vsel %vm898, %v744, -1e+30
        %v901 = vsel %vm898, %v790, -1e+30
        %v902 = vsel %vm898, %v793, -1e+30
        %v903 = vsel %vm898, %v839, -1e+30
        %v904 = vsel %vm898, %v842, -1e+30
        %v905 = vsel %vm898, %v888, -1e+30
        %v906 = vsel %vm898, %v891, -1e+30
        %vm907 = vcmask 130048
        %v908 = vsel %vm907, %v899, -inf
        %909 = vmax.xlane.f32.xlu0 %v908
        %v910 = vpop.xlane.xlu0 %909
        %v911 = vsel %vm907, %v900, -inf
        %912 = vmax.xlane.f32.xlu0 %v911
        %v913 = vpop.xlane.xlu0 %912
        %v914 = vsel %vm907, %v901, -inf
        %915 = vmax.xlane.f32.xlu0 %v914
        %v916 = vpop.xlane.xlu0 %915
        %v917 = vsel %vm907, %v902, -inf
        %918 = vmax.xlane.f32.xlu0 %v917
        %v919 = vpop.xlane.xlu0 %918
        %v920 = vsel %vm907, %v903, -inf
        %921 = vmax.xlane.f32.xlu0 %v920
        %v922 = vpop.xlane.xlu0 %921
        %v923 = vsel %vm907, %v904, -inf
        %924 = vmax.xlane.f32.xlu0 %v923
        %v925 = vpop.xlane.xlu0 %924
        %v926 = vsel %vm907, %v905, -inf
        %927 = vmax.xlane.f32.xlu0 %v926
        %v928 = vpop.xlane.xlu0 %927
        %v929 = vsel %vm907, %v906, -inf
        %930 = vmax.xlane.f32.xlu0 %v929
        %v931 = vpop.xlane.xlu0 %930
        %v932 = vsub.f32 %v899, %v910
        %v933 = vsub.f32 %v900, %v913
        %v934 = vsub.f32 %v901, %v916
        %v935 = vsub.f32 %v902, %v919
        %v936 = vsub.f32 %v903, %v922
        %v937 = vsub.f32 %v904, %v925
        %v938 = vsub.f32 %v905, %v928
        %v939 = vsub.f32 %v906, %v931
        %v940 = vmul.f32 %v932, 1.442695
        %v941 = vpow.pop %v940
        %v942 = vmul.f32 %v933, 1.442695
        %v943 = vpow.pop %v942
        %v944 = vmul.f32 %v934, 1.442695
        %v945 = vpow.pop %v944
        %v946 = vmul.f32 %v935, 1.442695
        %v947 = vpow.pop %v946
        %v948 = vmul.f32 %v936, 1.442695
        %v949 = vpow.pop %v948
        %v950 = vmul.f32 %v937, 1.442695
        %v951 = vpow.pop %v950
        %v952 = vmul.f32 %v938, 1.442695
        %v953 = vpow.pop %v952
        %v954 = vmul.f32 %v939, 1.442695
        %v955 = vpow.pop %v954
        %v956 = vsel %vm907, %v941, 0.0
        %957 = vadd.xlane.f32.xlu0 %v956
        %v958 = vpop.xlane.xlu0 %957
        %v959 = vsel %vm907, %v943, 0.0
        %960 = vadd.xlane.f32.xlu0 %v959
        %v961 = vpop.xlane.xlu0 %960
        %v962 = vsel %vm907, %v945, 0.0
        %963 = vadd.xlane.f32.xlu0 %v962
        %v964 = vpop.xlane.xlu0 %963
        %v965 = vsel %vm907, %v947, 0.0
        %966 = vadd.xlane.f32.xlu0 %v965
        %v967 = vpop.xlane.xlu0 %966
        %v968 = vsel %vm907, %v949, 0.0
        %969 = vadd.xlane.f32.xlu0 %v968
        %v970 = vpop.xlane.xlu0 %969
        %v971 = vsel %vm907, %v951, 0.0
        %972 = vadd.xlane.f32.xlu0 %v971
        %v973 = vpop.xlane.xlu0 %972
        %v974 = vsel %vm907, %v953, 0.0
        %975 = vadd.xlane.f32.xlu0 %v974
        %v976 = vpop.xlane.xlu0 %975
        %v977 = vsel %vm907, %v955, 0.0
        %978 = vadd.xlane.f32.xlu0 %v977
        %v979 = vpop.xlane.xlu0 %978
        %v980 = vrcp.pop %v958
        %v981 = vrcp.pop %v961
        %v982 = vrcp.pop %v964
        %v983 = vrcp.pop %v967
        %v984 = vrcp.pop %v970
        %v985 = vrcp.pop %v973
        %v986 = vrcp.pop %v976
        %v987 = vrcp.pop %v979
        %v988 = vmul.f32 %v941, %v980
        %v989 = vmul.f32 %v943, %v981
        %v990 = vmul.f32 %v945, %v982
        %v991 = vmul.f32 %v947, %v983
        %v992 = vmul.f32 %v949, %v984
        %v993 = vmul.f32 %v951, %v985
        %v994 = vmul.f32 %v953, %v986
        %v995 = vmul.f32 %v955, %v987
        %996 = vst.msk [vmem:[%s554] sm:$0xff] %vm907, %v988
        %997 = vst.msk [vmem:[%s554 + $0x8] sm:$0xff] %vm907, %v989
        %998 = vst.msk [vmem:[%s554 + $0x10] sm:$0xff] %vm907, %v990
        %999 = vst.msk [vmem:[%s554 + $0x18] sm:$0xff] %vm907, %v991
        %1000 = vst.msk [vmem:[%s554 + $0x20] sm:$0xff] %vm907, %v992
        %1001 = vst.msk [vmem:[%s554 + $0x28] sm:$0xff] %vm907, %v993
        %1002 = vst.msk [vmem:[%s554 + $0x30] sm:$0xff] %vm907, %v994
        %1003 = vst.msk [vmem:[%s554 + $0x38] sm:$0xff] %vm907, %v995
        %v1004 = vpack.c.bf16 %v989, %v988
        %v1005 = vpack.c.bf16 %v991, %v990
        %v1006 = vpack.c.bf16 %v993, %v992
        %v1007 = vpack.c.bf16 %v995, %v994
        %1008 = vrot.lane.b32.xlu0 %v682, 64
        %v1009 = vpop.permute.xlu0 %1008
        %v1012 = vsel %vm907, %v1004, 0
        %1014 = vmatprep.subr.bf16.mxu0 0
        %1015 = vmatpush1.bf16.msra.mxu0 0
        %1016 = vmatprep.subr.bf16.mxu0 0
        %1017 = vmatpush1.bf16.msra.mxu0 0
        %1018 = vmatprep.subr.bf16.mxu0 0
        %1019 = vmatpush1.bf16.msra.mxu0 0
        %1020 = vmatprep.subr.bf16.mxu0 0
        %1021 = vmatpush1.bf16.msra.mxu0 0
        %1022 = vmatprep.subr.bf16.mxu0 0
        %1023 = vmatpush1.bf16.msra.mxu0 0
        %1024 = vmatprep.subr.bf16.mxu0 0
        %1025 = vmatpush1.bf16.msra.mxu0 0
        %1026 = vmatprep.subr.bf16.mxu0 0
        %1027 = vmatpush1.bf16.msra.mxu0 0
        %1028 = vmatprep.subr.bf16.mxu0 0
        %1029 = vmatpush1.bf16.msra.mxu0 %v1009
        %1030 = vmatprep.subr.bf16.mxu0 0
        %1031 = vmatpush2.bf16.msra.mxu0 0
        %1032 = vmatprep.subr.bf16.mxu0 0
        %1033 = vmatpush2.bf16.msra.mxu0 0
        %1034 = vmatprep.subr.bf16.mxu0 0
        %1035 = vmatpush2.bf16.msra.mxu0 0
        %1036 = vmatprep.subr.bf16.mxu0 0
        %1037 = vmatpush2.bf16.msra.mxu0 0
        %1038 = vmatprep.subr.bf16.mxu0 0
        %1039 = vmatpush2.bf16.msra.mxu0 0
        %1040 = vmatprep.subr.bf16.mxu0 0
        %1041 = vmatpush2.bf16.msra.mxu0 0
        %1042 = vmatprep.subr.bf16.mxu0 0
        %1043 = vmatpush2.bf16.msra.mxu0 0
        %1044 = vmatprep.subr.bf16.mxu0 0
        %1045 = vmatpush2.bf16.msra.mxu0 0
        %1046 = vmatprep.mubr.bf16.mxu0 0
        %1047 = vmatmul.mubr.bf16.gmra.mxu0 %v1012
        %v1048 = vpop.f32.mrf.mxu0
        %v1049 = vadd.f32 0.0, %v1048
        %v1050 = vpop.f32.mrf.mxu0
        %v1051 = vpop.f32.mrf.mxu0
        %v1052 = vadd.f32 0.0, %v1051
        %v1053 = vpop.f32.mrf.mxu0
        %1054 = vdwg.mxu0
        %1055 = vrot.lane.b32.xlu0 %v692, 64
        %v1056 = vpop.permute.xlu0 %1055
        %v1059 = vsel %vm907, %v1005, 0
        %1061 = vmatprep.subr.bf16.mxu0 0
        %1062 = vmatpush1.bf16.msra.mxu0 0
        %1063 = vmatprep.subr.bf16.mxu0 0
        %1064 = vmatpush1.bf16.msra.mxu0 0
        %1065 = vmatprep.subr.bf16.mxu0 0
        %1066 = vmatpush1.bf16.msra.mxu0 0
        %1067 = vmatprep.subr.bf16.mxu0 0
        %1068 = vmatpush1.bf16.msra.mxu0 0
        %1069 = vmatprep.subr.bf16.mxu0 0
        %1070 = vmatpush1.bf16.msra.mxu0 0
        %1071 = vmatprep.subr.bf16.mxu0 0
        %1072 = vmatpush1.bf16.msra.mxu0 0
        %1073 = vmatprep.subr.bf16.mxu0 0
        %1074 = vmatpush1.bf16.msra.mxu0 0
        %1075 = vmatprep.subr.bf16.mxu0 0
        %1076 = vmatpush1.bf16.msra.mxu0 %v1056
        %1077 = vmatprep.subr.bf16.mxu0 0
        %1078 = vmatpush2.bf16.msra.mxu0 0
        %1079 = vmatprep.subr.bf16.mxu0 0
        %1080 = vmatpush2.bf16.msra.mxu0 0
        %1081 = vmatprep.subr.bf16.mxu0 0
        %1082 = vmatpush2.bf16.msra.mxu0 0
        %1083 = vmatprep.subr.bf16.mxu0 0
        %1084 = vmatpush2.bf16.msra.mxu0 0
        %1085 = vmatprep.subr.bf16.mxu0 0
        %1086 = vmatpush2.bf16.msra.mxu0 0
        %1087 = vmatprep.subr.bf16.mxu0 0
        %1088 = vmatpush2.bf16.msra.mxu0 0
        %1089 = vmatprep.subr.bf16.mxu0 0
        %1090 = vmatpush2.bf16.msra.mxu0 0
        %1091 = vmatprep.subr.bf16.mxu0 0
        %1092 = vmatpush2.bf16.msra.mxu0 0
        %1093 = vmatprep.mubr.bf16.mxu0 0
        %1094 = vmatmul.mubr.bf16.gmra.mxu0 %v1059
        %v1095 = vpop.f32.mrf.mxu0
        %v1096 = vadd.f32 0.0, %v1095
        %v1097 = vpop.f32.mrf.mxu0
        %v1098 = vpop.f32.mrf.mxu0
        %v1099 = vadd.f32 0.0, %v1098
        %v1100 = vpop.f32.mrf.mxu0
        %1101 = vdwg.mxu0
        %1102 = vrot.lane.b32.xlu0 %v694, 64
        %v1103 = vpop.permute.xlu0 %1102
        %v1106 = vsel %vm907, %v1006, 0
        %1108 = vmatprep.subr.bf16.mxu0 0
        %1109 = vmatpush1.bf16.msra.mxu0 0
        %1110 = vmatprep.subr.bf16.mxu0 0
        %1111 = vmatpush1.bf16.msra.mxu0 0
        %1112 = vmatprep.subr.bf16.mxu0 0
        %1113 = vmatpush1.bf16.msra.mxu0 0
        %1114 = vmatprep.subr.bf16.mxu0 0
        %1115 = vmatpush1.bf16.msra.mxu0 0
        %1116 = vmatprep.subr.bf16.mxu0 0
        %1117 = vmatpush1.bf16.msra.mxu0 0
        %1118 = vmatprep.subr.bf16.mxu0 0
        %1119 = vmatpush1.bf16.msra.mxu0 0
        %1120 = vmatprep.subr.bf16.mxu0 0
        %1121 = vmatpush1.bf16.msra.mxu0 0
        %1122 = vmatprep.subr.bf16.mxu0 0
        %1123 = vmatpush1.bf16.msra.mxu0 %v1103
        %1124 = vmatprep.subr.bf16.mxu0 0
        %1125 = vmatpush2.bf16.msra.mxu0 0
        %1126 = vmatprep.subr.bf16.mxu0 0
        %1127 = vmatpush2.bf16.msra.mxu0 0
        %1128 = vmatprep.subr.bf16.mxu0 0
        %1129 = vmatpush2.bf16.msra.mxu0 0
        %1130 = vmatprep.subr.bf16.mxu0 0
        %1131 = vmatpush2.bf16.msra.mxu0 0
        %1132 = vmatprep.subr.bf16.mxu0 0
        %1133 = vmatpush2.bf16.msra.mxu0 0
        %1134 = vmatprep.subr.bf16.mxu0 0
        %1135 = vmatpush2.bf16.msra.mxu0 0
        %1136 = vmatprep.subr.bf16.mxu0 0
        %1137 = vmatpush2.bf16.msra.mxu0 0
        %1138 = vmatprep.subr.bf16.mxu0 0
        %1139 = vmatpush2.bf16.msra.mxu0 0
        %1140 = vmatprep.mubr.bf16.mxu0 0
        %1141 = vmatmul.mubr.bf16.gmra.mxu0 %v1106
        %v1142 = vpop.f32.mrf.mxu0
        %v1143 = vadd.f32 0.0, %v1142
        %v1144 = vpop.f32.mrf.mxu0
        %v1145 = vpop.f32.mrf.mxu0
        %v1146 = vadd.f32 0.0, %v1145
        %v1147 = vpop.f32.mrf.mxu0
        %1148 = vdwg.mxu0
        %1149 = vrot.lane.b32.xlu0 %v696, 64
        %v1150 = vpop.permute.xlu0 %1149
        %v1153 = vsel %vm907, %v1007, 0
        %1155 = vmatprep.subr.bf16.mxu0 0
        %1156 = vmatpush1.bf16.msra.mxu0 0
        %1157 = vmatprep.subr.bf16.mxu0 0
        %1158 = vmatpush1.bf16.msra.mxu0 0
        %1159 = vmatprep.subr.bf16.mxu0 0
        %1160 = vmatpush1.bf16.msra.mxu0 0
        %1161 = vmatprep.subr.bf16.mxu0 0
        %1162 = vmatpush1.bf16.msra.mxu0 0
        %1163 = vmatprep.subr.bf16.mxu0 0
        %1164 = vmatpush1.bf16.msra.mxu0 0
        %1165 = vmatprep.subr.bf16.mxu0 0
        %1166 = vmatpush1.bf16.msra.mxu0 0
        %1167 = vmatprep.subr.bf16.mxu0 0
        %1168 = vmatpush1.bf16.msra.mxu0 0
        %1169 = vmatprep.subr.bf16.mxu0 0
        %1170 = vmatpush1.bf16.msra.mxu0 %v1150
        %1171 = vmatprep.subr.bf16.mxu0 0
        %1172 = vmatpush2.bf16.msra.mxu0 0
        %1173 = vmatprep.subr.bf16.mxu0 0
        %1174 = vmatpush2.bf16.msra.mxu0 0
        %1175 = vmatprep.subr.bf16.mxu0 0
        %1176 = vmatpush2.bf16.msra.mxu0 0
        %1177 = vmatprep.subr.bf16.mxu0 0
        %1178 = vmatpush2.bf16.msra.mxu0 0
        %1179 = vmatprep.subr.bf16.mxu0 0
        %1180 = vmatpush2.bf16.msra.mxu0 0
        %1181 = vmatprep.subr.bf16.mxu0 0
        %1182 = vmatpush2.bf16.msra.mxu0 0
        %1183 = vmatprep.subr.bf16.mxu0 0
        %1184 = vmatpush2.bf16.msra.mxu0 0
        %1185 = vmatprep.subr.bf16.mxu0 0
        %1186 = vmatpush2.bf16.msra.mxu0 0
        %1187 = vmatprep.mubr.bf16.mxu0 0
        %1188 = vmatmul.mubr.bf16.gmra.mxu0 %v1153
        %v1189 = vpop.f32.mrf.mxu0
        %v1190 = vadd.f32 0.0, %v1189
        %v1191 = vpop.f32.mrf.mxu0
        %v1192 = vpop.f32.mrf.mxu0
        %v1193 = vadd.f32 0.0, %v1192
        %v1194 = vpop.f32.mrf.mxu0
        %1195 = vdwg.mxu0
        %v1196 = vpack.c.bf16 %v1052, %v1049
        %v1197 = vpack.c.bf16 %v1099, %v1096
        %v1198 = vpack.c.bf16 %v1146, %v1143
        %v1199 = vpack.c.bf16 %v1193, %v1190
        %1201 = vrot.lane.b32.xlu0 %v1197, 8
        %v1202 = vpop.permute.xlu0 %1201
        %1204 = vrot.lane.b32.xlu0 %v1198, 16
        %v1205 = vpop.permute.xlu0 %1204
        %1207 = vrot.lane.b32.xlu0 %v1199, 24
        %v1208 = vpop.permute.xlu0 %1207
        %v1211 = vsel %vm699, %v1196, %v1202
        %v1213 = vsel %vm907, %v1211, %v1205
        %vm1214 = vcmask 195584
        %v1216 = vsel %vm1214, %v1213, %v1208
        %v1217 = vld [vmem:[#allocation2] sm:$0xf]
        %v1218 = vld [vmem:[#allocation2 + $0x4] sm:$0xf]
        %v1219 = vld [vmem:[#allocation2 + $0x8] sm:$0xf]
        %v1220 = vld [vmem:[#allocation2 + $0xc] sm:$0xf]
        %v1221 = vld [vmem:[%s6] sm:$0x1]
        %v1223 = vlaneseq
        %v1224 = vshrl.u32 %v1223, 7
        %v1225 = vsub.s32 0, %v1224
        %v1226 = vrot.slane %v1221, %v1225
        %v1232 = vunpack.c.l.b16 %v1217
        %v1233 = vunpack.c.l.b16 %v1218
        %v1234 = vunpack.c.l.b16 %v1219
        %v1235 = vunpack.c.l.b16 %v1220
        %v1236 = vpack.c.b16 %v1233, %v1232
        %v1237 = vpack.c.b16 %v1235, %v1234
        %v1240 = vsel %vm568, %v1216, 0
        %1242 = vmatprep.subr.bf16.mxu0 0
        %1243 = vmatpush1.bf16.msra.mxu0 0
        %1244 = vmatprep.subr.bf16.mxu0 0
        %1245 = vmatpush1.bf16.msra.mxu0 0
        %1246 = vmatprep.subr.bf16.mxu0 0
        %1247 = vmatpush1.bf16.msra.mxu0 0
        %1248 = vmatprep.subr.bf16.mxu0 0
        %1249 = vmatpush1.bf16.msra.mxu0 0
        %1250 = vmatprep.subr.bf16.mxu0 0
        %1251 = vmatpush1.bf16.msra.mxu0 0
        %1252 = vmatprep.subr.bf16.mxu0 0
        %1253 = vmatpush1.bf16.msra.mxu0 0
        %1254 = vmatprep.subr.bf16.mxu0 0
        %1255 = vmatpush1.bf16.msra.mxu0 %v1237
        %1256 = vmatprep.subr.bf16.mxu0 0
        %1257 = vmatpush1.bf16.msra.mxu0 %v1236
        %1258 = vmatprep.subr.bf16.mxu0 0
        %1259 = vmatpush2.bf16.msra.mxu0 0
        %1260 = vmatprep.subr.bf16.mxu0 0
        %1261 = vmatpush2.bf16.msra.mxu0 0
        %1262 = vmatprep.subr.bf16.mxu0 0
        %1263 = vmatpush2.bf16.msra.mxu0 0
        %1264 = vmatprep.subr.bf16.mxu0 0
        %1265 = vmatpush2.bf16.msra.mxu0 0
        %1266 = vmatprep.subr.bf16.mxu0 0
        %1267 = vmatpush2.bf16.msra.mxu0 0
        %1268 = vmatprep.subr.bf16.mxu0 0
        %1269 = vmatpush2.bf16.msra.mxu0 0
        %1270 = vmatprep.subr.bf16.mxu0 0
        %1271 = vmatpush2.bf16.msra.mxu0 0
        %1272 = vmatprep.subr.bf16.mxu0 0
        %1273 = vmatpush2.bf16.msra.mxu0 0
        %1274 = vmatprep.mubr.bf16.mxu0 0
        %1275 = vmatmul.mubr.bf16.gmra.mxu0 %v1240
        %v1276 = vpop.f32.mrf.mxu0
        %v1277 = vadd.f32 %v1226, %v1276
        %v1278 = vpop.f32.mrf.mxu0
        %v1279 = vpop.f32.mrf.mxu0
        %v1280 = vadd.f32 %v1226, %v1279
        %v1281 = vpop.f32.mrf.mxu0
        %1282 = vdwg.mxu0
        %v1283 = vadd.f32 %v563, %v1277
        %v1284 = vadd.f32 %v564, %v1280
        %v1285 = vld [vmem:[#allocation5] sm:$0x1]
        %v1286 = vld [vmem:[#allocation7] sm:$0x1]
        %v1287 = vsel %vm568, %v1283, 0.0
        %1288 = vadd.xlane.f32.xlu0 %v1287
        %v1289 = vpop.xlane.xlu0 %1288
        %v1290 = vsel %vm568, %v1284, 0.0
        %1291 = vadd.xlane.f32.xlu0 %v1290
        %v1292 = vpop.xlane.xlu0 %1291
        %v1293 = vmul.f32 %v1289, %v575
        %v1294 = vmul.f32 %v1292, %v575
        %v1295 = vsub.f32 %v1283, %v1293
        %v1296 = vsub.f32 %v1284, %v1294
        %v1297 = vmul.f32 %v1295, %v1295
        %v1298 = vmul.f32 %v1296, %v1296
        %v1299 = vsel %vm568, %v1297, 0.0
        %1300 = vadd.xlane.f32.xlu0 %v1299
        %v1301 = vpop.xlane.xlu0 %1300
        %v1302 = vsel %vm568, %v1298, 0.0
        %1303 = vadd.xlane.f32.xlu0 %v1302
        %v1304 = vpop.xlane.xlu0 %1303
        %v1305 = vmul.f32 %v1301, %v575
        %v1306 = vmul.f32 %v1304, %v575
        %v1307 = vadd.f32 %v1305, 1e-05
        %v1308 = vadd.f32 %v1306, 1e-05
        %v1309 = vrsqrt.pop %v1307
        %v1310 = vrsqrt.pop %v1308
        %v1311 = vmul.f32 %v1295, %v1309
        %v1312 = vmul.f32 %v1296, %v1310
        %v1314 = vlaneseq
        %v1315 = vshrl.u32 %v1314, 7
        %v1316 = vsub.s32 0, %v1315
        %v1317 = vrot.slane %v1285, %v1316
        %v1319 = vmul.f32 %v1311, %v1317
        %v1320 = vmul.f32 %v1312, %v1317
        %v1322 = vlaneseq
        %v1323 = vshrl.u32 %v1322, 7
        %v1324 = vsub.s32 0, %v1323
        %v1325 = vrot.slane %v1286, %v1324
        %v1327 = vadd.f32 %v1319, %v1325
        %v1328 = vadd.f32 %v1320, %v1325
        %v1329 = vpack.c.bf16 %v1328, %v1327
        %v1330 = vld [vmem:[#allocation8] sm:$0xf]
        %v1331 = vld [vmem:[#allocation8 + $0x4] sm:$0xf]
        %v1332 = vld [vmem:[#allocation8 + $0x8] sm:$0xf]
        %v1333 = vld [vmem:[#allocation8 + $0xc] sm:$0xf]
        %v1334 = vld [vmem:[#allocation10] sm:$0x1]
        %v1336 = vlaneseq
        %v1337 = vshrl.u32 %v1336, 7
        %v1338 = vsub.s32 0, %v1337
        %v1339 = vrot.slane %v1334, %v1338
        %v1345 = vunpack.c.l.b16 %v1330
        %v1346 = vunpack.c.l.b16 %v1331
        %v1347 = vunpack.c.l.b16 %v1332
        %v1348 = vunpack.c.l.b16 %v1333
        %v1349 = vpack.c.b16 %v1346, %v1345
        %v1350 = vpack.c.b16 %v1348, %v1347
        %v1354 = vsel %vm568, %v1329, 0
        %1356 = vmatprep.subr.bf16.mxu0 0
        %1357 = vmatpush1.bf16.msra.mxu0 0
        %1358 = vmatprep.subr.bf16.mxu0 0
        %1359 = vmatpush1.bf16.msra.mxu0 0
        %1360 = vmatprep.subr.bf16.mxu0 0
        %1361 = vmatpush1.bf16.msra.mxu0 0
        %1362 = vmatprep.subr.bf16.mxu0 0
        %1363 = vmatpush1.bf16.msra.mxu0 0
        %1364 = vmatprep.subr.bf16.mxu0 0
        %1365 = vmatpush1.bf16.msra.mxu0 0
        %1366 = vmatprep.subr.bf16.mxu0 0
        %1367 = vmatpush1.bf16.msra.mxu0 0
        %1368 = vmatprep.subr.bf16.mxu0 0
        %1369 = vmatpush1.bf16.msra.mxu0 %v1350
        %1370 = vmatprep.subr.bf16.mxu0 0
        %1371 = vmatpush1.bf16.msra.mxu0 %v1349
        %1372 = vmatprep.subr.bf16.mxu0 0
        %1373 = vmatpush2.bf16.msra.mxu0 0
        %1374 = vmatprep.subr.bf16.mxu0 0
        %1375 = vmatpush2.bf16.msra.mxu0 0
        %1376 = vmatprep.subr.bf16.mxu0 0
        %1377 = vmatpush2.bf16.msra.mxu0 0
        %1378 = vmatprep.subr.bf16.mxu0 0
        %1379 = vmatpush2.bf16.msra.mxu0 0
        %1380 = vmatprep.subr.bf16.mxu0 0
        %1381 = vmatpush2.bf16.msra.mxu0 0
        %1382 = vmatprep.subr.bf16.mxu0 0
        %1383 = vmatpush2.bf16.msra.mxu0 0
        %1384 = vmatprep.subr.bf16.mxu0 0
        %1385 = vmatpush2.bf16.msra.mxu0 0
        %1386 = vmatprep.subr.bf16.mxu0 0
        %1387 = vmatpush2.bf16.msra.mxu0 0
        %1388 = vmatprep.mubr.bf16.mxu0 0
        %1389 = vmatmul.mubr.bf16.gmra.mxu0 %v1354
        %v1390 = vpop.f32.mrf.mxu0
        %v1391 = vadd.f32 %v1339, %v1390
        %v1392 = vpop.f32.mrf.mxu0
        %v1393 = vpop.f32.mrf.mxu0
        %v1394 = vadd.f32 %v1339, %v1393
        %v1395 = vpop.f32.mrf.mxu0
        %1396 = vdwg.mxu0
        %v1397 = vmul.f32 %v1391, 0.5
        %v1398 = vmul.f32 %v1394, 0.5
        %v1399 = vmul.f32 %v1391, 0.044715
        %v1400 = vmul.f32 %v1394, 0.044715
        %v1401 = vmul.f32 %v1399, %v1391
        %v1402 = vmul.f32 %v1400, %v1394
        %v1403 = vmul.f32 %v1401, %v1391
        %v1404 = vmul.f32 %v1402, %v1394
        %v1405 = vadd.f32 %v1391, %v1403
        %v1406 = vadd.f32 %v1394, %v1404
        %v1407 = vmul.f32 %v1405, 0.7978846
        %v1408 = vmul.f32 %v1406, 0.7978846
        %v1409 = vtanh.pop %v1407
        %v1410 = vtanh.pop %v1408
        %v1411 = vadd.f32 %v1409, 1.0
        %v1412 = vadd.f32 %v1410, 1.0
        %v1413 = vmul.f32 %v1397, %v1411
        %v1414 = vmul.f32 %v1398, %v1412
        %v1415 = vpack.c.bf16 %v1414, %v1413
        %v1416 = vld [vmem:[%s11] sm:$0xf]
        %v1417 = vld [vmem:[%s11 + $0x4] sm:$0xf]
        %v1418 = vld [vmem:[%s11 + $0x8] sm:$0xf]
        %v1419 = vld [vmem:[%s11 + $0xc] sm:$0xf]
        %v1420 = vld [vmem:[%s11 + $0x10] sm:$0xf]
        %v1421 = vld [vmem:[%s11 + $0x14] sm:$0xf]
        %v1422 = vld [vmem:[%s11 + $0x18] sm:$0xf]
        %v1423 = vld [vmem:[%s11 + $0x1c] sm:$0xf]
        %v1424 = vld [vmem:[%s12] sm:$0x1]
        %v1426 = vlaneseq
        %v1427 = vshrl.u32 %v1426, 7
        %v1428 = vsub.s32 0, %v1427
        %v1429 = vrot.slane %v1424, %v1428
        %v1439 = vunpack.c.l.b16 %v1416
        %v1440 = vunpack.c.l.b16 %v1417
        %v1441 = vunpack.c.l.b16 %v1418
        %v1442 = vunpack.c.l.b16 %v1419
        %v1443 = vunpack.c.l.b16 %v1420
        %v1444 = vunpack.c.l.b16 %v1421
        %v1445 = vunpack.c.l.b16 %v1422
        %v1446 = vunpack.c.l.b16 %v1423
        %v1447 = vpack.c.b16 %v1440, %v1439
        %v1448 = vpack.c.b16 %v1442, %v1441
        %v1449 = vpack.c.b16 %v1444, %v1443
        %v1450 = vpack.c.b16 %v1446, %v1445
        %vm1455 = vcmask 523264
        %v1457 = vsel %vm1455, %v1415, 0
        %1459 = vmatprep.subr.bf16.mxu0 0
        %1460 = vmatpush1.bf16.msra.mxu0 0
        %1461 = vmatprep.subr.bf16.mxu0 0
        %1462 = vmatpush1.bf16.msra.mxu0 0
        %1463 = vmatprep.subr.bf16.mxu0 0
        %1464 = vmatpush1.bf16.msra.mxu0 0
        %1465 = vmatprep.subr.bf16.mxu0 0
        %1466 = vmatpush1.bf16.msra.mxu0 0
        %1467 = vmatprep.subr.bf16.mxu0 0
        %1468 = vmatpush1.bf16.msra.mxu0 %v1450
        %1469 = vmatprep.subr.bf16.mxu0 0
        %1470 = vmatpush1.bf16.msra.mxu0 %v1449
        %1471 = vmatprep.subr.bf16.mxu0 0
        %1472 = vmatpush1.bf16.msra.mxu0 %v1448
        %1473 = vmatprep.subr.bf16.mxu0 0
        %1474 = vmatpush1.bf16.msra.mxu0 %v1447
        %1475 = vmatprep.subr.bf16.mxu0 0
        %1476 = vmatpush2.bf16.msra.mxu0 0
        %1477 = vmatprep.subr.bf16.mxu0 0
        %1478 = vmatpush2.bf16.msra.mxu0 0
        %1479 = vmatprep.subr.bf16.mxu0 0
        %1480 = vmatpush2.bf16.msra.mxu0 0
        %1481 = vmatprep.subr.bf16.mxu0 0
        %1482 = vmatpush2.bf16.msra.mxu0 0
        %1483 = vmatprep.subr.bf16.mxu0 0
        %1484 = vmatpush2.bf16.msra.mxu0 0
        %1485 = vmatprep.subr.bf16.mxu0 0
        %1486 = vmatpush2.bf16.msra.mxu0 0
        %1487 = vmatprep.subr.bf16.mxu0 0
        %1488 = vmatpush2.bf16.msra.mxu0 0
        %1489 = vmatprep.subr.bf16.mxu0 0
        %1490 = vmatpush2.bf16.msra.mxu0 0
        %1491 = vmatprep.mubr.bf16.mxu0 0
        %1492 = vmatmul.mubr.bf16.gmra.mxu0 %v1457
        %v1493 = vpop.f32.mrf.mxu0
        %v1494 = vadd.f32 %v1429, %v1493
        %v1495 = vpop.f32.mrf.mxu0
        %v1496 = vpop.f32.mrf.mxu0
        %v1497 = vadd.f32 %v1429, %v1496
        %v1498 = vpop.f32.mrf.mxu0
        %1499 = vdwg.mxu0
        %v1500 = vadd.f32 %v1283, %v1494
        %v1501 = vadd.f32 %v1284, %v1497
        %1502 = vst.msk [vmem:[%s547] sm:$0xff] %vm568, %v1500
        %1503 = vst.msk [vmem:[%s547 + $0x8] sm:$0xff] %vm568, %v1501
        %s1504 = sand.u32 %s335, 1
        %s1505 = scalar_lea.sflag [#allocation4], %s1504
        %s1506 = sand.u32 %s335, 1
        %s1507 = smul.addr %s1506, 16
        %s1508 = scalar_lea.vmem [#allocation11], %s1507
        %s1509 = sand.u32 %s363, 1
        %s1510 = scalar_lea.sflag [#allocation13], %s1509
        %s1511 = sand.u32 %s363, 1
        %s1512 = smul.addr %s1511, 64
        %s1513 = scalar_lea.vmem [#allocation12], %s1512
        // Predicated region
        $region93: #{tpu_custom_call.1} parent=71 // pred_check
          %p1514 = pneg %p345
        $region94: #{tpu_custom_call.1} parent=71 // pred_check_branch
          %1516 = sbr.rel (%p1514) target = $region96
        $region95: #{tpu_custom_call.1} parent=71 // pred_region
          %s1517 = smul.u32 2, %s40
          %s1519 = ssub.s32 256, 256
          %1520 = vsyncadd %s1505, %s1519
          %s1521 = smul.addr %s39, 2
          %s1522 = sadd.s32 %s1517, %s1521
          %s1523 = smul.addr %s1522, 128
          %s1524 = scalar_lea.hbm %s13, %s1523
          %s1525 = sshll.u32 %s1508, 4
          %s1526 = int_to_ptr.vmem [resolvable:$true] %s1525
          %1531 = dma.vmem_to_hbm [thread:$0]  %s1526, 256, %s1524, %s1505, 128, 128, 8
        $region96: #{tpu_custom_call.1} parent=71 // pred_fallthru
          _
        // Predicated region
        $region97: #{tpu_custom_call.1} parent=71 // pred_check
          %p1532 = pneg %p373
        $region98: #{tpu_custom_call.1} parent=71 // pred_check_branch
          %1534 = sbr.rel (%p1532) target = $region100
        $region99: #{tpu_custom_call.1} parent=71 // pred_region
          %s1535 = smul.u32 2, %s40
          %s1537 = ssub.s32 1024, 1024
          %1538 = vsyncadd %s1510, %s1537
          %s1539 = smul.addr %s39, 8
          %s1540 = sadd.s32 %s1535, %s1539
          %s1541 = smul.addr %s1540, 128
          %s1542 = scalar_lea.hbm %s14, %s1541
          %s1543 = sshll.u32 %s1513, 4
          %s1544 = int_to_ptr.vmem [resolvable:$true] %s1543
          %1549 = dma.vmem_to_hbm [thread:$0]  %s1544, 1024, %s1542, %s1510, 128, 128, 8
        $region100: #{tpu_custom_call.1} parent=71 // pred_fallthru
          _
      $region72: #{tpu_custom_call.1} parent=5 // pred_fallthru
        _
      %p1550 = scmp.le.s32.totalorder 2, %s30
      // Predicated region
      $region101: #{tpu_custom_call.1} parent=5 // pred_check
        %p1551 = pneg %p1550
      $region102: #{tpu_custom_call.1} parent=5 // pred_check_branch
        %1553 = sbr.rel (%p1551) target = $region104
      $region103: #{tpu_custom_call.1} parent=5 // pred_region
        %s1554 = ssub.s32 %s30, 2
        // Predicated region
        $region105: #{tpu_custom_call.1} parent=103 // pred_check
          %p1555 = pneg %p351
        $region106: #{tpu_custom_call.1} parent=103 // pred_check_branch
          %1557 = sbr.rel (%p1555) target = $region108
        $region107: #{tpu_custom_call.1} parent=103 // pred_region
          %s1558 = sand.u32 %s336, 1
          %s1559 = scalar_lea.sflag [#allocation4], %s1558
          %s1560 = sand.u32 %s336, 1
          %s1561 = smul.addr %s1560, 16
          %s1562 = scalar_lea.vmem [#allocation11], %s1561
          %1563 = dma.done %s1559, 256
        $region108: #{tpu_custom_call.1} parent=103 // pred_fallthru
          _
        // Predicated region
        $region109: #{tpu_custom_call.1} parent=103 // pred_check
          %p1564 = pneg %p379
        $region110: #{tpu_custom_call.1} parent=103 // pred_check_branch
          %1566 = sbr.rel (%p1564) target = $region112
        $region111: #{tpu_custom_call.1} parent=103 // pred_region
          %s1567 = sand.u32 %s364, 1
          %s1568 = scalar_lea.sflag [#allocation13], %s1567
          %s1569 = sand.u32 %s364, 1
          %s1570 = smul.addr %s1569, 64
          %s1571 = scalar_lea.vmem [#allocation12], %s1570
          %1572 = dma.done %s1568, 1024
        $region112: #{tpu_custom_call.1} parent=103 // pred_fallthru
          _
      $region104: #{tpu_custom_call.1} parent=5 // pred_fallthru
        _
    $region6: #{tpu_custom_call.1} parent=1 // loop_footer
      %s34 = sadd.s32 1, %s30
    $region7: #{tpu_custom_call.1} parent=1 // loop_footer_branch
      %29 = sbr.rel target = $region3
    $region8: #{tpu_custom_call.1} parent=1 // loop_exit
      _
    %1573 = vsyncpa [#allocation3], 1
    %s1574 = scalar_lea.sflag [#allocation3], 1
    %1575 = vsyncpa %s1574, 1
    %1576 = vsyncpa [#allocation6], 1
    %1577 = vsyncpa [#allocation9], 1
    %1578 = vsyncpa [#allocation4], 1
    %s1579 = scalar_lea.sflag [#allocation4], 1
    %1580 = vsyncpa %s1579, 1
    %1581 = vsyncpa [#allocation13], 1
    %s1582 = scalar_lea.sflag [#allocation13], 1
    %1583 = vsyncpa %s1582, 1

// kernel: tpu_custom_call.1
$region0: #{tpu_custom_call.1}
  #allocation0 [shape = 'u32[]', space=smem, size = 0x4, offset = 0x4, fixed_abs, tag = 'smem constant byte address 0x4 - core index']
  #allocation1 [shape = 'u32[144,128]{1,0:T(1,128)}', space=vmem, size = 0x12000, scoped, tag = 'internal scratch']
  %s0 = inlined_call_operand.vmem [shape: f32[2,16,32], index: 0, kind: input, shape index: {}]
  %s1 = inlined_call_operand.vmem [shape: f32[1,32], index: 1, kind: input, shape index: {}]
  %s2 = inlined_call_operand.vmem [shape: f32[1,32], index: 2, kind: input, shape index: {}]
  %s3 = inlined_call_operand.vmem [shape: bf16[32,96], index: 3, kind: input, shape index: {}]
  %s4 = inlined_call_operand.vmem [shape: f32[1,96], index: 4, kind: input, shape index: {}]
  %s5 = inlined_call_operand.hbm [shape: bf16[32,32], index: 5, kind: input, shape index: {}]
  %s6 = inlined_call_operand.vmem [shape: f32[1,32], index: 6, kind: input, shape index: {}]
  %s7 = inlined_call_operand.hbm [shape: f32[1,32], index: 7, kind: input, shape index: {}]
  %s8 = inlined_call_operand.hbm [shape: f32[1,32], index: 8, kind: input, shape index: {}]
  %s9 = inlined_call_operand.hbm [shape: bf16[32,64], index: 9, kind: input, shape index: {}]
  %s10 = inlined_call_operand.hbm [shape: f32[1,64], index: 10, kind: input, shape index: {}]
  %s11 = inlined_call_operand.vmem [shape: bf16[64,32], index: 11, kind: input, shape index: {}]
  %s12 = inlined_call_operand.vmem [shape: f32[1,32], index: 12, kind: input, shape index: {}]
  %s13 = inlined_call_operand.hbm [shape: f32[2,16,32], index: 13, kind: output, shape index: {0}]
  %s14 = inlined_call_operand.hbm [shape: f32[2,4,16,16], index: 14, kind: output, shape index: {1}]
  %15 = xla_tuple %s13, %s14
  %s16 = sld [smem:[#allocation0]]
  $region113: #{tpu_custom_call.1} parent=0
    _
  %s18 = ssub.s32 1, %s16
  %s19 = scalar_select 0, %s18, %s16
  $region1: #{tpu_custom_call.1} parent=0
    #allocation2 [shape = 'u8[8192]{0}', space=vmem, size = 0x2000, scoped, tag = 'input window, operand 5, single buffered']
    #allocation3 [shape = 's32[2]{0}', space=sflag, size = 0x8, scoped, tag = 'scoped memory for tpu_custom_call.1']
    #allocation4 [shape = 's32[2]{0}', space=sflag, size = 0x8, scoped, tag = 'scoped memory for tpu_custom_call.1']
    #allocation5 [shape = 'u8[512]{0}', space=vmem, size = 0x400, scoped, tag = 'input window, operand 7, single buffered']
    #allocation6 [shape = 's32[1]{0}', space=sflag, size = 0x4, scoped, tag = 'scoped memory for tpu_custom_call.1']
    #allocation7 [shape = 'u8[512]{0}', space=vmem, size = 0x400, scoped, tag = 'input window, operand 8, single buffered']
    #allocation8 [shape = 'u8[8192]{0}', space=vmem, size = 0x2000, scoped, tag = 'input window, operand 9, single buffered']
    #allocation9 [shape = 's32[1]{0}', space=sflag, size = 0x4, scoped, tag = 'scoped memory for tpu_custom_call.1']
    #allocation10 [shape = 'u8[512]{0}', space=vmem, size = 0x400, scoped, tag = 'input window, operand 10, single buffered']
    #allocation11 [shape = 'u8[16384]{0}', space=vmem, size = 0x4000, scoped, tag = 'output window, operand 0']
    #allocation12 [shape = 'u8[65536]{0}', space=vmem, size = 0x10000, scoped, tag = 'output window, operand 1']
    #allocation13 [shape = 's32[2]{0}', space=sflag, size = 0x8, scoped, tag = 'scoped memory for tpu_custom_call.1']
    %20 = vsyncpa [#allocation3], 0
    %21 = vsyncpa [#allocation6], 0
    %22 = vsyncpa [#allocation9], 0
    %23 = vsyncpa [#allocation4], 0
    %s24 = scalar_lea.sflag [#allocation4], 1
    %25 = vsyncpa %s24, 0
    %26 = vsyncpa [#allocation13], 0
    %s27 = scalar_lea.sflag [#allocation13], 1
    %28 = vsyncpa %s27, 0
    loop: start=0, step=1, limit=4
    $region2: #{tpu_custom_call.1} parent=1 // loop_pre_header
      _
    $region3: #{tpu_custom_call.1} parent=1 // loop_header
      %s30 = sphi 0, %s34
      %p31 = scmp.ge.s32.totalorder %s30, 4
      %s37 = sphi 0, %s49
      %s38 = sphi 0, %s45
      %s39 = sphi 0, %s37
      %s40 = sphi 0, %s38
      %s41 = sphi 0, %s39
      %s42 = sphi 0, %s40
      %s52 = sphi 0, %s54
      %s55 = sphi 0, %s52
      %s56 = sphi 0, %s55
      %s72 = sphi 0, %s56
      %s76 = sphi 0, %s76
      %s78 = sphi 0, %s76
      %s79 = sphi 0, %s78
      %s93 = sphi 0, %s79
      %s97 = sphi 0, %s97
      %s99 = sphi 0, %s97
      %s100 = sphi 0, %s99
      %s114 = sphi 0, %s100
      %s118 = sphi 0, %s118
      %s120 = sphi 0, %s118
      %s121 = sphi 0, %s120
      %s135 = sphi 0, %s121
      %s139 = sphi 0, %s139
      %s141 = sphi 0, %s139
      %s142 = sphi 0, %s141
      %s156 = sphi 0, %s142
      %s160 = sphi 0, %s160
      %s162 = sphi 0, %s160
      %s163 = sphi 0, %s162
      %s177 = sphi 0, %s163
      %s181 = sphi 0, %s181
      %s183 = sphi 0, %s181
      %s184 = sphi 0, %s183
      %s198 = sphi 0, %s184
      %s202 = sphi 0, %s202
      %s204 = sphi 0, %s202
      %s205 = sphi 0, %s204
      %s219 = sphi 0, %s205
      %s223 = sphi 0, %s223
      %s225 = sphi 0, %s223
      %s226 = sphi 0, %s225
      %s240 = sphi 0, %s226
      %s244 = sphi 0, %s244
      %s246 = sphi 0, %s244
      %s247 = sphi 0, %s246
      %s261 = sphi 0, %s247
      %s265 = sphi 0, %s265
      %s267 = sphi 0, %s265
      %s268 = sphi 0, %s267
      %s282 = sphi 0, %s268
      %s286 = sphi 0, %s286
      %s288 = sphi 0, %s286
      %s289 = sphi 0, %s288
      %s303 = sphi 0, %s289
      %s307 = sphi 0, %s307
      %s309 = sphi 0, %s307
      %s310 = sphi 0, %s309
      %s324 = sphi 0, %s310
      %s332 = sphi 0, %s334
      %s335 = sphi 0, %s332
      %s336 = sphi 0, %s335
      %s352 = sphi 0, %s336
      %s360 = sphi 0, %s362
      %s363 = sphi 0, %s360
      %s364 = sphi 0, %s363
      %s380 = sphi 0, %s364
    $region4: #{tpu_custom_call.1} parent=1 // loop_header_branch
      %33 = sbr.rel (%p31) target = $region8
    $region5: #{tpu_custom_call.1} parent=1 // loop_body
      %s35 = ssub.s32 %s30, 1
      %s36 = ssub.s32 %s30, 2
      %s43 = sadd.s32 1, %s38
      %p44 = scmp.ge.s32.totalorder %s43, 1
      %s45 = scalar_select %p44, 0, %s43
      %s46 = sadd.s32 1, %s37
      %s47 = scalar_select %p44, %s46, %s37
      %p48 = scmp.ge.s32.totalorder %s47, 2
      %s49 = scalar_select %p48, 0, %s47
      %s50 = ssub.s32 %s37, %s49
      %p51 = scmp.eq.s32.totalorder %s50, 0
      %s53 = sadd.s32 %s52, 1
      %s54 = scalar_select %p51, %s52, %s53
      %p57 = pneg %p51
      %p58 = scmp.eq.s32.totalorder %s30, 1
      %p59 = por %p57, %p58
      %p60 = scmp.ne.s32.totalorder %s52, %s55
      %p61 = scmp.eq.s32.totalorder %s30, 0
      %p62 = por %p60, %p61
      %p63 = scmp.ne.s32.totalorder %s52, %s55
      %p64 = scmp.eq.s32.totalorder %s35, 1
      %p65 = por %p63, %p64
      %p66 = scmp.ne.s32.totalorder %s55, %s56
      %p67 = scmp.eq.s32.totalorder %s35, 0
      %p68 = por %p66, %p67
      %p69 = scmp.ne.s32.totalorder %s55, %s56
      %p70 = scmp.eq.s32.totalorder %s36, 1
      %p71 = por %p69, %p70
      %p73 = scmp.ne.s32.totalorder %s56, %s72
      %p74 = scmp.eq.s32.totalorder %s36, 0
      %p75 = por %p73, %p74
      %s77 = sadd.s32 %s76, 1
      %p80 = scmp.eq.s32.totalorder %s30, 1
      %p81 = scmp.ne.s32.totalorder %s76, %s78
      %p82 = scmp.eq.s32.totalorder %s30, 0
      %p83 = por %p81, %p82
      %p84 = scmp.ne.s32.totalorder %s76, %s78
      %p85 = scmp.eq.s32.totalorder %s35, 1
      %p86 = por %p84, %p85
      %p87 = scmp.ne.s32.totalorder %s78, %s79
      %p88 = scmp.eq.s32.totalorder %s35, 0
      %p89 = por %p87, %p88
      %p90 = scmp.ne.s32.totalorder %s78, %s79
      %p91 = scmp.eq.s32.totalorder %s36, 1
      %p92 = por %p90, %p91
      %p94 = scmp.ne.s32.totalorder %s79, %s93
      %p95 = scmp.eq.s32.totalorder %s36, 0
      %p96 = por %p94, %p95
      %s98 = sadd.s32 %s97, 1
      %p101 = scmp.eq.s32.totalorder %s30, 1
      %p102 = scmp.ne.s32.totalorder %s97, %s99
      %p103 = scmp.eq.s32.totalorder %s30, 0
      %p104 = por %p102, %p103
      %p105 = scmp.ne.s32.totalorder %s97, %s99
      %p106 = scmp.eq.s32.totalorder %s35, 1
      %p107 = por %p105, %p106
      %p108 = scmp.ne.s32.totalorder %s99, %s100
      %p109 = scmp.eq.s32.totalorder %s35, 0
      %p110 = por %p108, %p109
      %p111 = scmp.ne.s32.totalorder %s99, %s100
      %p112 = scmp.eq.s32.totalorder %s36, 1
      %p113 = por %p111, %p112
      %p115 = scmp.ne.s32.totalorder %s100, %s114
      %p116 = scmp.eq.s32.totalorder %s36, 0
      %p117 = por %p115, %p116
      %s119 = sadd.s32 %s118, 1
      %p122 = scmp.eq.s32.totalorder %s30, 1
      %p123 = scmp.ne.s32.totalorder %s118, %s120
      %p124 = scmp.eq.s32.totalorder %s30, 0
      %p125 = por %p123, %p124
      %p126 = scmp.ne.s32.totalorder %s118, %s120
      %p127 = scmp.eq.s32.totalorder %s35, 1
      %p128 = por %p126, %p127
      %p129 = scmp.ne.s32.totalorder %s120, %s121
      %p130 = scmp.eq.s32.totalorder %s35, 0
      %p131 = por %p129, %p130
      %p132 = scmp.ne.s32.totalorder %s120, %s121
      %p133 = scmp.eq.s32.totalorder %s36, 1
      %p134 = por %p132, %p133
      %p136 = scmp.ne.s32.totalorder %s121, %s135
      %p137 = scmp.eq.s32.totalorder %s36, 0
      %p138 = por %p136, %p137
      %s140 = sadd.s32 %s139, 1
      %p143 = scmp.eq.s32.totalorder %s30, 1
      %p144 = scmp.ne.s32.totalorder %s139, %s141
      %p145 = scmp.eq.s32.totalorder %s30, 0
      %p146 = por %p144, %p145
      %p147 = scmp.ne.s32.totalorder %s139, %s141
      %p148 = scmp.eq.s32.totalorder %s35, 1
      %p149 = por %p147, %p148
      %p150 = scmp.ne.s32.totalorder %s141, %s142
      %p151 = scmp.eq.s32.totalorder %s35, 0
      %p152 = por %p150, %p151
      %p153 = scmp.ne.s32.totalorder %s141, %s142
      %p154 = scmp.eq.s32.totalorder %s36, 1
      %p155 = por %p153, %p154
      %p157 = scmp.ne.s32.totalorder %s142, %s156
      %p158 = scmp.eq.s32.totalorder %s36, 0
      %p159 = por %p157, %p158
      %s161 = sadd.s32 %s160, 1
      %p164 = scmp.eq.s32.totalorder %s30, 1
      %p165 = scmp.ne.s32.totalorder %s160, %s162
      %p166 = scmp.eq.s32.totalorder %s30, 0
      %p167 = por %p165, %p166
      %p168 = scmp.ne.s32.totalorder %s160, %s162
      %p169 = scmp.eq.s32.totalorder %s35, 1
      %p170 = por %p168, %p169
      %p171 = scmp.ne.s32.totalorder %s162, %s163
      %p172 = scmp.eq.s32.totalorder %s35, 0
      %p173 = por %p171, %p172
      %p174 = scmp.ne.s32.totalorder %s162, %s163
      %p175 = scmp.eq.s32.totalorder %s36, 1
      %p176 = por %p174, %p175
      %p178 = scmp.ne.s32.totalorder %s163, %s177
      %p179 = scmp.eq.s32.totalorder %s36, 0
      %p180 = por %p178, %p179
      %s182 = sadd.s32 %s181, 1
      %p185 = scmp.eq.s32.totalorder %s30, 1
      %p186 = scmp.ne.s32.totalorder %s181, %s183
      %p187 = scmp.eq.s32.totalorder %s30, 0
      %p188 = por %p186, %p187
      %p189 = scmp.ne.s32.totalorder %s181, %s183
      %p190 = scmp.eq.s32.totalorder %s35, 1
      %p191 = por %p189, %p190
      %p192 = scmp.ne.s32.totalorder %s183, %s184
      %p193 = scmp.eq.s32.totalorder %s35, 0
      %p194 = por %p192, %p193
      %p195 = scmp.ne.s32.totalorder %s183, %s184
      %p196 = scmp.eq.s32.totalorder %s36, 1
      %p197 = por %p195, %p196
      %p199 = scmp.ne.s32.totalorder %s184, %s198
      %p200 = scmp.eq.s32.totalorder %s36, 0
      %p201 = por %p199, %p200
      %s203 = sadd.s32 %s202, 1
      %p206 = scmp.eq.s32.totalorder %s30, 1
      %p207 = scmp.ne.s32.totalorder %s202, %s204
      %p208 = scmp.eq.s32.totalorder %s30, 0
      %p209 = por %p207, %p208
      %p210 = scmp.ne.s32.totalorder %s202, %s204
      %p211 = scmp.eq.s32.totalorder %s35, 1
      %p212 = por %p210, %p211
      %p213 = scmp.ne.s32.totalorder %s204, %s205
      %p214 = scmp.eq.s32.totalorder %s35, 0
      %p215 = por %p213, %p214
      %p216 = scmp.ne.s32.totalorder %s204, %s205
      %p217 = scmp.eq.s32.totalorder %s36, 1
      %p218 = por %p216, %p217
      %p220 = scmp.ne.s32.totalorder %s205, %s219
      %p221 = scmp.eq.s32.totalorder %s36, 0
      %p222 = por %p220, %p221
      %s224 = sadd.s32 %s223, 1
      %p227 = scmp.eq.s32.totalorder %s30, 1
      %p228 = scmp.ne.s32.totalorder %s223, %s225
      %p229 = scmp.eq.s32.totalorder %s30, 0
      %p230 = por %p228, %p229
      %p231 = scmp.ne.s32.totalorder %s223, %s225
      %p232 = scmp.eq.s32.totalorder %s35, 1
      %p233 = por %p231, %p232
      %p234 = scmp.ne.s32.totalorder %s225, %s226
      %p235 = scmp.eq.s32.totalorder %s35, 0
      %p236 = por %p234, %p235
      %p237 = scmp.ne.s32.totalorder %s225, %s226
      %p238 = scmp.eq.s32.totalorder %s36, 1
      %p239 = por %p237, %p238
      %p241 = scmp.ne.s32.totalorder %s226, %s240
      %p242 = scmp.eq.s32.totalorder %s36, 0
      %p243 = por %p241, %p242
      %s245 = sadd.s32 %s244, 1
      %p248 = scmp.eq.s32.totalorder %s30, 1
      %p249 = scmp.ne.s32.totalorder %s244, %s246
      %p250 = scmp.eq.s32.totalorder %s30, 0
      %p251 = por %p249, %p250
      %p252 = scmp.ne.s32.totalorder %s244, %s246
      %p253 = scmp.eq.s32.totalorder %s35, 1
      %p254 = por %p252, %p253
      %p255 = scmp.ne.s32.totalorder %s246, %s247
      %p256 = scmp.eq.s32.totalorder %s35, 0
      %p257 = por %p255, %p256
      %p258 = scmp.ne.s32.totalorder %s246, %s247
      %p259 = scmp.eq.s32.totalorder %s36, 1
      %p260 = por %p258, %p259
      %p262 = scmp.ne.s32.totalorder %s247, %s261
      %p263 = scmp.eq.s32.totalorder %s36, 0
      %p264 = por %p262, %p263
      %s266 = sadd.s32 %s265, 1
      %p269 = scmp.eq.s32.totalorder %s30, 1
      %p270 = scmp.ne.s32.totalorder %s265, %s267
      %p271 = scmp.eq.s32.totalorder %s30, 0
      %p272 = por %p270, %p271
      %p273 = scmp.ne.s32.totalorder %s265, %s267
      %p274 = scmp.eq.s32.totalorder %s35, 1
      %p275 = por %p273, %p274
      %p276 = scmp.ne.s32.totalorder %s267, %s268
      %p277 = scmp.eq.s32.totalorder %s35, 0
      %p278 = por %p276, %p277
      %p279 = scmp.ne.s32.totalorder %s267, %s268
      %p280 = scmp.eq.s32.totalorder %s36, 1
      %p281 = por %p279, %p280
      %p283 = scmp.ne.s32.totalorder %s268, %s282
      %p284 = scmp.eq.s32.totalorder %s36, 0
      %p285 = por %p283, %p284
      %s287 = sadd.s32 %s286, 1
      %p290 = scmp.eq.s32.totalorder %s30, 1
      %p291 = scmp.ne.s32.totalorder %s286, %s288
      %p292 = scmp.eq.s32.totalorder %s30, 0
      %p293 = por %p291, %p292
      %p294 = scmp.ne.s32.totalorder %s286, %s288
      %p295 = scmp.eq.s32.totalorder %s35, 1
      %p296 = por %p294, %p295
      %p297 = scmp.ne.s32.totalorder %s288, %s289
      %p298 = scmp.eq.s32.totalorder %s35, 0
      %p299 = por %p297, %p298
      %p300 = scmp.ne.s32.totalorder %s288, %s289
      %p301 = scmp.eq.s32.totalorder %s36, 1
      %p302 = por %p300, %p301
      %p304 = scmp.ne.s32.totalorder %s289, %s303
      %p305 = scmp.eq.s32.totalorder %s36, 0
      %p306 = por %p304, %p305
      %s308 = sadd.s32 %s307, 1
      %p311 = scmp.eq.s32.totalorder %s30, 1
      %p312 = scmp.ne.s32.totalorder %s307, %s309
      %p313 = scmp.eq.s32.totalorder %s30, 0
      %p314 = por %p312, %p313
      %p315 = scmp.ne.s32.totalorder %s307, %s309
      %p316 = scmp.eq.s32.totalorder %s35, 1
      %p317 = por %p315, %p316
      %p318 = scmp.ne.s32.totalorder %s309, %s310
      %p319 = scmp.eq.s32.totalorder %s35, 0
      %p320 = por %p318, %p319
      %p321 = scmp.ne.s32.totalorder %s309, %s310
      %p322 = scmp.eq.s32.totalorder %s36, 1
      %p323 = por %p321, %p322
      %p325 = scmp.ne.s32.totalorder %s310, %s324
      %p326 = scmp.eq.s32.totalorder %s36, 0
      %p327 = por %p325, %p326
      %s328 = ssub.s32 %s37, %s49
      %s329 = ssub.s32 %s38, %s45
      %s330 = sor.u32 %s328, %s329
      %p331 = scmp.eq.s32.totalorder %s330, 0
      %s333 = sadd.s32 %s332, 1
      %s334 = scalar_select %p331, %s332, %s333
      %p337 = pneg %p331
      %p338 = scmp.eq.s32.totalorder %s30, 1
      %p339 = por %p337, %p338
      %p340 = scmp.ne.s32.totalorder %s332, %s335
      %p341 = scmp.eq.s32.totalorder %s30, 0
      %p342 = por %p340, %p341
      %p343 = scmp.ne.s32.totalorder %s332, %s335
      %p344 = scmp.eq.s32.totalorder %s35, 1
      %p345 = por %p343, %p344
      %p346 = scmp.ne.s32.totalorder %s335, %s336
      %p347 = scmp.eq.s32.totalorder %s35, 0
      %p348 = por %p346, %p347
      %p349 = scmp.ne.s32.totalorder %s335, %s336
      %p350 = scmp.eq.s32.totalorder %s36, 1
      %p351 = por %p349, %p350
      %p353 = scmp.ne.s32.totalorder %s336, %s352
      %p354 = scmp.eq.s32.totalorder %s36, 0
      %p355 = por %p353, %p354
      %s356 = ssub.s32 %s37, %s49
      %s357 = ssub.s32 %s38, %s45
      %s358 = sor.u32 %s356, %s357
      %p359 = scmp.eq.s32.totalorder %s358, 0
      %s361 = sadd.s32 %s360, 1
      %s362 = scalar_select %p359, %s360, %s361
      %p365 = pneg %p359
      %p366 = scmp.eq.s32.totalorder %s30, 1
      %p367 = por %p365, %p366
      %p368 = scmp.ne.s32.totalorder %s360, %s363
      %p369 = scmp.eq.s32.totalorder %s30, 0
      %p370 = por %p368, %p369
      %p371 = scmp.ne.s32.totalorder %s360, %s363
      %p372 = scmp.eq.s32.totalorder %s35, 1
      %p373 = por %p371, %p372
      %p374 = scmp.ne.s32.totalorder %s363, %s364
      %p375 = scmp.eq.s32.totalorder %s35, 0
      %p376 = por %p374, %p375
      %p377 = scmp.ne.s32.totalorder %s363, %s364
      %p378 = scmp.eq.s32.totalorder %s36, 1
      %p379 = por %p377, %p378
      %p381 = scmp.ne.s32.totalorder %s364, %s380
      %p382 = scmp.eq.s32.totalorder %s36, 0
      %p383 = por %p381, %p382
      %p384 = scmp.le.s32.totalorder 1, %s30
      %p385 = scmp.lt.s32.totalorder %s30, 3
      %p386 = pnand %p384, %p385
      %p387 = pneg %p386
      // Predicated region
      $region9: #{tpu_custom_call.1} parent=5 // pred_check
        _
      $region10: #{tpu_custom_call.1} parent=5 // pred_check_branch
        %389 = sbr.rel (%p386) target = $region12
      $region11: #{tpu_custom_call.1} parent=5 // pred_region
        %s390 = ssub.s32 %s30, 1
        // Predicated region
        $region13: #{tpu_custom_call.1} parent=11 // pred_check
          %p391 = pneg %p89
        $region14: #{tpu_custom_call.1} parent=11 // pred_check_branch
          %393 = sbr.rel (%p391) target = $region16
        $region15: #{tpu_custom_call.1} parent=11 // pred_region
          _
        $region16: #{tpu_custom_call.1} parent=11 // pred_fallthru
          _
        // Predicated region
        $region17: #{tpu_custom_call.1} parent=11 // pred_check
          %p394 = pneg %p110
        $region18: #{tpu_custom_call.1} parent=11 // pred_check_branch
          %396 = sbr.rel (%p394) target = $region20
        $region19: #{tpu_custom_call.1} parent=11 // pred_region
          _
        $region20: #{tpu_custom_call.1} parent=11 // pred_fallthru
          _
        // Predicated region
        $region21: #{tpu_custom_call.1} parent=11 // pred_check
          %p397 = pneg %p131
        $region22: #{tpu_custom_call.1} parent=11 // pred_check_branch
          %399 = sbr.rel (%p397) target = $region24
        $region23: #{tpu_custom_call.1} parent=11 // pred_region
          _
        $region24: #{tpu_custom_call.1} parent=11 // pred_fallthru
          _
        // Predicated region
        $region25: #{tpu_custom_call.1} parent=11 // pred_check
          %p400 = pneg %p152
        $region26: #{tpu_custom_call.1} parent=11 // pred_check_branch
          %402 = sbr.rel (%p400) target = $region28
        $region27: #{tpu_custom_call.1} parent=11 // pred_region
          _
        $region28: #{tpu_custom_call.1} parent=11 // pred_fallthru
          _
        // Predicated region
        $region29: #{tpu_custom_call.1} parent=11 // pred_check
          %p403 = pneg %p173
        $region30: #{tpu_custom_call.1} parent=11 // pred_check_branch
          %405 = sbr.rel (%p403) target = $region32
        $region31: #{tpu_custom_call.1} parent=11 // pred_region
          %s407 = ssub.s32 256, 256
          %408 = vsyncadd [#allocation3], %s407
          %s409 = sshll.u32 [#allocation2], 4
          %s410 = int_to_ptr.vmem [resolvable:$true] %s409
          %415 = dma.hbm_to_vmem [thread:$0]  %s5, 256, %s410, [#allocation3], 64, 64, 4
        $region32: #{tpu_custom_call.1} parent=11 // pred_fallthru
          _
        // Predicated region
        $region33: #{tpu_custom_call.1} parent=11 // pred_check
          %p416 = pneg %p194
        $region34: #{tpu_custom_call.1} parent=11 // pred_check_branch
          %418 = sbr.rel (%p416) target = $region36
        $region35: #{tpu_custom_call.1} parent=11 // pred_region
          _
        $region36: #{tpu_custom_call.1} parent=11 // pred_fallthru
          _
        // Predicated region
        $region37: #{tpu_custom_call.1} parent=11 // pred_check
          %p419 = pneg %p215
        $region38: #{tpu_custom_call.1} parent=11 // pred_check_branch
          %421 = sbr.rel (%p419) target = $region40
        $region39: #{tpu_custom_call.1} parent=11 // pred_region
          %s423 = ssub.s32 16, 16
          %424 = vsyncadd [#allocation6], %s423
          %s426 = sshll.u32 [#allocation5], 4
          %s427 = int_to_ptr.vmem [resolvable:$true] %s426
          %429 = dma.hbm_to_vmem [thread:$0]  %s7, 16, %s427, [#allocation6]
        $region40: #{tpu_custom_call.1} parent=11 // pred_fallthru
          _
        // Predicated region
        $region41: #{tpu_custom_call.1} parent=11 // pred_check
          %p430 = pneg %p236
        $region42: #{tpu_custom_call.1} parent=11 // pred_check_branch
          %432 = sbr.rel (%p430) target = $region44
        $region43: #{tpu_custom_call.1} parent=11 // pred_region
          %s434 = ssub.s32 16, 16
          %435 = vsyncadd [#allocation6], %s434
          %s437 = sshll.u32 [#allocation7], 4
          %s438 = int_to_ptr.vmem [resolvable:$true] %s437
          %440 = dma.hbm_to_vmem [thread:$0]  %s8, 16, %s438, [#allocation6]
        $region44: #{tpu_custom_call.1} parent=11 // pred_fallthru
          _
        // Predicated region
        $region45: #{tpu_custom_call.1} parent=11 // pred_check
          %p441 = pneg %p257
        $region46: #{tpu_custom_call.1} parent=11 // pred_check_branch
          %443 = sbr.rel (%p441) target = $region48
        $region47: #{tpu_custom_call.1} parent=11 // pred_region
          %s445 = ssub.s32 256, 256
          %446 = vsyncadd [#allocation9], %s445
          %s447 = sshll.u32 [#allocation8], 4
          %s448 = int_to_ptr.vmem [resolvable:$true] %s447
          %453 = dma.hbm_to_vmem [thread:$0]  %s9, 256, %s448, [#allocation9], 64, 64, 4
        $region48: #{tpu_custom_call.1} parent=11 // pred_fallthru
          _
        // Predicated region
        $region49: #{tpu_custom_call.1} parent=11 // pred_check
          %p454 = pneg %p278
        $region50: #{tpu_custom_call.1} parent=11 // pred_check_branch
          %456 = sbr.rel (%p454) target = $region52
        $region51: #{tpu_custom_call.1} parent=11 // pred_region
          %s458 = ssub.s32 16, 16
          %459 = vsyncadd [#allocation9], %s458
          %s461 = sshll.u32 [#allocation10], 4
          %s462 = int_to_ptr.vmem [resolvable:$true] %s461
          %464 = dma.hbm_to_vmem [thread:$0]  %s10, 16, %s462, [#allocation9]
        $region52: #{tpu_custom_call.1} parent=11 // pred_fallthru
          _
        // Predicated region
        $region53: #{tpu_custom_call.1} parent=11 // pred_check
          %p465 = pneg %p299
        $region54: #{tpu_custom_call.1} parent=11 // pred_check_branch
          %467 = sbr.rel (%p465) target = $region56
        $region55: #{tpu_custom_call.1} parent=11 // pred_region
          _
        $region56: #{tpu_custom_call.1} parent=11 // pred_fallthru
          _
        // Predicated region
        $region57: #{tpu_custom_call.1} parent=11 // pred_check
          %p468 = pneg %p320
        $region58: #{tpu_custom_call.1} parent=11 // pred_check_branch
          %470 = sbr.rel (%p468) target = $region60
        $region59: #{tpu_custom_call.1} parent=11 // pred_region
          _
        $region60: #{tpu_custom_call.1} parent=11 // pred_fallthru
          _
      $region12: #{tpu_custom_call.1} parent=5 // pred_fallthru
        _
      %p471 = scmp.lt.s32.totalorder %s30, 2
      // Predicated region
      $region61: #{tpu_custom_call.1} parent=5 // pred_check
        %p472 = pneg %p471
      $region62: #{tpu_custom_call.1} parent=5 // pred_check_branch
        %474 = sbr.rel (%p472) target = $region64
      $region63: #{tpu_custom_call.1} parent=5 // pred_region
        // Predicated region
        $region65: #{tpu_custom_call.1} parent=63 // pred_check
          %p475 = pneg %p62
        $region66: #{tpu_custom_call.1} parent=63 // pred_check_branch
          %477 = sbr.rel (%p475) target = $region68
        $region67: #{tpu_custom_call.1} parent=63 // pred_region
          %p478 = scmp.lt.s32.totalorder %s37, 1
          %s479 = scalar_select %p478, %s37, 1
          %s480 = smul.addr %s479, 2
          %s481 = smul.addr %s480, 8
          %s482 = scalar_lea.vmem %s0, %s481
        $region68: #{tpu_custom_call.1} parent=63 // pred_fallthru
          _
      $region64: #{tpu_custom_call.1} parent=5 // pred_fallthru
        _
      %p483 = scmp.le.s32.totalorder 1, %s30
      %p484 = scmp.lt.s32.totalorder %s30, 3
      %p485 = pnand %p483, %p484
      %p486 = pneg %p485
      // Predicated region
      $region69: #{tpu_custom_call.1} parent=5 // pred_check
        _
      $region70: #{tpu_custom_call.1} parent=5 // pred_check_branch
        %488 = sbr.rel (%p485) target = $region72
      $region71: #{tpu_custom_call.1} parent=5 // pred_region
        %s489 = ssub.s32 %s30, 1
        // Predicated region
        $region73: #{tpu_custom_call.1} parent=71 // pred_check
          %p490 = pneg %p173
        $region74: #{tpu_custom_call.1} parent=71 // pred_check_branch
          %492 = sbr.rel (%p490) target = $region76
        $region75: #{tpu_custom_call.1} parent=71 // pred_region
          %493 = dma.done [#allocation3], 256
        $region76: #{tpu_custom_call.1} parent=71 // pred_fallthru
          _
        // Predicated region
        $region77: #{tpu_custom_call.1} parent=71 // pred_check
          %p494 = pneg %p215
        $region78: #{tpu_custom_call.1} parent=71 // pred_check_branch
          %496 = sbr.rel (%p494) target = $region80
        $region79: #{tpu_custom_call.1} parent=71 // pred_region
          %497 = dma.done [#allocation6], 16
        $region80: #{tpu_custom_call.1} parent=71 // pred_fallthru
          _
        // Predicated region
        $region81: #{tpu_custom_call.1} parent=71 // pred_check
          %p498 = pneg %p236
        $region82: #{tpu_custom_call.1} parent=71 // pred_check_branch
          %500 = sbr.rel (%p498) target = $region84
        $region83: #{tpu_custom_call.1} parent=71 // pred_region
          %501 = dma.done [#allocation6], 16
        $region84: #{tpu_custom_call.1} parent=71 // pred_fallthru
          _
        // Predicated region
        $region85: #{tpu_custom_call.1} parent=71 // pred_check
          %p502 = pneg %p257
        $region86: #{tpu_custom_call.1} parent=71 // pred_check_branch
          %504 = sbr.rel (%p502) target = $region88
        $region87: #{tpu_custom_call.1} parent=71 // pred_region
          %505 = dma.done [#allocation9], 256
        $region88: #{tpu_custom_call.1} parent=71 // pred_fallthru
          _
        // Predicated region
        $region89: #{tpu_custom_call.1} parent=71 // pred_check
          %p506 = pneg %p278
        $region90: #{tpu_custom_call.1} parent=71 // pred_check_branch
          %508 = sbr.rel (%p506) target = $region92
        $region91: #{tpu_custom_call.1} parent=71 // pred_region
          %509 = dma.done [#allocation9], 16
        $region92: #{tpu_custom_call.1} parent=71 // pred_fallthru
          _
        %p510 = scmp.lt.s32.totalorder %s39, 1
        %s511 = scalar_select %p510, %s39, 1
        %s512 = smul.addr %s511, 2
        %s513 = smul.addr %s512, 8
        %s514 = scalar_lea.vmem %s0, %s513
        %p515 = pneg %p68
        %p516 = pneg %p65
        %p517 = pneg %p89
        %p518 = pneg %p86
        %p519 = pneg %p110
        %p520 = pneg %p107
        %p521 = pneg %p131
        %p522 = pneg %p128
        %p523 = pneg %p152
        %p524 = pneg %p149
        %p525 = pneg %p173
        %p526 = pneg %p170
        %p527 = pneg %p194
        %p528 = pneg %p191
        %p529 = pneg %p215
        %p530 = pneg %p212
        %p531 = pneg %p236
        %p532 = pneg %p233
        %p533 = pneg %p257
        %p534 = pneg %p254
        %p535 = pneg %p278
        %p536 = pneg %p275
        %p537 = pneg %p299
        %p538 = pneg %p296
        %p539 = pneg %p320
        %p540 = pneg %p317
        %p541 = pneg %p348
        %p542 = pneg %p345
        %s543 = sand.u32 %s335, 1
        %s544 = scalar_lea.sflag [#allocation4], %s543
        %s545 = sand.u32 %s335, 1
        %s546 = smul.addr %s545, 16
        %s547 = scalar_lea.vmem [#allocation11], %s546
        %p548 = pneg %p376
        %p549 = pneg %p373
        %s550 = sand.u32 %s363, 1
        %s551 = scalar_lea.sflag [#allocation13], %s550
        %s552 = sand.u32 %s363, 1
        %s553 = smul.addr %s552, 64
        %s554 = scalar_lea.vmem [#allocation12], %s553
        %p555 = scmp.lt.s32.totalorder %s39, 1
        %s556 = scalar_select %p555, %s39, 1
        %s557 = smul.addr %s556, 2
        %s558 = smul.addr %s557, 8
        %s559 = scalar_lea.vmem %s0, %s558
        %s560 = smul.u32 2, %s40
        %s561 = smul.u32 2, %s40
        %v563 = vld [vmem:[%s559] sm:$0xff]
        %v564 = vld [vmem:[%s559 + $0x8] sm:$0xff]
        %v565 = vld [vmem:[%s1] sm:$0x1]
        %v566 = vld [vmem:[%s2] sm:$0x1]
        %v567 = vld [vmem:[%s4] sm:$0x1]
        %vm568 = vcmask 261120
        %v569 = vsel %vm568, %v563, 0.0
        %570 = vadd.xlane.f32.xlu0 %v569
        %v571 = vpop.xlane.xlu0 %570
        %v572 = vsel %vm568, %v564, 0.0
        %573 = vadd.xlane.f32.xlu0 %v572
        %v574 = vpop.xlane.xlu0 %573
        %v575 = vrcp.pop 32.0
        %v576 = vmul.f32 %v571, %v575
        %v577 = vmul.f32 %v574, %v575
        %v578 = vsub.f32 %v563, %v576
        %v579 = vsub.f32 %v564, %v577
        %v580 = vmul.f32 %v578, %v578
        %v581 = vmul.f32 %v579, %v579
        %v582 = vsel %vm568, %v580, 0.0
        %583 = vadd.xlane.f32.xlu0 %v582
        %v584 = vpop.xlane.xlu0 %583
        %v585 = vsel %vm568, %v581, 0.0
        %586 = vadd.xlane.f32.xlu0 %v585
        %v587 = vpop.xlane.xlu0 %586
        %v588 = vmul.f32 %v584, %v575
        %v589 = vmul.f32 %v587, %v575
        %v590 = vadd.f32 %v588, 1e-05
        %v591 = vadd.f32 %v589, 1e-05
        %v592 = vrsqrt.pop %v590
        %v593 = vrsqrt.pop %v591
        %v594 = vmul.f32 %v578, %v592
        %v595 = vmul.f32 %v579, %v593
        %v597 = vlaneseq
        %v598 = vshrl.u32 %v597, 7
        %v599 = vsub.s32 0, %v598
        %v600 = vrot.slane %v565, %v599
        %v602 = vmul.f32 %v594, %v600
        %v603 = vmul.f32 %v595, %v600
        %v605 = vlaneseq
        %v606 = vshrl.u32 %v605, 7
        %v607 = vsub.s32 0, %v606
        %v608 = vrot.slane %v566, %v607
        %v610 = vadd.f32 %v602, %v608
        %v611 = vadd.f32 %v603, %v608
        %v612 = vpack.c.bf16 %v611, %v610
        %v613 = vld [vmem:[%s3] sm:$0xf]
        %v614 = vld [vmem:[%s3 + $0x4] sm:$0xf]
        %v615 = vld [vmem:[%s3 + $0x8] sm:$0xf]
        %v616 = vld [vmem:[%s3 + $0xc] sm:$0xf]
        %v618 = vlaneseq
        %v619 = vshrl.u32 %v618, 7
        %v620 = vsub.s32 0, %v619
        %v621 = vrot.slane %v567, %v620
        %v627 = vunpack.c.l.b16 %v613
        %v628 = vunpack.c.l.b16 %v614
        %v629 = vunpack.c.l.b16 %v615
        %v630 = vunpack.c.l.b16 %v616
        %v631 = vpack.c.b16 %v628, %v627
        %v632 = vpack.c.b16 %v630, %v629
        %v636 = vsel %vm568, %v612, 0
        %638 = vmatprep.subr.bf16.mxu0 0
        %639 = vmatpush1.bf16.msra.mxu0 0
        %640 = vmatprep.subr.bf16.mxu0 0
        %641 = vmatpush1.bf16.msra.mxu0 0
        %642 = vmatprep.subr.bf16.mxu0 0
        %643 = vmatpush1.bf16.msra.mxu0 0
        %644 = vmatprep.subr.bf16.mxu0 0
        %645 = vmatpush1.bf16.msra.mxu0 0
        %646 = vmatprep.subr.bf16.mxu0 0
        %647 = vmatpush1.bf16.msra.mxu0 0
        %648 = vmatprep.subr.bf16.mxu0 0
        %649 = vmatpush1.bf16.msra.mxu0 0
        %650 = vmatprep.subr.bf16.mxu0 0
        %651 = vmatpush1.bf16.msra.mxu0 %v632
        %652 = vmatprep.subr.bf16.mxu0 0
        %653 = vmatpush1.bf16.msra.mxu0 %v631
        %654 = vmatprep.subr.bf16.mxu0 0
        %655 = vmatpush2.bf16.msra.mxu0 0
        %656 = vmatprep.subr.bf16.mxu0 0
        %657 = vmatpush2.bf16.msra.mxu0 0
        %658 = vmatprep.subr.bf16.mxu0 0
        %659 = vmatpush2.bf16.msra.mxu0 0
        %660 = vmatprep.subr.bf16.mxu0 0
        %661 = vmatpush2.bf16.msra.mxu0 0
        %662 = vmatprep.subr.bf16.mxu0 0
        %663 = vmatpush2.bf16.msra.mxu0 0
        %664 = vmatprep.subr.bf16.mxu0 0
        %665 = vmatpush2.bf16.msra.mxu0 0
        %666 = vmatprep.subr.bf16.mxu0 0
        %667 = vmatpush2.bf16.msra.mxu0 0
        %668 = vmatprep.subr.bf16.mxu0 0
        %669 = vmatpush2.bf16.msra.mxu0 0
        %670 = vmatprep.mubr.bf16.mxu0 0
        %671 = vmatmul.mubr.bf16.gmra.mxu0 %v636
        %v672 = vpop.f32.mrf.mxu0
        %v673 = vadd.f32 %v621, %v672
        %v674 = vpop.f32.mrf.mxu0
        %v675 = vpop.f32.mrf.mxu0
        %v676 = vadd.f32 %v621, %v675
        %v677 = vpop.f32.mrf.mxu0
        %678 = vdwg.mxu0
        %v679 = vmul.f32 %v673, 0.35355338
        %v680 = vmul.f32 %v676, 0.35355338
        %v681 = vpack.c.bf16 %v680, %v679
        %v682 = vpack.c.bf16 %v676, %v673
        %684 = vrot.lane.b32.xlu0 %v681, 120
        %v685 = vpop.permute.xlu0 %684
        %686 = vrot.lane.b32.xlu0 %v681, 112
        %v687 = vpop.permute.xlu0 %686
        %688 = vrot.lane.b32.xlu0 %v681, 104
        %v689 = vpop.permute.xlu0 %688
        %691 = vrot.lane.b32.xlu0 %v682, 120
        %v692 = vpop.permute.xlu0 %691
        %693 = vrot.lane.b32.xlu0 %v682, 112
        %v694 = vpop.permute.xlu0 %693
        %695 = vrot.lane.b32.xlu0 %v682, 104
        %v696 = vpop.permute.xlu0 %695
        %697 = vrot.lane.b32.xlu0 %v682, 96
        %v698 = vpop.permute.xlu0 %697
        %vm699 = vcmask 64512
        %v701 = vsel %vm699, %v681, 0
        %v704 = vsel %vm699, %v698, 0
        %706 = vmatprep.subr.bf16.mxu0 0
        %707 = vmatpush1.bf16.xpose.msra.mxu0 0
        %708 = vmatprep.subr.bf16.mxu0 0
        %709 = vmatpush1.bf16.xpose.msra.mxu0 0
        %710 = vmatprep.subr.bf16.mxu0 0
        %711 = vmatpush1.bf16.xpose.msra.mxu0 0
        %712 = vmatprep.subr.bf16.mxu0 0
        %713 = vmatpush1.bf16.xpose.msra.mxu0 0
        %714 = vmatprep.subr.bf16.mxu0 0
        %715 = vmatpush1.bf16.xpose.msra.mxu0 0
        %716 = vmatprep.subr.bf16.mxu0 0
        %717 = vmatpush1.bf16.xpose.msra.mxu0 0
        %718 = vmatprep.subr.bf16.mxu0 0
        %719 = vmatpush1.bf16.xpose.msra.mxu0 0
        %720 = vmatprep.subr.bf16.mxu0 0
        %721 = vmatpush1.bf16.xpose.msra.mxu0 %v704
        %722 = vmatprep.subr.bf16.mxu0 0
        %723 = vmatpush2.bf16.xpose.msra.mxu0 0
        %724 = vmatprep.subr.bf16.mxu0 0
        %725 = vmatpush2.bf16.xpose.msra.mxu0 0
        %726 = vmatprep.subr.bf16.mxu0 0
        %727 = vmatpush2.bf16.xpose.msra.mxu0 0
        %728 = vmatprep.subr.bf16.mxu0 0
        %729 = vmatpush2.bf16.xpose.msra.mxu0 0
        %730 = vmatprep.subr.bf16.mxu0 0
        %731 = vmatpush2.bf16.xpose.msra.mxu0 0
        %732 = vmatprep.subr.bf16.mxu0 0
        %733 = vmatpush2.bf16.xpose.msra.mxu0 0
        %734 = vmatprep.subr.bf16.mxu0 0
        %735 = vmatpush2.bf16.xpose.msra.mxu0 0
        %736 = vmatprep.subr.bf16.mxu0 0
        %737 = vmatpush2.bf16.xpose.msra.mxu0 0
        %738 = vmatprep.mubr.bf16.mxu0 0
        %739 = vmatmul.mubr.bf16.gmra.mxu0 %v701
        %v740 = vpop.f32.mrf.mxu0
        %v741 = vadd.f32 0.0, %v740
        %v742 = vpop.f32.mrf.mxu0
        %v743 = vpop.f32.mrf.mxu0
        %v744 = vadd.f32 0.0, %v743
        %v745 = vpop.f32.mrf.mxu0
        %746 = vdwg.mxu0
        %747 = vrot.lane.b32.xlu0 %v692, 96
        %v748 = vpop.permute.xlu0 %747
        %v750 = vsel %vm699, %v685, 0
        %v753 = vsel %vm699, %v748, 0
        %755 = vmatprep.subr.bf16.mxu0 0
        %756 = vmatpush1.bf16.xpose.msra.mxu0 0
        %757 = vmatprep.subr.bf16.mxu0 0
        %758 = vmatpush1.bf16.xpose.msra.mxu0 0
        %759 = vmatprep.subr.bf16.mxu0 0
        %760 = vmatpush1.bf16.xpose.msra.mxu0 0
        %761 = vmatprep.subr.bf16.mxu0 0
        %762 = vmatpush1.bf16.xpose.msra.mxu0 0
        %763 = vmatprep.subr.bf16.mxu0 0
        %764 = vmatpush1.bf16.xpose.msra.mxu0 0
        %765 = vmatprep.subr.bf16.mxu0 0
        %766 = vmatpush1.bf16.xpose.msra.mxu0 0
        %767 = vmatprep.subr.bf16.mxu0 0
        %768 = vmatpush1.bf16.xpose.msra.mxu0 0
        %769 = vmatprep.subr.bf16.mxu0 0
        %770 = vmatpush1.bf16.xpose.msra.mxu0 %v753
        %771 = vmatprep.subr.bf16.mxu0 0
        %772 = vmatpush2.bf16.xpose.msra.mxu0 0
        %773 = vmatprep.subr.bf16.mxu0 0
        %774 = vmatpush2.bf16.xpose.msra.mxu0 0
        %775 = vmatprep.subr.bf16.mxu0 0
        %776 = vmatpush2.bf16.xpose.msra.mxu0 0
        %777 = vmatprep.subr.bf16.mxu0 0
        %778 = vmatpush2.bf16.xpose.msra.mxu0 0
        %779 = vmatprep.subr.bf16.mxu0 0
        %780 = vmatpush2.bf16.xpose.msra.mxu0 0
        %781 = vmatprep.subr.bf16.mxu0 0
        %782 = vmatpush2.bf16.xpose.msra.mxu0 0
        %783 = vmatprep.subr.bf16.mxu0 0
        %784 = vmatpush2.bf16.xpose.msra.mxu0 0
        %785 = vmatprep.subr.bf16.mxu0 0
        %786 = vmatpush2.bf16.xpose.msra.mxu0 0
        %787 = vmatprep.mubr.bf16.mxu0 0
        %788 = vmatmul.mubr.bf16.gmra.mxu0 %v750
        %v789 = vpop.f32.mrf.mxu0
        %v790 = vadd.f32 0.0, %v789
        %v791 = vpop.f32.mrf.mxu0
        %v792 = vpop.f32.mrf.mxu0
        %v793 = vadd.f32 0.0, %v792
        %v794 = vpop.f32.mrf.mxu0
        %795 = vdwg.mxu0
        %796 = vrot.lane.b32.xlu0 %v694, 96
        %v797 = vpop.permute.xlu0 %796
        %v799 = vsel %vm699, %v687, 0
        %v802 = vsel %vm699, %v797, 0
        %804 = vmatprep.subr.bf16.mxu0 0
        %805 = vmatpush1.bf16.xpose.msra.mxu0 0
        %806 = vmatprep.subr.bf16.mxu0 0
        %807 = vmatpush1.bf16.xpose.msra.mxu0 0
        %808 = vmatprep.subr.bf16.mxu0 0
        %809 = vmatpush1.bf16.xpose.msra.mxu0 0
        %810 = vmatprep.subr.bf16.mxu0 0
        %811 = vmatpush1.bf16.xpose.msra.mxu0 0
        %812 = vmatprep.subr.bf16.mxu0 0
        %813 = vmatpush1.bf16.xpose.msra.mxu0 0
        %814 = vmatprep.subr.bf16.mxu0 0
        %815 = vmatpush1.bf16.xpose.msra.mxu0 0
        %816 = vmatprep.subr.bf16.mxu0 0
        %817 = vmatpush1.bf16.xpose.msra.mxu0 0
        %818 = vmatprep.subr.bf16.mxu0 0
        %819 = vmatpush1.bf16.xpose.msra.mxu0 %v802
        %820 = vmatprep.subr.bf16.mxu0 0
        %821 = vmatpush2.bf16.xpose.msra.mxu0 0
        %822 = vmatprep.subr.bf16.mxu0 0
        %823 = vmatpush2.bf16.xpose.msra.mxu0 0
        %824 = vmatprep.subr.bf16.mxu0 0
        %825 = vmatpush2.bf16.xpose.msra.mxu0 0
        %826 = vmatprep.subr.bf16.mxu0 0
        %827 = vmatpush2.bf16.xpose.msra.mxu0 0
        %828 = vmatprep.subr.bf16.mxu0 0
        %829 = vmatpush2.bf16.xpose.msra.mxu0 0
        %830 = vmatprep.subr.bf16.mxu0 0
        %831 = vmatpush2.bf16.xpose.msra.mxu0 0
        %832 = vmatprep.subr.bf16.mxu0 0
        %833 = vmatpush2.bf16.xpose.msra.mxu0 0
        %834 = vmatprep.subr.bf16.mxu0 0
        %835 = vmatpush2.bf16.xpose.msra.mxu0 0
        %836 = vmatprep.mubr.bf16.mxu0 0
        %837 = vmatmul.mubr.bf16.gmra.mxu0 %v799
        %v838 = vpop.f32.mrf.mxu0
        %v839 = vadd.f32 0.0, %v838
        %v840 = vpop.f32.mrf.mxu0
        %v841 = vpop.f32.mrf.mxu0
        %v842 = vadd.f32 0.0, %v841
        %v843 = vpop.f32.mrf.mxu0
        %844 = vdwg.mxu0
        %845 = vrot.lane.b32.xlu0 %v696, 96
        %v846 = vpop.permute.xlu0 %845
        %v848 = vsel %vm699, %v689, 0
        %v851 = vsel %vm699, %v846, 0
        %853 = vmatprep.subr.bf16.mxu0 0
        %854 = vmatpush1.bf16.xpose.msra.mxu0 0
        %855 = vmatprep.subr.bf16.mxu0 0
        %856 = vmatpush1.bf16.xpose.msra.mxu0 0
        %857 = vmatprep.subr.bf16.mxu0 0
        %858 = vmatpush1.bf16.xpose.msra.mxu0 0
        %859 = vmatprep.subr.bf16.mxu0 0
        %860 = vmatpush1.bf16.xpose.msra.mxu0 0
        %861 = vmatprep.subr.bf16.mxu0 0
        %862 = vmatpush1.bf16.xpose.msra.mxu0 0
        %863 = vmatprep.subr.bf16.mxu0 0
        %864 = vmatpush1.bf16.xpose.msra.mxu0 0
        %865 = vmatprep.subr.bf16.mxu0 0
        %866 = vmatpush1.bf16.xpose.msra.mxu0 0
        %867 = vmatprep.subr.bf16.mxu0 0
        %868 = vmatpush1.bf16.xpose.msra.mxu0 %v851
        %869 = vmatprep.subr.bf16.mxu0 0
        %870 = vmatpush2.bf16.xpose.msra.mxu0 0
        %871 = vmatprep.subr.bf16.mxu0 0
        %872 = vmatpush2.bf16.xpose.msra.mxu0 0
        %873 = vmatprep.subr.bf16.mxu0 0
        %874 = vmatpush2.bf16.xpose.msra.mxu0 0
        %875 = vmatprep.subr.bf16.mxu0 0
        %876 = vmatpush2.bf16.xpose.msra.mxu0 0
        %877 = vmatprep.subr.bf16.mxu0 0
        %878 = vmatpush2.bf16.xpose.msra.mxu0 0
        %879 = vmatprep.subr.bf16.mxu0 0
        %880 = vmatpush2.bf16.xpose.msra.mxu0 0
        %881 = vmatprep.subr.bf16.mxu0 0
        %882 = vmatpush2.bf16.xpose.msra.mxu0 0
        %883 = vmatprep.subr.bf16.mxu0 0
        %884 = vmatpush2.bf16.xpose.msra.mxu0 0
        %885 = vmatprep.mubr.bf16.mxu0 0
        %886 = vmatmul.mubr.bf16.gmra.mxu0 %v848
        %v887 = vpop.f32.mrf.mxu0
        %v888 = vadd.f32 0.0, %v887
        %v889 = vpop.f32.mrf.mxu0
        %v890 = vpop.f32.mrf.mxu0
        %v891 = vadd.f32 0.0, %v890
        %v892 = vpop.f32.mrf.mxu0
        %893 = vdwg.mxu0
        %v894 = vlaneseq
        %v895 = vand.u32 %v894, 127
        %vm896 = vcmp.lt.s32.totalorder %v895, 12
        %v897 = vsel %vm896, 1, 0
        %vm898 = vcmp.eq.s32.totalorder %v897, 1
        %v899 = vsel %vm898, %v741, -1e+30
        %v900 = vsel %vm898, %v744, -1e+30
        %v901 = vsel %vm898, %v790, -1e+30
        %v902 = vsel %vm898, %v793, -1e+30
        %v903 = vsel %vm898, %v839, -1e+30
        %v904 = vsel %vm898, %v842, -1e+30
        %v905 = vsel %vm898, %v888, -1e+30
        %v906 = vsel %vm898, %v891, -1e+30
        %vm907 = vcmask 130048
        %v908 = vsel %vm907, %v899, -inf
        %909 = vmax.xlane.f32.xlu0 %v908
        %v910 = vpop.xlane.xlu0 %909
        %v911 = vsel %vm907, %v900, -inf
        %912 = vmax.xlane.f32.xlu0 %v911
        %v913 = vpop.xlane.xlu0 %912
        %v914 = vsel %vm907, %v901, -inf
        %915 = vmax.xlane.f32.xlu0 %v914
        %v916 = vpop.xlane.xlu0 %915
        %v917 = vsel %vm907, %v902, -inf
        %918 = vmax.xlane.f32.xlu0 %v917
        %v919 = vpop.xlane.xlu0 %918
        %v920 = vsel %vm907, %v903, -inf
        %921 = vmax.xlane.f32.xlu0 %v920
        %v922 = vpop.xlane.xlu0 %921
        %v923 = vsel %vm907, %v904, -inf
        %924 = vmax.xlane.f32.xlu0 %v923
        %v925 = vpop.xlane.xlu0 %924
        %v926 = vsel %vm907, %v905, -inf
        %927 = vmax.xlane.f32.xlu0 %v926
        %v928 = vpop.xlane.xlu0 %927
        %v929 = vsel %vm907, %v906, -inf
        %930 = vmax.xlane.f32.xlu0 %v929
        %v931 = vpop.xlane.xlu0 %930
        %v932 = vsub.f32 %v899, %v910
        %v933 = vsub.f32 %v900, %v913
        %v934 = vsub.f32 %v901, %v916
        %v935 = vsub.f32 %v902, %v919
        %v936 = vsub.f32 %v903, %v922
        %v937 = vsub.f32 %v904, %v925
        %v938 = vsub.f32 %v905, %v928
        %v939 = vsub.f32 %v906, %v931
        %v940 = vmul.f32 %v932, 1.442695
        %v941 = vpow.pop %v940
        %v942 = vmul.f32 %v933, 1.442695
        %v943 = vpow.pop %v942
        %v944 = vmul.f32 %v934, 1.442695
        %v945 = vpow.pop %v944
        %v946 = vmul.f32 %v935, 1.442695
        %v947 = vpow.pop %v946
        %v948 = vmul.f32 %v936, 1.442695
        %v949 = vpow.pop %v948
        %v950 = vmul.f32 %v937, 1.442695
        %v951 = vpow.pop %v950
        %v952 = vmul.f32 %v938, 1.442695
        %v953 = vpow.pop %v952
        %v954 = vmul.f32 %v939, 1.442695
        %v955 = vpow.pop %v954
        %v956 = vsel %vm907, %v941, 0.0
        %957 = vadd.xlane.f32.xlu0 %v956
        %v958 = vpop.xlane.xlu0 %957
        %v959 = vsel %vm907, %v943, 0.0
        %960 = vadd.xlane.f32.xlu0 %v959
        %v961 = vpop.xlane.xlu0 %960
        %v962 = vsel %vm907, %v945, 0.0
        %963 = vadd.xlane.f32.xlu0 %v962
        %v964 = vpop.xlane.xlu0 %963
        %v965 = vsel %vm907, %v947, 0.0
        %966 = vadd.xlane.f32.xlu0 %v965
        %v967 = vpop.xlane.xlu0 %966
        %v968 = vsel %vm907, %v949, 0.0
        %969 = vadd.xlane.f32.xlu0 %v968
        %v970 = vpop.xlane.xlu0 %969
        %v971 = vsel %vm907, %v951, 0.0
        %972 = vadd.xlane.f32.xlu0 %v971
        %v973 = vpop.xlane.xlu0 %972
        %v974 = vsel %vm907, %v953, 0.0
        %975 = vadd.xlane.f32.xlu0 %v974
        %v976 = vpop.xlane.xlu0 %975
        %v977 = vsel %vm907, %v955, 0.0
        %978 = vadd.xlane.f32.xlu0 %v977
        %v979 = vpop.xlane.xlu0 %978
        %v980 = vrcp.pop %v958
        %v981 = vrcp.pop %v961
        %v982 = vrcp.pop %v964
        %v983 = vrcp.pop %v967
        %v984 = vrcp.pop %v970
        %v985 = vrcp.pop %v973
        %v986 = vrcp.pop %v976
        %v987 = vrcp.pop %v979
        %v988 = vmul.f32 %v941, %v980
        %v989 = vmul.f32 %v943, %v981
        %v990 = vmul.f32 %v945, %v982
        %v991 = vmul.f32 %v947, %v983
        %v992 = vmul.f32 %v949, %v984
        %v993 = vmul.f32 %v951, %v985
        %v994 = vmul.f32 %v953, %v986
        %v995 = vmul.f32 %v955, %v987
        %996 = vst.msk [vmem:[%s554] sm:$0xff] %vm907, %v988
        %997 = vst.msk [vmem:[%s554 + $0x8] sm:$0xff] %vm907, %v989
        %998 = vst.msk [vmem:[%s554 + $0x10] sm:$0xff] %vm907, %v990
        %999 = vst.msk [vmem:[%s554 + $0x18] sm:$0xff] %vm907, %v991
        %1000 = vst.msk [vmem:[%s554 + $0x20] sm:$0xff] %vm907, %v992
        %1001 = vst.msk [vmem:[%s554 + $0x28] sm:$0xff] %vm907, %v993
        %1002 = vst.msk [vmem:[%s554 + $0x30] sm:$0xff] %vm907, %v994
        %1003 = vst.msk [vmem:[%s554 + $0x38] sm:$0xff] %vm907, %v995
        %v1004 = vpack.c.bf16 %v989, %v988
        %v1005 = vpack.c.bf16 %v991, %v990
        %v1006 = vpack.c.bf16 %v993, %v992
        %v1007 = vpack.c.bf16 %v995, %v994
        %1008 = vrot.lane.b32.xlu0 %v682, 64
        %v1009 = vpop.permute.xlu0 %1008
        %v1012 = vsel %vm907, %v1004, 0
        %1014 = vmatprep.subr.bf16.mxu0 0
        %1015 = vmatpush1.bf16.msra.mxu0 0
        %1016 = vmatprep.subr.bf16.mxu0 0
        %1017 = vmatpush1.bf16.msra.mxu0 0
        %1018 = vmatprep.subr.bf16.mxu0 0
        %1019 = vmatpush1.bf16.msra.mxu0 0
        %1020 = vmatprep.subr.bf16.mxu0 0
        %1021 = vmatpush1.bf16.msra.mxu0 0
        %1022 = vmatprep.subr.bf16.mxu0 0
        %1023 = vmatpush1.bf16.msra.mxu0 0
        %1024 = vmatprep.subr.bf16.mxu0 0
        %1025 = vmatpush1.bf16.msra.mxu0 0
        %1026 = vmatprep.subr.bf16.mxu0 0
        %1027 = vmatpush1.bf16.msra.mxu0 0
        %1028 = vmatprep.subr.bf16.mxu0 0
        %1029 = vmatpush1.bf16.msra.mxu0 %v1009
        %1030 = vmatprep.subr.bf16.mxu0 0
        %1031 = vmatpush2.bf16.msra.mxu0 0
        %1032 = vmatprep.subr.bf16.mxu0 0
        %1033 = vmatpush2.bf16.msra.mxu0 0
        %1034 = vmatprep.subr.bf16.mxu0 0
        %1035 = vmatpush2.bf16.msra.mxu0 0
        %1036 = vmatprep.subr.bf16.mxu0 0
        %1037 = vmatpush2.bf16.msra.mxu0 0
        %1038 = vmatprep.subr.bf16.mxu0 0
        %1039 = vmatpush2.bf16.msra.mxu0 0
        %1040 = vmatprep.subr.bf16.mxu0 0
        %1041 = vmatpush2.bf16.msra.mxu0 0
        %1042 = vmatprep.subr.bf16.mxu0 0
        %1043 = vmatpush2.bf16.msra.mxu0 0
        %1044 = vmatprep.subr.bf16.mxu0 0
        %1045 = vmatpush2.bf16.msra.mxu0 0
        %1046 = vmatprep.mubr.bf16.mxu0 0
        %1047 = vmatmul.mubr.bf16.gmra.mxu0 %v1012
        %v1048 = vpop.f32.mrf.mxu0
        %v1049 = vadd.f32 0.0, %v1048
        %v1050 = vpop.f32.mrf.mxu0
        %v1051 = vpop.f32.mrf.mxu0
        %v1052 = vadd.f32 0.0, %v1051
        %v1053 = vpop.f32.mrf.mxu0
        %1054 = vdwg.mxu0
        %1055 = vrot.lane.b32.xlu0 %v692, 64
        %v1056 = vpop.permute.xlu0 %1055
        %v1059 = vsel %vm907, %v1005, 0
        %1061 = vmatprep.subr.bf16.mxu0 0
        %1062 = vmatpush1.bf16.msra.mxu0 0
        %1063 = vmatprep.subr.bf16.mxu0 0
        %1064 = vmatpush1.bf16.msra.mxu0 0
        %1065 = vmatprep.subr.bf16.mxu0 0
        %1066 = vmatpush1.bf16.msra.mxu0 0
        %1067 = vmatprep.subr.bf16.mxu0 0
        %1068 = vmatpush1.bf16.msra.mxu0 0
        %1069 = vmatprep.subr.bf16.mxu0 0
        %1070 = vmatpush1.bf16.msra.mxu0 0
        %1071 = vmatprep.subr.bf16.mxu0 0
        %1072 = vmatpush1.bf16.msra.mxu0 0
        %1073 = vmatprep.subr.bf16.mxu0 0
        %1074 = vmatpush1.bf16.msra.mxu0 0
        %1075 = vmatprep.subr.bf16.mxu0 0
        %1076 = vmatpush1.bf16.msra.mxu0 %v1056
        %1077 = vmatprep.subr.bf16.mxu0 0
        %1078 = vmatpush2.bf16.msra.mxu0 0
        %1079 = vmatprep.subr.bf16.mxu0 0
        %1080 = vmatpush2.bf16.msra.mxu0 0
        %1081 = vmatprep.subr.bf16.mxu0 0
        %1082 = vmatpush2.bf16.msra.mxu0 0
        %1083 = vmatprep.subr.bf16.mxu0 0
        %1084 = vmatpush2.bf16.msra.mxu0 0
        %1085 = vmatprep.subr.bf16.mxu0 0
        %1086 = vmatpush2.bf16.msra.mxu0 0
        %1087 = vmatprep.subr.bf16.mxu0 0
        %1088 = vmatpush2.bf16.msra.mxu0 0
        %1089 = vmatprep.subr.bf16.mxu0 0
        %1090 = vmatpush2.bf16.msra.mxu0 0
        %1091 = vmatprep.subr.bf16.mxu0 0
        %1092 = vmatpush2.bf16.msra.mxu0 0
        %1093 = vmatprep.mubr.bf16.mxu0 0
        %1094 = vmatmul.mubr.bf16.gmra.mxu0 %v1059
        %v1095 = vpop.f32.mrf.mxu0
        %v1096 = vadd.f32 0.0, %v1095
        %v1097 = vpop.f32.mrf.mxu0
        %v1098 = vpop.f32.mrf.mxu0
        %v1099 = vadd.f32 0.0, %v1098
        %v1100 = vpop.f32.mrf.mxu0
        %1101 = vdwg.mxu0
        %1102 = vrot.lane.b32.xlu0 %v694, 64
        %v1103 = vpop.permute.xlu0 %1102
        %v1106 = vsel %vm907, %v1006, 0
        %1108 = vmatprep.subr.bf16.mxu0 0
        %1109 = vmatpush1.bf16.msra.mxu0 0
        %1110 = vmatprep.subr.bf16.mxu0 0
        %1111 = vmatpush1.bf16.msra.mxu0 0
        %1112 = vmatprep.subr.bf16.mxu0 0
        %1113 = vmatpush1.bf16.msra.mxu0 0
        %1114 = vmatprep.subr.bf16.mxu0 0
        %1115 = vmatpush1.bf16.msra.mxu0 0
        %1116 = vmatprep.subr.bf16.mxu0 0
        %1117 = vmatpush1.bf16.msra.mxu0 0
        %1118 = vmatprep.subr.bf16.mxu0 0
        %1119 = vmatpush1.bf16.msra.mxu0 0
        %1120 = vmatprep.subr.bf16.mxu0 0
        %1121 = vmatpush1.bf16.msra.mxu0 0
        %1122 = vmatprep.subr.bf16.mxu0 0
        %1123 = vmatpush1.bf16.msra.mxu0 %v1103
        %1124 = vmatprep.subr.bf16.mxu0 0
        %1125 = vmatpush2.bf16.msra.mxu0 0
        %1126 = vmatprep.subr.bf16.mxu0 0
        %1127 = vmatpush2.bf16.msra.mxu0 0
        %1128 = vmatprep.subr.bf16.mxu0 0
        %1129 = vmatpush2.bf16.msra.mxu0 0
        %1130 = vmatprep.subr.bf16.mxu0 0
        %1131 = vmatpush2.bf16.msra.mxu0 0
        %1132 = vmatprep.subr.bf16.mxu0 0
        %1133 = vmatpush2.bf16.msra.mxu0 0
        %1134 = vmatprep.subr.bf16.mxu0 0
        %1135 = vmatpush2.bf16.msra.mxu0 0
        %1136 = vmatprep.subr.bf16.mxu0 0
        %1137 = vmatpush2.bf16.msra.mxu0 0
        %1138 = vmatprep.subr.bf16.mxu0 0
        %1139 = vmatpush2.bf16.msra.mxu0 0
        %1140 = vmatprep.mubr.bf16.mxu0 0
        %1141 = vmatmul.mubr.bf16.gmra.mxu0 %v1106
        %v1142 = vpop.f32.mrf.mxu0
        %v1143 = vadd.f32 0.0, %v1142
        %v1144 = vpop.f32.mrf.mxu0
        %v1145 = vpop.f32.mrf.mxu0
        %v1146 = vadd.f32 0.0, %v1145
        %v1147 = vpop.f32.mrf.mxu0
        %1148 = vdwg.mxu0
        %1149 = vrot.lane.b32.xlu0 %v696, 64
        %v1150 = vpop.permute.xlu0 %1149
        %v1153 = vsel %vm907, %v1007, 0
        %1155 = vmatprep.subr.bf16.mxu0 0
        %1156 = vmatpush1.bf16.msra.mxu0 0
        %1157 = vmatprep.subr.bf16.mxu0 0
        %1158 = vmatpush1.bf16.msra.mxu0 0
        %1159 = vmatprep.subr.bf16.mxu0 0
        %1160 = vmatpush1.bf16.msra.mxu0 0
        %1161 = vmatprep.subr.bf16.mxu0 0
        %1162 = vmatpush1.bf16.msra.mxu0 0
        %1163 = vmatprep.subr.bf16.mxu0 0
        %1164 = vmatpush1.bf16.msra.mxu0 0
        %1165 = vmatprep.subr.bf16.mxu0 0
        %1166 = vmatpush1.bf16.msra.mxu0 0
        %1167 = vmatprep.subr.bf16.mxu0 0
        %1168 = vmatpush1.bf16.msra.mxu0 0
        %1169 = vmatprep.subr.bf16.mxu0 0
        %1170 = vmatpush1.bf16.msra.mxu0 %v1150
        %1171 = vmatprep.subr.bf16.mxu0 0
        %1172 = vmatpush2.bf16.msra.mxu0 0
        %1173 = vmatprep.subr.bf16.mxu0 0
        %1174 = vmatpush2.bf16.msra.mxu0 0
        %1175 = vmatprep.subr.bf16.mxu0 0
        %1176 = vmatpush2.bf16.msra.mxu0 0
        %1177 = vmatprep.subr.bf16.mxu0 0
        %1178 = vmatpush2.bf16.msra.mxu0 0
        %1179 = vmatprep.subr.bf16.mxu0 0
        %1180 = vmatpush2.bf16.msra.mxu0 0
        %1181 = vmatprep.subr.bf16.mxu0 0
        %1182 = vmatpush2.bf16.msra.mxu0 0
        %1183 = vmatprep.subr.bf16.mxu0 0
        %1184 = vmatpush2.bf16.msra.mxu0 0
        %1185 = vmatprep.subr.bf16.mxu0 0
        %1186 = vmatpush2.bf16.msra.mxu0 0
        %1187 = vmatprep.mubr.bf16.mxu0 0
        %1188 = vmatmul.mubr.bf16.gmra.mxu0 %v1153
        %v1189 = vpop.f32.mrf.mxu0
        %v1190 = vadd.f32 0.0, %v1189
        %v1191 = vpop.f32.mrf.mxu0
        %v1192 = vpop.f32.mrf.mxu0
        %v1193 = vadd.f32 0.0, %v1192
        %v1194 = vpop.f32.mrf.mxu0
        %1195 = vdwg.mxu0
        %v1196 = vpack.c.bf16 %v1052, %v1049
        %v1197 = vpack.c.bf16 %v1099, %v1096
        %v1198 = vpack.c.bf16 %v1146, %v1143
        %v1199 = vpack.c.bf16 %v1193, %v1190
        %1201 = vrot.lane.b32.xlu0 %v1197, 8
        %v1202 = vpop.permute.xlu0 %1201
        %1204 = vrot.lane.b32.xlu0 %v1198, 16
        %v1205 = vpop.permute.xlu0 %1204
        %1207 = vrot.lane.b32.xlu0 %v1199, 24
        %v1208 = vpop.permute.xlu0 %1207
        %v1211 = vsel %vm699, %v1196, %v1202
        %v1213 = vsel %vm907, %v1211, %v1205
        %vm1214 = vcmask 195584
        %v1216 = vsel %vm1214, %v1213, %v1208
        %v1217 = vld [vmem:[#allocation2] sm:$0xf]
        %v1218 = vld [vmem:[#allocation2 + $0x4] sm:$0xf]
        %v1219 = vld [vmem:[#allocation2 + $0x8] sm:$0xf]
        %v1220 = vld [vmem:[#allocation2 + $0xc] sm:$0xf]
        %v1221 = vld [vmem:[%s6] sm:$0x1]
        %v1223 = vlaneseq
        %v1224 = vshrl.u32 %v1223, 7
        %v1225 = vsub.s32 0, %v1224
        %v1226 = vrot.slane %v1221, %v1225
        %v1232 = vunpack.c.l.b16 %v1217
        %v1233 = vunpack.c.l.b16 %v1218
        %v1234 = vunpack.c.l.b16 %v1219
        %v1235 = vunpack.c.l.b16 %v1220
        %v1236 = vpack.c.b16 %v1233, %v1232
        %v1237 = vpack.c.b16 %v1235, %v1234
        %v1240 = vsel %vm568, %v1216, 0
        %1242 = vmatprep.subr.bf16.mxu0 0
        %1243 = vmatpush1.bf16.msra.mxu0 0
        %1244 = vmatprep.subr.bf16.mxu0 0
        %1245 = vmatpush1.bf16.msra.mxu0 0
        %1246 = vmatprep.subr.bf16.mxu0 0
        %1247 = vmatpush1.bf16.msra.mxu0 0
        %1248 = vmatprep.subr.bf16.mxu0 0
        %1249 = vmatpush1.bf16.msra.mxu0 0
        %1250 = vmatprep.subr.bf16.mxu0 0
        %1251 = vmatpush1.bf16.msra.mxu0 0
        %1252 = vmatprep.subr.bf16.mxu0 0
        %1253 = vmatpush1.bf16.msra.mxu0 0
        %1254 = vmatprep.subr.bf16.mxu0 0
        %1255 = vmatpush1.bf16.msra.mxu0 %v1237
        %1256 = vmatprep.subr.bf16.mxu0 0
        %1257 = vmatpush1.bf16.msra.mxu0 %v1236
        %1258 = vmatprep.subr.bf16.mxu0 0
        %1259 = vmatpush2.bf16.msra.mxu0 0
        %1260 = vmatprep.subr.bf16.mxu0 0
        %1261 = vmatpush2.bf16.msra.mxu0 0
        %1262 = vmatprep.subr.bf16.mxu0 0
        %1263 = vmatpush2.bf16.msra.mxu0 0
        %1264 = vmatprep.subr.bf16.mxu0 0
        %1265 = vmatpush2.bf16.msra.mxu0 0
        %1266 = vmatprep.subr.bf16.mxu0 0
        %1267 = vmatpush2.bf16.msra.mxu0 0
        %1268 = vmatprep.subr.bf16.mxu0 0
        %1269 = vmatpush2.bf16.msra.mxu0 0
        %1270 = vmatprep.subr.bf16.mxu0 0
        %1271 = vmatpush2.bf16.msra.mxu0 0
        %1272 = vmatprep.subr.bf16.mxu0 0
        %1273 = vmatpush2.bf16.msra.mxu0 0
        %1274 = vmatprep.mubr.bf16.mxu0 0
        %1275 = vmatmul.mubr.bf16.gmra.mxu0 %v1240
        %v1276 = vpop.f32.mrf.mxu0
        %v1277 = vadd.f32 %v1226, %v1276
        %v1278 = vpop.f32.mrf.mxu0
        %v1279 = vpop.f32.mrf.mxu0
        %v1280 = vadd.f32 %v1226, %v1279
        %v1281 = vpop.f32.mrf.mxu0
        %1282 = vdwg.mxu0
        %v1283 = vadd.f32 %v563, %v1277
        %v1284 = vadd.f32 %v564, %v1280
        %v1285 = vld [vmem:[#allocation5] sm:$0x1]
        %v1286 = vld [vmem:[#allocation7] sm:$0x1]
        %v1287 = vsel %vm568, %v1283, 0.0
        %1288 = vadd.xlane.f32.xlu0 %v1287
        %v1289 = vpop.xlane.xlu0 %1288
        %v1290 = vsel %vm568, %v1284, 0.0
        %1291 = vadd.xlane.f32.xlu0 %v1290
        %v1292 = vpop.xlane.xlu0 %1291
        %v1293 = vmul.f32 %v1289, %v575
        %v1294 = vmul.f32 %v1292, %v575
        %v1295 = vsub.f32 %v1283, %v1293
        %v1296 = vsub.f32 %v1284, %v1294
        %v1297 = vmul.f32 %v1295, %v1295
        %v1298 = vmul.f32 %v1296, %v1296
        %v1299 = vsel %vm568, %v1297, 0.0
        %1300 = vadd.xlane.f32.xlu0 %v1299
        %v1301 = vpop.xlane.xlu0 %1300
        %v1302 = vsel %vm568, %v1298, 0.0
        %1303 = vadd.xlane.f32.xlu0 %v1302
        %v1304 = vpop.xlane.xlu0 %1303
        %v1305 = vmul.f32 %v1301, %v575
        %v1306 = vmul.f32 %v1304, %v575
        %v1307 = vadd.f32 %v1305, 1e-05
        %v1308 = vadd.f32 %v1306, 1e-05
        %v1309 = vrsqrt.pop %v1307
        %v1310 = vrsqrt.pop %v1308
        %v1311 = vmul.f32 %v1295, %v1309
        %v1312 = vmul.f32 %v1296, %v1310
        %v1314 = vlaneseq
        %v1315 = vshrl.u32 %v1314, 7
        %v1316 = vsub.s32 0, %v1315
        %v1317 = vrot.slane %v1285, %v1316
        %v1319 = vmul.f32 %v1311, %v1317
        %v1320 = vmul.f32 %v1312, %v1317
        %v1322 = vlaneseq
        %v1323 = vshrl.u32 %v1322, 7
        %v1324 = vsub.s32 0, %v1323
        %v1325 = vrot.slane %v1286, %v1324
        %v1327 = vadd.f32 %v1319, %v1325
        %v1328 = vadd.f32 %v1320, %v1325
        %v1329 = vpack.c.bf16 %v1328, %v1327
        %v1330 = vld [vmem:[#allocation8] sm:$0xf]
        %v1331 = vld [vmem:[#allocation8 + $0x4] sm:$0xf]
        %v1332 = vld [vmem:[#allocation8 + $0x8] sm:$0xf]
        %v1333 = vld [vmem:[#allocation8 + $0xc] sm:$0xf]
        %v1334 = vld [vmem:[#allocation10] sm:$0x1]
        %v1336 = vlaneseq
        %v1337 = vshrl.u32 %v1336, 7
        %v1338 = vsub.s32 0, %v1337
        %v1339 = vrot.slane %v1334, %v1338
        %v1345 = vunpack.c.l.b16 %v1330
        %v1346 = vunpack.c.l.b16 %v1331
        %v1347 = vunpack.c.l.b16 %v1332
        %v1348 = vunpack.c.l.b16 %v1333
        %v1349 = vpack.c.b16 %v1346, %v1345
        %v1350 = vpack.c.b16 %v1348, %v1347
        %v1354 = vsel %vm568, %v1329, 0
        %1356 = vmatprep.subr.bf16.mxu0 0
        %1357 = vmatpush1.bf16.msra.mxu0 0
        %1358 = vmatprep.subr.bf16.mxu0 0
        %1359 = vmatpush1.bf16.msra.mxu0 0
        %1360 = vmatprep.subr.bf16.mxu0 0
        %1361 = vmatpush1.bf16.msra.mxu0 0
        %1362 = vmatprep.subr.bf16.mxu0 0
        %1363 = vmatpush1.bf16.msra.mxu0 0
        %1364 = vmatprep.subr.bf16.mxu0 0
        %1365 = vmatpush1.bf16.msra.mxu0 0
        %1366 = vmatprep.subr.bf16.mxu0 0
        %1367 = vmatpush1.bf16.msra.mxu0 0
        %1368 = vmatprep.subr.bf16.mxu0 0
        %1369 = vmatpush1.bf16.msra.mxu0 %v1350
        %1370 = vmatprep.subr.bf16.mxu0 0
        %1371 = vmatpush1.bf16.msra.mxu0 %v1349
        %1372 = vmatprep.subr.bf16.mxu0 0
        %1373 = vmatpush2.bf16.msra.mxu0 0
        %1374 = vmatprep.subr.bf16.mxu0 0
        %1375 = vmatpush2.bf16.msra.mxu0 0
        %1376 = vmatprep.subr.bf16.mxu0 0
        %1377 = vmatpush2.bf16.msra.mxu0 0
        %1378 = vmatprep.subr.bf16.mxu0 0
        %1379 = vmatpush2.bf16.msra.mxu0 0
        %1380 = vmatprep.subr.bf16.mxu0 0
        %1381 = vmatpush2.bf16.msra.mxu0 0
        %1382 = vmatprep.subr.bf16.mxu0 0
        %1383 = vmatpush2.bf16.msra.mxu0 0
        %1384 = vmatprep.subr.bf16.mxu0 0
        %1385 = vmatpush2.bf16.msra.mxu0 0
        %1386 = vmatprep.subr.bf16.mxu0 0
        %1387 = vmatpush2.bf16.msra.mxu0 0
        %1388 = vmatprep.mubr.bf16.mxu0 0
        %1389 = vmatmul.mubr.bf16.gmra.mxu0 %v1354
        %v1390 = vpop.f32.mrf.mxu0
        %v1391 = vadd.f32 %v1339, %v1390
        %v1392 = vpop.f32.mrf.mxu0
        %v1393 = vpop.f32.mrf.mxu0
        %v1394 = vadd.f32 %v1339, %v1393
        %v1395 = vpop.f32.mrf.mxu0
        %1396 = vdwg.mxu0
        %v1397 = vmul.f32 %v1391, 0.5
        %v1398 = vmul.f32 %v1394, 0.5
        %v1399 = vmul.f32 %v1391, 0.044715
        %v1400 = vmul.f32 %v1394, 0.044715
        %v1401 = vmul.f32 %v1399, %v1391
        %v1402 = vmul.f32 %v1400, %v1394
        %v1403 = vmul.f32 %v1401, %v1391
        %v1404 = vmul.f32 %v1402, %v1394
        %v1405 = vadd.f32 %v1391, %v1403
        %v1406 = vadd.f32 %v1394, %v1404
        %v1407 = vmul.f32 %v1405, 0.7978846
        %v1408 = vmul.f32 %v1406, 0.7978846
        %v1409 = vtanh.pop %v1407
        %v1410 = vtanh.pop %v1408
        %v1411 = vadd.f32 %v1409, 1.0
        %v1412 = vadd.f32 %v1410, 1.0
        %v1413 = vmul.f32 %v1397, %v1411
        %v1414 = vmul.f32 %v1398, %v1412
        %v1415 = vpack.c.bf16 %v1414, %v1413
        %v1416 = vld [vmem:[%s11] sm:$0xf]
        %v1417 = vld [vmem:[%s11 + $0x4] sm:$0xf]
        %v1418 = vld [vmem:[%s11 + $0x8] sm:$0xf]
        %v1419 = vld [vmem:[%s11 + $0xc] sm:$0xf]
        %v1420 = vld [vmem:[%s11 + $0x10] sm:$0xf]
        %v1421 = vld [vmem:[%s11 + $0x14] sm:$0xf]
        %v1422 = vld [vmem:[%s11 + $0x18] sm:$0xf]
        %v1423 = vld [vmem:[%s11 + $0x1c] sm:$0xf]
        %v1424 = vld [vmem:[%s12] sm:$0x1]
        %v1426 = vlaneseq
        %v1427 = vshrl.u32 %v1426, 7
        %v1428 = vsub.s32 0, %v1427
        %v1429 = vrot.slane %v1424, %v1428
        %v1439 = vunpack.c.l.b16 %v1416
        %v1440 = vunpack.c.l.b16 %v1417
        %v1441 = vunpack.c.l.b16 %v1418
        %v1442 = vunpack.c.l.b16 %v1419
        %v1443 = vunpack.c.l.b16 %v1420
        %v1444 = vunpack.c.l.b16 %v1421
        %v1445 = vunpack.c.l.b16 %v1422
        %v1446 = vunpack.c.l.b16 %v1423
        %v1447 = vpack.c.b16 %v1440, %v1439
        %v1448 = vpack.c.b16 %v1442, %v1441
        %v1449 = vpack.c.b16 %v1444, %v1443
        %v1450 = vpack.c.b16 %v1446, %v1445
        %vm1455 = vcmask 523264
        %v1457 = vsel %vm1455, %v1415, 0
        %1459 = vmatprep.subr.bf16.mxu0 0
        %1460 = vmatpush1.bf16.msra.mxu0 0
        %1461 = vmatprep.subr.bf16.mxu0 0
        %1462 = vmatpush1.bf16.msra.mxu0 0
        %1463 = vmatprep.subr.bf16.mxu0 0
        %1464 = vmatpush1.bf16.msra.mxu0 0
        %1465 = vmatprep.subr.bf16.mxu0 0
        %1466 = vmatpush1.bf16.msra.mxu0 0
        %1467 = vmatprep.subr.bf16.mxu0 0
        %1468 = vmatpush1.bf16.msra.mxu0 %v1450
        %1469 = vmatprep.subr.bf16.mxu0 0
        %1470 = vmatpush1.bf16.msra.mxu0 %v1449
        %1471 = vmatprep.subr.bf16.mxu0 0
        %1472 = vmatpush1.bf16.msra.mxu0 %v1448
        %1473 = vmatprep.subr.bf16.mxu0 0
        %1474 = vmatpush1.bf16.msra.mxu0 %v1447
        %1475 = vmatprep.subr.bf16.mxu0 0
        %1476 = vmatpush2.bf16.msra.mxu0 0
        %1477 = vmatprep.subr.bf16.mxu0 0
        %1478 = vmatpush2.bf16.msra.mxu0 0
        %1479 = vmatprep.subr.bf16.mxu0 0
        %1480 = vmatpush2.bf16.msra.mxu0 0
        %1481 = vmatprep.subr.bf16.mxu0 0
        %1482 = vmatpush2.bf16.msra.mxu0 0
        %1483 = vmatprep.subr.bf16.mxu0 0
        %1484 = vmatpush2.bf16.msra.mxu0 0
        %1485 = vmatprep.subr.bf16.mxu0 0
        %1486 = vmatpush2.bf16.msra.mxu0 0
        %1487 = vmatprep.subr.bf16.mxu0 0
        %1488 = vmatpush2.bf16.msra.mxu0 0
        %1489 = vmatprep.subr.bf16.mxu0 0
        %1490 = vmatpush2.bf16.msra.mxu0 0
        %1491 = vmatprep.mubr.bf16.mxu0 0
        %1492 = vmatmul.mubr.bf16.gmra.mxu0 %v1457
        %v1493 = vpop.f32.mrf.mxu0
        %v1494 = vadd.f32 %v1429, %v1493
        %v1495 = vpop.f32.mrf.mxu0
        %v1496 = vpop.f32.mrf.mxu0
        %v1497 = vadd.f32 %v1429, %v1496
        %v1498 = vpop.f32.mrf.mxu0
        %1499 = vdwg.mxu0
        %v1500 = vadd.f32 %v1283, %v1494
        %v1501 = vadd.f32 %v1284, %v1497
        %1502 = vst.msk [vmem:[%s547] sm:$0xff] %vm568, %v1500
        %1503 = vst.msk [vmem:[%s547 + $0x8] sm:$0xff] %vm568, %v1501
        %s1504 = sand.u32 %s335, 1
        %s1505 = scalar_lea.sflag [#allocation4], %s1504
        %s1506 = sand.u32 %s335, 1
        %s1507 = smul.addr %s1506, 16
        %s1508 = scalar_lea.vmem [#allocation11], %s1507
        %s1509 = sand.u32 %s363, 1
        %s1510 = scalar_lea.sflag [#allocation13], %s1509
        %s1511 = sand.u32 %s363, 1
        %s1512 = smul.addr %s1511, 64
        %s1513 = scalar_lea.vmem [#allocation12], %s1512
        // Predicated region
        $region93: #{tpu_custom_call.1} parent=71 // pred_check
          %p1514 = pneg %p345
        $region94: #{tpu_custom_call.1} parent=71 // pred_check_branch
          %1516 = sbr.rel (%p1514) target = $region96
        $region95: #{tpu_custom_call.1} parent=71 // pred_region
          %s1517 = smul.u32 2, %s40
          %s1519 = ssub.s32 256, 256
          %1520 = vsyncadd %s1505, %s1519
          %s1521 = smul.addr %s39, 2
          %s1522 = sadd.s32 %s1517, %s1521
          %s1523 = smul.addr %s1522, 128
          %s1524 = scalar_lea.hbm %s13, %s1523
          %s1525 = sshll.u32 %s1508, 4
          %s1526 = int_to_ptr.vmem [resolvable:$true] %s1525
          %1531 = dma.vmem_to_hbm [thread:$0]  %s1526, 256, %s1524, %s1505, 128, 128, 8
        $region96: #{tpu_custom_call.1} parent=71 // pred_fallthru
          _
        // Predicated region
        $region97: #{tpu_custom_call.1} parent=71 // pred_check
          %p1532 = pneg %p373
        $region98: #{tpu_custom_call.1} parent=71 // pred_check_branch
          %1534 = sbr.rel (%p1532) target = $region100
        $region99: #{tpu_custom_call.1} parent=71 // pred_region
          %s1535 = smul.u32 2, %s40
          %s1537 = ssub.s32 1024, 1024
          %1538 = vsyncadd %s1510, %s1537
          %s1539 = smul.addr %s39, 8
          %s1540 = sadd.s32 %s1535, %s1539
          %s1541 = smul.addr %s1540, 128
          %s1542 = scalar_lea.hbm %s14, %s1541
          %s1543 = sshll.u32 %s1513, 4
          %s1544 = int_to_ptr.vmem [resolvable:$true] %s1543
          %1549 = dma.vmem_to_hbm [thread:$0]  %s1544, 1024, %s1542, %s1510, 128, 128, 8
        $region100: #{tpu_custom_call.1} parent=71 // pred_fallthru
          _
      $region72: #{tpu_custom_call.1} parent=5 // pred_fallthru
        _
      %p1550 = scmp.le.s32.totalorder 2, %s30
      // Predicated region
      $region101: #{tpu_custom_call.1} parent=5 // pred_check
        %p1551 = pneg %p1550
      $region102: #{tpu_custom_call.1} parent=5 // pred_check_branch
        %1553 = sbr.rel (%p1551) target = $region104
      $region103: #{tpu_custom_call.1} parent=5 // pred_region
        %s1554 = ssub.s32 %s30, 2
        // Predicated region
        $region105: #{tpu_custom_call.1} parent=103 // pred_check
          %p1555 = pneg %p351
        $region106: #{tpu_custom_call.1} parent=103 // pred_check_branch
          %1557 = sbr.rel (%p1555) target = $region108
        $region107: #{tpu_custom_call.1} parent=103 // pred_region
          %s1558 = sand.u32 %s336, 1
          %s1559 = scalar_lea.sflag [#allocation4], %s1558
          %s1560 = sand.u32 %s336, 1
          %s1561 = smul.addr %s1560, 16
          %s1562 = scalar_lea.vmem [#allocation11], %s1561
          %1563 = dma.done %s1559, 256
        $region108: #{tpu_custom_call.1} parent=103 // pred_fallthru
          _
        // Predicated region
        $region109: #{tpu_custom_call.1} parent=103 // pred_check
          %p1564 = pneg %p379
        $region110: #{tpu_custom_call.1} parent=103 // pred_check_branch
          %1566 = sbr.rel (%p1564) target = $region112
        $region111: #{tpu_custom_call.1} parent=103 // pred_region
          %s1567 = sand.u32 %s364, 1
          %s1568 = scalar_lea.sflag [#allocation13], %s1567
          %s1569 = sand.u32 %s364, 1
          %s1570 = smul.addr %s1569, 64
          %s1571 = scalar_lea.vmem [#allocation12], %s1570
          %1572 = dma.done %s1568, 1024
        $region112: #{tpu_custom_call.1} parent=103 // pred_fallthru
          _
      $region104: #{tpu_custom_call.1} parent=5 // pred_fallthru
        _
    $region6: #{tpu_custom_call.1} parent=1 // loop_footer
      %s34 = sadd.s32 1, %s30
    $region7: #{tpu_custom_call.1} parent=1 // loop_footer_branch
      %29 = sbr.rel target = $region3
    $region8: #{tpu_custom_call.1} parent=1 // loop_exit
      _
    %1573 = vsyncpa [#allocation3], 1
    %s1574 = scalar_lea.sflag [#allocation3], 1
    %1575 = vsyncpa %s1574, 1
    %1576 = vsyncpa [#allocation6], 1
    %1577 = vsyncpa [#allocation9], 1
    %1578 = vsyncpa [#allocation4], 1
    %s1579 = scalar_lea.sflag [#allocation4], 1
    %1580 = vsyncpa %s1579, 1
    %1581 = vsyncpa [#allocation13], 1
    %s1582 = scalar_lea.sflag [#allocation13], 1
    %1583 = vsyncpa %s1582, 1

</llo_original>
